<compile_context>
chip_gen: v6e
topology: v6e:2x2x1
jax: 0.10.0
libtpu: 0.0.40
codegen_flags: <defaults>
</compile_context>

<pallas_src>
import functools

import jax
import jax.numpy as jnp
from jax.experimental import pallas as pl
from jax.experimental.pallas import tpu as pltpu

EPS = 1e-5
DILATIONS = (6, 12, 18)          # branch2/3/4 dilations (rate = 1)
MAX_D = max(DILATIONS)

# TODO(synk): the shadowed MobileNetV2-backbone __init__/forward (first
# definitions) depend on an undefined external `mobilenetv2()` factory and are
# overridden by the later (ASPP) definitions, so only the effective ASPP
# forward is kernelized.


# --------------------------------------------------------------------------
# Fused ASPP kernel: one image per grid step, everything resident in VMEM.
# Activations are lane-dense (H, W*C); output stored as (H, W*Cout).
# --------------------------------------------------------------------------
def _aspp_fused_kernel(xp_ref, dww_ref, dwb_ref, wblk_ref, bblk_ref,
                       w5_ref, b5_ref, wcm_ref, wcg_ref, bc_ref, o_ref,
                       *, H, W, Cin):
    WC = W * Cin
    ctr = MAX_D * Cin

    # center (unpadded) view of the input, lane-dense (H, W*Cin)
    x_wd = xp_ref[0, MAX_D:MAX_D + H, ctr:ctr + WC]

    # depthwise 3x3 dilated conv + folded BN + ReLU for the three branches,
    # all reading the single max-dilation padded buffer.
    feats = [x_wd]
    for bi, d in enumerate(DILATIONS):
        acc = jnp.zeros((H, WC), jnp.float32)
        for kh in range(3):
            r0 = MAX_D - d + kh * d
            for kw in range(3):
                c0 = (MAX_D - d + kw * d) * Cin
                t = bi * 9 + kh * 3 + kw
                acc = acc + xp_ref[0, r0:r0 + H, c0:c0 + WC] * dww_ref[t:t + 1, :]
        feats.append(jnp.maximum(acc + dwb_ref[bi:bi + 1, :], 0.0))

    # [x | dw6 | dw12 | dw18] -> one block-diagonal matmul == [b1|b2|b3|b4]
    xin = jnp.concatenate(feats, axis=1)                        # (H, 4*W*Cin)
    cat4 = jnp.dot(xin, wblk_ref[...], preferred_element_type=jnp.float32)
    cat4 = jnp.maximum(cat4 + bblk_ref[...], 0.0)               # (H, 4*W*Cout)

    # branch5: global mean -> 1x1 conv + BN + ReLU (rank-1 broadcast term)
    rowmean = jnp.mean(x_wd, axis=0, keepdims=True)             # (1, W*Cin)
    g = jnp.dot(rowmean, w5_ref[...], preferred_element_type=jnp.float32)
    g = jnp.maximum(g + b5_ref[...], 0.0)                       # (1, Cout)
    g_lanes = jnp.dot(g, wcg_ref[...], preferred_element_type=jnp.float32)

    # conv_cat 1x1 + BN + ReLU (branch5 enters as a broadcast add)
    out = jnp.dot(cat4, wcm_ref[...], preferred_element_type=jnp.float32)
    o_ref[0] = jnp.maximum(out + g_lanes + bc_ref[...], 0.0)    # (H, W*Cout)


# --------------------------------------------------------------------------
# Deterministic synthetic parameters mirroring the PyTorch module structure
# (conv with bias, followed by BatchNorm running stats).
# --------------------------------------------------------------------------
def _bn_init(key, c):
    k1, k2, k3, k4 = jax.random.split(key, 4)
    return dict(gamma=1.0 + 0.1 * jax.random.normal(k1, (c,), jnp.float32),
                beta=0.1 * jax.random.normal(k2, (c,), jnp.float32),
                mean=0.1 * jax.random.normal(k3, (c,), jnp.float32),
                var=1.0 + 0.1 * jnp.abs(jax.random.normal(k4, (c,), jnp.float32)))


def _conv1x1_init(key, cin, cout):
    k1, k2, k3 = jax.random.split(key, 3)
    return dict(w=0.1 * jax.random.normal(k1, (cin, cout), jnp.float32),
                b=0.1 * jax.random.normal(k2, (cout,), jnp.float32),
                bn=_bn_init(k3, cout))


def _dw_branch_init(key, cin, cout):
    k1, k2, k3, k4 = jax.random.split(key, 4)
    return dict(dw_w=0.1 * jax.random.normal(k1, (9, cin), jnp.float32),
                dw_b=0.1 * jax.random.normal(k2, (cin,), jnp.float32),
                dw_bn=_bn_init(k3, cin),
                pw=_conv1x1_init(k4, cin, cout))


def init_params(key, dim_in, dim_out):
    k = jax.random.split(key, 6)
    return dict(branch1=_conv1x1_init(k[0], dim_in, dim_out),
                branch2=_dw_branch_init(k[1], dim_in, dim_out),
                branch3=_dw_branch_init(k[2], dim_in, dim_out),
                branch4=_dw_branch_init(k[3], dim_in, dim_out),
                branch5=_conv1x1_init(k[4], dim_in, dim_out),
                conv_cat=_conv1x1_init(k[5], 5 * dim_out, dim_out))


# --------------------------------------------------------------------------
# Parameter folding / replication for the fused kernel.
# --------------------------------------------------------------------------
def _bn_scale_shift(bn):
    s = bn['gamma'] / jnp.sqrt(bn['var'] + EPS)
    return s, bn['beta'] - bn['mean'] * s


def _fold_conv1x1(p):
    # BN(x @ w + b) == x @ (w*s) + (b*s + shift)
    s, sh = _bn_scale_shift(p['bn'])
    return p['w'] * s[None, :], p['b'] * s + sh


def _block_diag(blocks):
    rows = sum(b.shape[0] for b in blocks)
    cols = sum(b.shape[1] for b in blocks)
    out = jnp.zeros((rows, cols), jnp.float32)
    i = j = 0
    for b in blocks:
        out = out.at[i:i + b.shape[0], j:j + b.shape[1]].set(b)
        i += b.shape[0]
        j += b.shape[1]
    return out


def _prepare_operands(params, Cout, W):
    eye_w = jnp.eye(W, dtype=jnp.float32)

    # pointwise weights for branch1..4 (folded), depthwise taps (folded, W-tiled)
    pw_ws, pw_bs = [], []
    w1, b1 = _fold_conv1x1(params['branch1'])
    pw_ws.append(w1)
    pw_bs.append(b1)

    dww_rows, dwb_rows = [], []
    for name in ('branch2', 'branch3', 'branch4'):
        p = params[name]
        s, sh = _bn_scale_shift(p['dw_bn'])
        taps = p['dw_w'] * s[None, :]                  # (9, Cin)
        bias = p['dw_b'] * s + sh                      # (Cin,)
        dww_rows.append(jnp.tile(taps, (1, W)))        # (9, W*Cin)
        dwb_rows.append(jnp.tile(bias, W))             # (W*Cin,)
        wp, bp = _fold_conv1x1(p['pw'])
        pw_ws.append(wp)
        pw_bs.append(bp)

    dww = jnp.concatenate(dww_rows, axis=0)            # (27, W*Cin)
    dwb = jnp.stack(dwb_rows, axis=0)                  # (3,  W*Cin)

    # block-diagonal, W-replicated weight: [x|dw6|dw12|dw18] -> [b1|b2|b3|b4]
    wblk = _block_diag([jnp.kron(eye_w, wb) for wb in pw_ws])        # (4*W*Cin, 4*W*Cout)
    bblk = jnp.concatenate([jnp.tile(bb, W) for bb in pw_bs])[None]  # (1, 4*W*Cout)

    # branch5: fold the spatial mean's 1/W into the (W-replicated) weight
    w5, b5 = _fold_conv1x1(params['branch5'])
    w5_rep = jnp.tile(w5, (W, 1)) / W                  # (W*Cin, Cout)
    b5 = b5[None, :]                                   # (1, Cout)

    # conv_cat split into the [b1..b4] part and the broadcast branch5 part
    wc, bc = _fold_conv1x1(params['conv_cat'])         # (5*Cout, Cout), (Cout,)
    wcm = jnp.concatenate(
        [jnp.kron(eye_w, wc[b * Cout:(b + 1) * Cout, :]) for b in range(4)],
        axis=0)                                        # (4*W*Cout, W*Cout)
    wcg = jnp.tile(wc[4 * Cout:, :], (1, W))           # (Cout, W*Cout)
    bc = jnp.tile(bc, W)[None, :]                      # (1, W*Cout)

    return dww, dwb, wblk, bblk, w5_rep, b5, wcm, wcg, bc


# --------------------------------------------------------------------------
# Forward: NCHW in / NCHW out like the PyTorch module.
# --------------------------------------------------------------------------
def aspp_forward(x_nchw, params):
    N, Cin, H, W = x_nchw.shape
    Cout = params['branch1']['w'].shape[1]

    x = jnp.transpose(x_nchw, (0, 2, 3, 1)).astype(jnp.float32)      # NHWC
    xp = jnp.pad(x, ((0, 0), (MAX_D, MAX_D), (MAX_D, MAX_D), (0, 0)))
    Hp, Wp = H + 2 * MAX_D, W + 2 * MAX_D
    xp = xp.reshape(N, Hp, Wp * Cin)                                  # lane-dense

    operands = _prepare_operands(params, Cout, W)
    weight_specs = [pl.BlockSpec(w.shape, lambda n: (0, 0)) for w in operands]

    kernel = functools.partial(_aspp_fused_kernel, H=H, W=W, Cin=Cin)
    out = pl.pallas_call(
        kernel,
        out_shape=jax.ShapeDtypeStruct((N, H, W * Cout), jnp.float32),
        grid=(N,),
        in_specs=[pl.BlockSpec((1, Hp, Wp * Cin), lambda n: (n, 0, 0))]
                 + weight_specs,
        out_specs=pl.BlockSpec((1, H, W * Cout), lambda n: (n, 0, 0)),
        compiler_params=pltpu.CompilerParams(
            dimension_semantics=("parallel",)),
    )(xp, *operands)

    return out.reshape(N, H, W, Cout).transpose(0, 3, 1, 2)           # NCHW


# --------------------------------------------------------------------------
# Pure-JAX reference (mirrors the PyTorch module) for correctness checking.
# --------------------------------------------------------------------------
def _ref_forward(x_nchw, params):
    x = jnp.transpose(x_nchw, (0, 2, 3, 1)).astype(jnp.float32)
    N, H, W, Cin = x.shape
    hi = jax.lax.Precision.HIGHEST

    def bn(y, p):
        s = p['gamma'] / jnp.sqrt(p['var'] + EPS)
        return y * s + (p['beta'] - p['mean'] * s)

    def conv1x1(y, p):
        out = jnp.einsum('nhwc,cd->nhwd', y, p['w'], precision=hi) + p['b']
        return jnp.maximum(bn(out, p['bn']), 0.0)

    def dw_branch(y, p, d):
        w = p['dw_w'].reshape(3, 3, Cin)[:, :, None, :]      # (3,3,1,Cin) HWIO
        out = jax.lax.conv_general_dilated(
            y, w, window_strides=(1, 1), padding=[(d, d), (d, d)],
            rhs_dilation=(d, d), dimension_numbers=('NHWC', 'HWIO', 'NHWC'),
            feature_group_count=Cin, precision=hi)
        out = jnp.maximum(bn(out + p['dw_b'], p['dw_bn']), 0.0)
        return conv1x1(out, p['pw'])

    b1 = conv1x1(x, params['branch1'])
    b2 = dw_branch(x, params['branch2'], 6)
    b3 = dw_branch(x, params['branch3'], 12)
    b4 = dw_branch(x, params['branch4'], 18)
    g = conv1x1(jnp.mean(x, axis=(1, 2), keepdims=True), params['branch5'])
    g = jnp.broadcast_to(g, (N, H, W, g.shape[-1]))          # 1x1 bilinear up
    cat = jnp.concatenate([b1, b2, b3, b4, g], axis=-1)
    out = conv1x1(cat, params['conv_cat'])
    return jnp.transpose(out, (0, 3, 1, 2))


if __name__ == "__main__":
    key = jax.random.PRNGKey(0)
    kx, kp = jax.random.split(key)

    N, C_IN, H, W = 2, 4, 16, 16
    DIM_OUT = 8

    x = jax.random.normal(kx, (N, C_IN, H, W), jnp.float32)   # NCHW like PyTorch
    params = init_params(kp, C_IN, DIM_OUT)

    out = jax.block_until_ready(jax.jit(aspp_forward)(x, params))
    assert out.shape == (N, DIM_OUT, H, W), out.shape
    assert bool(jnp.all(jnp.isfinite(out)))

    ref = jax.block_until_ready(jax.jit(_ref_forward)(x, params))
    max_err = float(jnp.max(jnp.abs(out - ref)))
    assert jnp.allclose(out, ref, rtol=2e-3, atol=2e-3), max_err

    print("KERNEL_OK")
</pallas_src>

<mosaic_0001>
module attributes {stable_mosaic.version = 11 : i64} {
  func.func @_aspp_fused_kernel(%arg0: i32, %arg1: memref<1x52x208xf32, #tpu.memory_space<vmem>>, %arg2: memref<27x64xf32, #tpu.memory_space<vmem>>, %arg3: memref<3x64xf32, #tpu.memory_space<vmem>>, %arg4: memref<256x512xf32, #tpu.memory_space<vmem>>, %arg5: memref<1x512xf32, #tpu.memory_space<vmem>>, %arg6: memref<64x8xf32, #tpu.memory_space<vmem>>, %arg7: memref<1x8xf32, #tpu.memory_space<vmem>>, %arg8: memref<512x128xf32, #tpu.memory_space<vmem>>, %arg9: memref<8x128xf32, #tpu.memory_space<vmem>>, %arg10: memref<1x128xf32, #tpu.memory_space<vmem>>, %arg11: memref<1x16x128xf32, #tpu.memory_space<vmem>>) attributes {dimension_semantics = [#tpu.dimension_semantics<parallel>], iteration_bounds = array<i64: 2>, scalar_prefetch = 0 : i64, scratch_operands = 0 : i64, tpu.core_type = #tpu.core_type<tc>, window_params = [{transform_indices = @transform_0, window_bounds = array<i64: 1, 52, 208>}, {pipeline_mode = #tpu.pipeline_mode<synchronous>, transform_indices = @transform_1, window_bounds = array<i64: 27, 64>}, {pipeline_mode = #tpu.pipeline_mode<synchronous>, transform_indices = @transform_2, window_bounds = array<i64: 3, 64>}, {pipeline_mode = #tpu.pipeline_mode<synchronous>, transform_indices = @transform_3, window_bounds = array<i64: 256, 512>}, {pipeline_mode = #tpu.pipeline_mode<synchronous>, transform_indices = @transform_4, window_bounds = array<i64: 1, 512>}, {pipeline_mode = #tpu.pipeline_mode<synchronous>, transform_indices = @transform_5, window_bounds = array<i64: 64, 8>}, {pipeline_mode = #tpu.pipeline_mode<synchronous>, transform_indices = @transform_6, window_bounds = array<i64: 1, 8>}, {pipeline_mode = #tpu.pipeline_mode<synchronous>, transform_indices = @transform_7, window_bounds = array<i64: 512, 128>}, {pipeline_mode = #tpu.pipeline_mode<synchronous>, transform_indices = @transform_8, window_bounds = array<i64: 8, 128>}, {pipeline_mode = #tpu.pipeline_mode<synchronous>, transform_indices = @transform_9, window_bounds = array<i64: 1, 128>}, {transform_indices = @transform_10, window_bounds = array<i64: 1, 16, 128>}]} {
    %c0 = arith.constant 0 : index
    %c18 = arith.constant 18 : index
    %c72 = arith.constant 72 : index
    %0 = vector.load %arg1[%c0, %c18, %c72] : memref<1x52x208xf32, #tpu.memory_space<vmem>>, vector<1x16x64xf32>
    %1 = vector.shape_cast %0 : vector<1x16x64xf32> to vector<16x64xf32>
    %cst = arith.constant 0.000000e+00 : f32
    %2 = vector.broadcast %cst : f32 to vector<16x64xf32>
    %c0_0 = arith.constant 0 : index
    %c12 = arith.constant 12 : index
    %c48 = arith.constant 48 : index
    %3 = vector.load %arg1[%c0_0, %c12, %c48] : memref<1x52x208xf32, #tpu.memory_space<vmem>>, vector<1x16x64xf32>
    %4 = vector.shape_cast %3 : vector<1x16x64xf32> to vector<16x64xf32>
    %c0_1 = arith.constant 0 : index
    %c0_2 = arith.constant 0 : index
    %5 = vector.load %arg2[%c0_1, %c0_2] : memref<27x64xf32, #tpu.memory_space<vmem>>, vector<1x64xf32>
    %6 = vector.broadcast %5 : vector<1x64xf32> to vector<16x64xf32>
    %7 = arith.mulf %4, %6 : vector<16x64xf32>
    %8 = arith.addf %2, %7 : vector<16x64xf32>
    %c0_3 = arith.constant 0 : index
    %c12_4 = arith.constant 12 : index
    %c72_5 = arith.constant 72 : index
    %9 = vector.load %arg1[%c0_3, %c12_4, %c72_5] : memref<1x52x208xf32, #tpu.memory_space<vmem>>, vector<1x16x64xf32>
    %10 = vector.shape_cast %9 : vector<1x16x64xf32> to vector<16x64xf32>
    %c1 = arith.constant 1 : index
    %c0_6 = arith.constant 0 : index
    %11 = vector.load %arg2[%c1, %c0_6] : memref<27x64xf32, #tpu.memory_space<vmem>>, vector<1x64xf32>
    %12 = vector.broadcast %11 : vector<1x64xf32> to vector<16x64xf32>
    %13 = arith.mulf %10, %12 : vector<16x64xf32>
    %14 = arith.addf %8, %13 : vector<16x64xf32>
    %c0_7 = arith.constant 0 : index
    %c12_8 = arith.constant 12 : index
    %c96 = arith.constant 96 : index
    %15 = vector.load %arg1[%c0_7, %c12_8, %c96] : memref<1x52x208xf32, #tpu.memory_space<vmem>>, vector<1x16x64xf32>
    %16 = vector.shape_cast %15 : vector<1x16x64xf32> to vector<16x64xf32>
    %c2 = arith.constant 2 : index
    %c0_9 = arith.constant 0 : index
    %17 = vector.load %arg2[%c2, %c0_9] : memref<27x64xf32, #tpu.memory_space<vmem>>, vector<1x64xf32>
    %18 = vector.broadcast %17 : vector<1x64xf32> to vector<16x64xf32>
    %19 = arith.mulf %16, %18 : vector<16x64xf32>
    %20 = arith.addf %14, %19 : vector<16x64xf32>
    %c0_10 = arith.constant 0 : index
    %c18_11 = arith.constant 18 : index
    %c48_12 = arith.constant 48 : index
    %21 = vector.load %arg1[%c0_10, %c18_11, %c48_12] : memref<1x52x208xf32, #tpu.memory_space<vmem>>, vector<1x16x64xf32>
    %22 = vector.shape_cast %21 : vector<1x16x64xf32> to vector<16x64xf32>
    %c3 = arith.constant 3 : index
    %c0_13 = arith.constant 0 : index
    %23 = vector.load %arg2[%c3, %c0_13] : memref<27x64xf32, #tpu.memory_space<vmem>>, vector<1x64xf32>
    %24 = vector.broadcast %23 : vector<1x64xf32> to vector<16x64xf32>
    %25 = arith.mulf %22, %24 : vector<16x64xf32>
    %26 = arith.addf %20, %25 : vector<16x64xf32>
    %c0_14 = arith.constant 0 : index
    %c18_15 = arith.constant 18 : index
    %c72_16 = arith.constant 72 : index
    %27 = vector.load %arg1[%c0_14, %c18_15, %c72_16] : memref<1x52x208xf32, #tpu.memory_space<vmem>>, vector<1x16x64xf32>
    %28 = vector.shape_cast %27 : vector<1x16x64xf32> to vector<16x64xf32>
    %c4 = arith.constant 4 : index
    %c0_17 = arith.constant 0 : index
    %29 = vector.load %arg2[%c4, %c0_17] : memref<27x64xf32, #tpu.memory_space<vmem>>, vector<1x64xf32>
    %30 = vector.broadcast %29 : vector<1x64xf32> to vector<16x64xf32>
    %31 = arith.mulf %28, %30 : vector<16x64xf32>
    %32 = arith.addf %26, %31 : vector<16x64xf32>
    %c0_18 = arith.constant 0 : index
    %c18_19 = arith.constant 18 : index
    %c96_20 = arith.constant 96 : index
    %33 = vector.load %arg1[%c0_18, %c18_19, %c96_20] : memref<1x52x208xf32, #tpu.memory_space<vmem>>, vector<1x16x64xf32>
    %34 = vector.shape_cast %33 : vector<1x16x64xf32> to vector<16x64xf32>
    %c5 = arith.constant 5 : index
    %c0_21 = arith.constant 0 : index
    %35 = vector.load %arg2[%c5, %c0_21] : memref<27x64xf32, #tpu.memory_space<vmem>>, vector<1x64xf32>
    %36 = vector.broadcast %35 : vector<1x64xf32> to vector<16x64xf32>
    %37 = arith.mulf %34, %36 : vector<16x64xf32>
    %38 = arith.addf %32, %37 : vector<16x64xf32>
    %c0_22 = arith.constant 0 : index
    %c24 = arith.constant 24 : index
    %c48_23 = arith.constant 48 : index
    %39 = vector.load %arg1[%c0_22, %c24, %c48_23] : memref<1x52x208xf32, #tpu.memory_space<vmem>>, vector<1x16x64xf32>
    %40 = vector.shape_cast %39 : vector<1x16x64xf32> to vector<16x64xf32>
    %c6 = arith.constant 6 : index
    %c0_24 = arith.constant 0 : index
    %41 = vector.load %arg2[%c6, %c0_24] : memref<27x64xf32, #tpu.memory_space<vmem>>, vector<1x64xf32>
    %42 = vector.broadcast %41 : vector<1x64xf32> to vector<16x64xf32>
    %43 = arith.mulf %40, %42 : vector<16x64xf32>
    %44 = arith.addf %38, %43 : vector<16x64xf32>
    %c0_25 = arith.constant 0 : index
    %c24_26 = arith.constant 24 : index
    %c72_27 = arith.constant 72 : index
    %45 = vector.load %arg1[%c0_25, %c24_26, %c72_27] : memref<1x52x208xf32, #tpu.memory_space<vmem>>, vector<1x16x64xf32>
    %46 = vector.shape_cast %45 : vector<1x16x64xf32> to vector<16x64xf32>
    %c7 = arith.constant 7 : index
    %c0_28 = arith.constant 0 : index
    %47 = vector.load %arg2[%c7, %c0_28] : memref<27x64xf32, #tpu.memory_space<vmem>>, vector<1x64xf32>
    %48 = vector.broadcast %47 : vector<1x64xf32> to vector<16x64xf32>
    %49 = arith.mulf %46, %48 : vector<16x64xf32>
    %50 = arith.addf %44, %49 : vector<16x64xf32>
    %c0_29 = arith.constant 0 : index
    %c24_30 = arith.constant 24 : index
    %c96_31 = arith.constant 96 : index
    %51 = vector.load %arg1[%c0_29, %c24_30, %c96_31] : memref<1x52x208xf32, #tpu.memory_space<vmem>>, vector<1x16x64xf32>
    %52 = vector.shape_cast %51 : vector<1x16x64xf32> to vector<16x64xf32>
    %c8 = arith.constant 8 : index
    %c0_32 = arith.constant 0 : index
    %53 = vector.load %arg2[%c8, %c0_32] : memref<27x64xf32, #tpu.memory_space<vmem>>, vector<1x64xf32>
    %54 = vector.broadcast %53 : vector<1x64xf32> to vector<16x64xf32>
    %55 = arith.mulf %52, %54 : vector<16x64xf32>
    %56 = arith.addf %50, %55 : vector<16x64xf32>
    %c0_33 = arith.constant 0 : index
    %c0_34 = arith.constant 0 : index
    %57 = vector.load %arg3[%c0_33, %c0_34] : memref<3x64xf32, #tpu.memory_space<vmem>>, vector<1x64xf32>
    %58 = vector.broadcast %57 : vector<1x64xf32> to vector<16x64xf32>
    %59 = arith.addf %56, %58 : vector<16x64xf32>
    %cst_35 = arith.constant 0.000000e+00 : f32
    %60 = vector.broadcast %cst_35 : f32 to vector<16x64xf32>
    %61 = arith.maximumf %59, %60 : vector<16x64xf32>
    %cst_36 = arith.constant 0.000000e+00 : f32
    %62 = vector.broadcast %cst_36 : f32 to vector<16x64xf32>
    %c0_37 = arith.constant 0 : index
    %c6_38 = arith.constant 6 : index
    %c24_39 = arith.constant 24 : index
    %63 = vector.load %arg1[%c0_37, %c6_38, %c24_39] : memref<1x52x208xf32, #tpu.memory_space<vmem>>, vector<1x16x64xf32>
    %64 = vector.shape_cast %63 : vector<1x16x64xf32> to vector<16x64xf32>
    %c9 = arith.constant 9 : index
    %c0_40 = arith.constant 0 : index
    %65 = vector.load %arg2[%c9, %c0_40] : memref<27x64xf32, #tpu.memory_space<vmem>>, vector<1x64xf32>
    %66 = vector.broadcast %65 : vector<1x64xf32> to vector<16x64xf32>
    %67 = arith.mulf %64, %66 : vector<16x64xf32>
    %68 = arith.addf %62, %67 : vector<16x64xf32>
    %c0_41 = arith.constant 0 : index
    %c6_42 = arith.constant 6 : index
    %c72_43 = arith.constant 72 : index
    %69 = vector.load %arg1[%c0_41, %c6_42, %c72_43] : memref<1x52x208xf32, #tpu.memory_space<vmem>>, vector<1x16x64xf32>
    %70 = vector.shape_cast %69 : vector<1x16x64xf32> to vector<16x64xf32>
    %c10 = arith.constant 10 : index
    %c0_44 = arith.constant 0 : index
    %71 = vector.load %arg2[%c10, %c0_44] : memref<27x64xf32, #tpu.memory_space<vmem>>, vector<1x64xf32>
    %72 = vector.broadcast %71 : vector<1x64xf32> to vector<16x64xf32>
    %73 = arith.mulf %70, %72 : vector<16x64xf32>
    %74 = arith.addf %68, %73 : vector<16x64xf32>
    %c0_45 = arith.constant 0 : index
    %c6_46 = arith.constant 6 : index
    %c120 = arith.constant 120 : index
    %75 = vector.load %arg1[%c0_45, %c6_46, %c120] : memref<1x52x208xf32, #tpu.memory_space<vmem>>, vector<1x16x64xf32>
    %76 = vector.shape_cast %75 : vector<1x16x64xf32> to vector<16x64xf32>
    %c11 = arith.constant 11 : index
    %c0_47 = arith.constant 0 : index
    %77 = vector.load %arg2[%c11, %c0_47] : memref<27x64xf32, #tpu.memory_space<vmem>>, vector<1x64xf32>
    %78 = vector.broadcast %77 : vector<1x64xf32> to vector<16x64xf32>
    %79 = arith.mulf %76, %78 : vector<16x64xf32>
    %80 = arith.addf %74, %79 : vector<16x64xf32>
    %c0_48 = arith.constant 0 : index
    %c18_49 = arith.constant 18 : index
    %c24_50 = arith.constant 24 : index
    %81 = vector.load %arg1[%c0_48, %c18_49, %c24_50] : memref<1x52x208xf32, #tpu.memory_space<vmem>>, vector<1x16x64xf32>
    %82 = vector.shape_cast %81 : vector<1x16x64xf32> to vector<16x64xf32>
    %c12_51 = arith.constant 12 : index
    %c0_52 = arith.constant 0 : index
    %83 = vector.load %arg2[%c12_51, %c0_52] : memref<27x64xf32, #tpu.memory_space<vmem>>, vector<1x64xf32>
    %84 = vector.broadcast %83 : vector<1x64xf32> to vector<16x64xf32>
    %85 = arith.mulf %82, %84 : vector<16x64xf32>
    %86 = arith.addf %80, %85 : vector<16x64xf32>
    %c0_53 = arith.constant 0 : index
    %c18_54 = arith.constant 18 : index
    %c72_55 = arith.constant 72 : index
    %87 = vector.load %arg1[%c0_53, %c18_54, %c72_55] : memref<1x52x208xf32, #tpu.memory_space<vmem>>, vector<1x16x64xf32>
    %88 = vector.shape_cast %87 : vector<1x16x64xf32> to vector<16x64xf32>
    %c13 = arith.constant 13 : index
    %c0_56 = arith.constant 0 : index
    %89 = vector.load %arg2[%c13, %c0_56] : memref<27x64xf32, #tpu.memory_space<vmem>>, vector<1x64xf32>
    %90 = vector.broadcast %89 : vector<1x64xf32> to vector<16x64xf32>
    %91 = arith.mulf %88, %90 : vector<16x64xf32>
    %92 = arith.addf %86, %91 : vector<16x64xf32>
    %c0_57 = arith.constant 0 : index
    %c18_58 = arith.constant 18 : index
    %c120_59 = arith.constant 120 : index
    %93 = vector.load %arg1[%c0_57, %c18_58, %c120_59] : memref<1x52x208xf32, #tpu.memory_space<vmem>>, vector<1x16x64xf32>
    %94 = vector.shape_cast %93 : vector<1x16x64xf32> to vector<16x64xf32>
    %c14 = arith.constant 14 : index
    %c0_60 = arith.constant 0 : index
    %95 = vector.load %arg2[%c14, %c0_60] : memref<27x64xf32, #tpu.memory_space<vmem>>, vector<1x64xf32>
    %96 = vector.broadcast %95 : vector<1x64xf32> to vector<16x64xf32>
    %97 = arith.mulf %94, %96 : vector<16x64xf32>
    %98 = arith.addf %92, %97 : vector<16x64xf32>
    %c0_61 = arith.constant 0 : index
    %c30 = arith.constant 30 : index
    %c24_62 = arith.constant 24 : index
    %99 = vector.load %arg1[%c0_61, %c30, %c24_62] : memref<1x52x208xf32, #tpu.memory_space<vmem>>, vector<1x16x64xf32>
    %100 = vector.shape_cast %99 : vector<1x16x64xf32> to vector<16x64xf32>
    %c15 = arith.constant 15 : index
    %c0_63 = arith.constant 0 : index
    %101 = vector.load %arg2[%c15, %c0_63] : memref<27x64xf32, #tpu.memory_space<vmem>>, vector<1x64xf32>
    %102 = vector.broadcast %101 : vector<1x64xf32> to vector<16x64xf32>
    %103 = arith.mulf %100, %102 : vector<16x64xf32>
    %104 = arith.addf %98, %103 : vector<16x64xf32>
    %c0_64 = arith.constant 0 : index
    %c30_65 = arith.constant 30 : index
    %c72_66 = arith.constant 72 : index
    %105 = vector.load %arg1[%c0_64, %c30_65, %c72_66] : memref<1x52x208xf32, #tpu.memory_space<vmem>>, vector<1x16x64xf32>
    %106 = vector.shape_cast %105 : vector<1x16x64xf32> to vector<16x64xf32>
    %c16 = arith.constant 16 : index
    %c0_67 = arith.constant 0 : index
    %107 = vector.load %arg2[%c16, %c0_67] : memref<27x64xf32, #tpu.memory_space<vmem>>, vector<1x64xf32>
    %108 = vector.broadcast %107 : vector<1x64xf32> to vector<16x64xf32>
    %109 = arith.mulf %106, %108 : vector<16x64xf32>
    %110 = arith.addf %104, %109 : vector<16x64xf32>
    %c0_68 = arith.constant 0 : index
    %c30_69 = arith.constant 30 : index
    %c120_70 = arith.constant 120 : index
    %111 = vector.load %arg1[%c0_68, %c30_69, %c120_70] : memref<1x52x208xf32, #tpu.memory_space<vmem>>, vector<1x16x64xf32>
    %112 = vector.shape_cast %111 : vector<1x16x64xf32> to vector<16x64xf32>
    %c17 = arith.constant 17 : index
    %c0_71 = arith.constant 0 : index
    %113 = vector.load %arg2[%c17, %c0_71] : memref<27x64xf32, #tpu.memory_space<vmem>>, vector<1x64xf32>
    %114 = vector.broadcast %113 : vector<1x64xf32> to vector<16x64xf32>
    %115 = arith.mulf %112, %114 : vector<16x64xf32>
    %116 = arith.addf %110, %115 : vector<16x64xf32>
    %c1_72 = arith.constant 1 : index
    %c0_73 = arith.constant 0 : index
    %117 = vector.load %arg3[%c1_72, %c0_73] : memref<3x64xf32, #tpu.memory_space<vmem>>, vector<1x64xf32>
    %118 = vector.broadcast %117 : vector<1x64xf32> to vector<16x64xf32>
    %119 = arith.addf %116, %118 : vector<16x64xf32>
    %cst_74 = arith.constant 0.000000e+00 : f32
    %120 = vector.broadcast %cst_74 : f32 to vector<16x64xf32>
    %121 = arith.maximumf %119, %120 : vector<16x64xf32>
    %cst_75 = arith.constant 0.000000e+00 : f32
    %122 = vector.broadcast %cst_75 : f32 to vector<16x64xf32>
    %c0_76 = arith.constant 0 : index
    %c0_77 = arith.constant 0 : index
    %c0_78 = arith.constant 0 : index
    %123 = vector.load %arg1[%c0_76, %c0_77, %c0_78] : memref<1x52x208xf32, #tpu.memory_space<vmem>>, vector<1x16x64xf32>
    %124 = vector.shape_cast %123 : vector<1x16x64xf32> to vector<16x64xf32>
    %c18_79 = arith.constant 18 : index
    %c0_80 = arith.constant 0 : index
    %125 = vector.load %arg2[%c18_79, %c0_80] : memref<27x64xf32, #tpu.memory_space<vmem>>, vector<1x64xf32>
    %126 = vector.broadcast %125 : vector<1x64xf32> to vector<16x64xf32>
    %127 = arith.mulf %124, %126 : vector<16x64xf32>
    %128 = arith.addf %122, %127 : vector<16x64xf32>
    %c0_81 = arith.constant 0 : index
    %c0_82 = arith.constant 0 : index
    %c72_83 = arith.constant 72 : index
    %129 = vector.load %arg1[%c0_81, %c0_82, %c72_83] : memref<1x52x208xf32, #tpu.memory_space<vmem>>, vector<1x16x64xf32>
    %130 = vector.shape_cast %129 : vector<1x16x64xf32> to vector<16x64xf32>
    %c19 = arith.constant 19 : index
    %c0_84 = arith.constant 0 : index
    %131 = vector.load %arg2[%c19, %c0_84] : memref<27x64xf32, #tpu.memory_space<vmem>>, vector<1x64xf32>
    %132 = vector.broadcast %131 : vector<1x64xf32> to vector<16x64xf32>
    %133 = arith.mulf %130, %132 : vector<16x64xf32>
    %134 = arith.addf %128, %133 : vector<16x64xf32>
    %c0_85 = arith.constant 0 : index
    %c0_86 = arith.constant 0 : index
    %c144 = arith.constant 144 : index
    %135 = vector.load %arg1[%c0_85, %c0_86, %c144] : memref<1x52x208xf32, #tpu.memory_space<vmem>>, vector<1x16x64xf32>
    %136 = vector.shape_cast %135 : vector<1x16x64xf32> to vector<16x64xf32>
    %c20 = arith.constant 20 : index
    %c0_87 = arith.constant 0 : index
    %137 = vector.load %arg2[%c20, %c0_87] : memref<27x64xf32, #tpu.memory_space<vmem>>, vector<1x64xf32>
    %138 = vector.broadcast %137 : vector<1x64xf32> to vector<16x64xf32>
    %139 = arith.mulf %136, %138 : vector<16x64xf32>
    %140 = arith.addf %134, %139 : vector<16x64xf32>
    %c0_88 = arith.constant 0 : index
    %c18_89 = arith.constant 18 : index
    %c0_90 = arith.constant 0 : index
    %141 = vector.load %arg1[%c0_88, %c18_89, %c0_90] : memref<1x52x208xf32, #tpu.memory_space<vmem>>, vector<1x16x64xf32>
    %142 = vector.shape_cast %141 : vector<1x16x64xf32> to vector<16x64xf32>
    %c21 = arith.constant 21 : index
    %c0_91 = arith.constant 0 : index
    %143 = vector.load %arg2[%c21, %c0_91] : memref<27x64xf32, #tpu.memory_space<vmem>>, vector<1x64xf32>
    %144 = vector.broadcast %143 : vector<1x64xf32> to vector<16x64xf32>
    %145 = arith.mulf %142, %144 : vector<16x64xf32>
    %146 = arith.addf %140, %145 : vector<16x64xf32>
    %c0_92 = arith.constant 0 : index
    %c18_93 = arith.constant 18 : index
    %c72_94 = arith.constant 72 : index
    %147 = vector.load %arg1[%c0_92, %c18_93, %c72_94] : memref<1x52x208xf32, #tpu.memory_space<vmem>>, vector<1x16x64xf32>
    %148 = vector.shape_cast %147 : vector<1x16x64xf32> to vector<16x64xf32>
    %c22 = arith.constant 22 : index
    %c0_95 = arith.constant 0 : index
    %149 = vector.load %arg2[%c22, %c0_95] : memref<27x64xf32, #tpu.memory_space<vmem>>, vector<1x64xf32>
    %150 = vector.broadcast %149 : vector<1x64xf32> to vector<16x64xf32>
    %151 = arith.mulf %148, %150 : vector<16x64xf32>
    %152 = arith.addf %146, %151 : vector<16x64xf32>
    %c0_96 = arith.constant 0 : index
    %c18_97 = arith.constant 18 : index
    %c144_98 = arith.constant 144 : index
    %153 = vector.load %arg1[%c0_96, %c18_97, %c144_98] : memref<1x52x208xf32, #tpu.memory_space<vmem>>, vector<1x16x64xf32>
    %154 = vector.shape_cast %153 : vector<1x16x64xf32> to vector<16x64xf32>
    %c23 = arith.constant 23 : index
    %c0_99 = arith.constant 0 : index
    %155 = vector.load %arg2[%c23, %c0_99] : memref<27x64xf32, #tpu.memory_space<vmem>>, vector<1x64xf32>
    %156 = vector.broadcast %155 : vector<1x64xf32> to vector<16x64xf32>
    %157 = arith.mulf %154, %156 : vector<16x64xf32>
    %158 = arith.addf %152, %157 : vector<16x64xf32>
    %c0_100 = arith.constant 0 : index
    %c36 = arith.constant 36 : index
    %c0_101 = arith.constant 0 : index
    %159 = vector.load %arg1[%c0_100, %c36, %c0_101] : memref<1x52x208xf32, #tpu.memory_space<vmem>>, vector<1x16x64xf32>
    %160 = vector.shape_cast %159 : vector<1x16x64xf32> to vector<16x64xf32>
    %c24_102 = arith.constant 24 : index
    %c0_103 = arith.constant 0 : index
    %161 = vector.load %arg2[%c24_102, %c0_103] : memref<27x64xf32, #tpu.memory_space<vmem>>, vector<1x64xf32>
    %162 = vector.broadcast %161 : vector<1x64xf32> to vector<16x64xf32>
    %163 = arith.mulf %160, %162 : vector<16x64xf32>
    %164 = arith.addf %158, %163 : vector<16x64xf32>
    %c0_104 = arith.constant 0 : index
    %c36_105 = arith.constant 36 : index
    %c72_106 = arith.constant 72 : index
    %165 = vector.load %arg1[%c0_104, %c36_105, %c72_106] : memref<1x52x208xf32, #tpu.memory_space<vmem>>, vector<1x16x64xf32>
    %166 = vector.shape_cast %165 : vector<1x16x64xf32> to vector<16x64xf32>
    %c25 = arith.constant 25 : index
    %c0_107 = arith.constant 0 : index
    %167 = vector.load %arg2[%c25, %c0_107] : memref<27x64xf32, #tpu.memory_space<vmem>>, vector<1x64xf32>
    %168 = vector.broadcast %167 : vector<1x64xf32> to vector<16x64xf32>
    %169 = arith.mulf %166, %168 : vector<16x64xf32>
    %170 = arith.addf %164, %169 : vector<16x64xf32>
    %c0_108 = arith.constant 0 : index
    %c36_109 = arith.constant 36 : index
    %c144_110 = arith.constant 144 : index
    %171 = vector.load %arg1[%c0_108, %c36_109, %c144_110] : memref<1x52x208xf32, #tpu.memory_space<vmem>>, vector<1x16x64xf32>
    %172 = vector.shape_cast %171 : vector<1x16x64xf32> to vector<16x64xf32>
    %c26 = arith.constant 26 : index
    %c0_111 = arith.constant 0 : index
    %173 = vector.load %arg2[%c26, %c0_111] : memref<27x64xf32, #tpu.memory_space<vmem>>, vector<1x64xf32>
    %174 = vector.broadcast %173 : vector<1x64xf32> to vector<16x64xf32>
    %175 = arith.mulf %172, %174 : vector<16x64xf32>
    %176 = arith.addf %170, %175 : vector<16x64xf32>
    %c2_112 = arith.constant 2 : index
    %c0_113 = arith.constant 0 : index
    %177 = vector.load %arg3[%c2_112, %c0_113] : memref<3x64xf32, #tpu.memory_space<vmem>>, vector<1x64xf32>
    %178 = vector.broadcast %177 : vector<1x64xf32> to vector<16x64xf32>
    %179 = arith.addf %176, %178 : vector<16x64xf32>
    %cst_114 = arith.constant 0.000000e+00 : f32
    %180 = vector.broadcast %cst_114 : f32 to vector<16x64xf32>
    %181 = arith.maximumf %179, %180 : vector<16x64xf32>
    %182 = tpu.concatenate %1, %61, %121, %181 in 1 : vector<16x64xf32>, vector<16x64xf32>, vector<16x64xf32>, vector<16x64xf32> -> vector<16x256xf32>
    %c0_115 = arith.constant 0 : index
    %c0_116 = arith.constant 0 : index
    %183 = vector.load %arg4[%c0_115, %c0_116] : memref<256x512xf32, #tpu.memory_space<vmem>>, vector<256x512xf32>
    %cst_117 = arith.constant dense<0.000000e+00> : vector<16x512xf32>
    %184 = tpu.matmul %182, %183, %cst_117 {dimension_numbers = #tpu.dot_dimension_numbers<[1], [0], [0], [1], [0, 0, 1, 1], [], []>} : vector<16x256xf32>, vector<256x512xf32>, vector<16x512xf32> -> vector<16x512xf32>
    %c0_118 = arith.constant 0 : index
    %c0_119 = arith.constant 0 : index
    %185 = vector.load %arg5[%c0_118, %c0_119] : memref<1x512xf32, #tpu.memory_space<vmem>>, vector<1x512xf32>
    %186 = vector.broadcast %185 : vector<1x512xf32> to vector<16x512xf32>
    %187 = arith.addf %184, %186 : vector<16x512xf32>
    %cst_120 = arith.constant 0.000000e+00 : f32
    %188 = vector.broadcast %cst_120 : f32 to vector<16x512xf32>
    %189 = arith.maximumf %187, %188 : vector<16x512xf32>
    %cst_121 = arith.constant dense<0.000000e+00> : vector<64xf32>
    %190 = vector.multi_reduction <add>, %1, %cst_121 [0] : vector<16x64xf32> to vector<64xf32>
    %191 = vector.shape_cast %190 : vector<64xf32> to vector<1x64xf32>
    %cst_122 = arith.constant 1.600000e+01 : f32
    %192 = vector.broadcast %cst_122 : f32 to vector<1x64xf32>
    %193 = arith.divf %191, %192 : vector<1x64xf32>
    %c0_123 = arith.constant 0 : index
    %c0_124 = arith.constant 0 : index
    %194 = vector.load %arg6[%c0_123, %c0_124] : memref<64x8xf32, #tpu.memory_space<vmem>>, vector<64x8xf32>
    %cst_125 = arith.constant dense<0.000000e+00> : vector<1x8xf32>
    %195 = tpu.matmul %193, %194, %cst_125 {dimension_numbers = #tpu.dot_dimension_numbers<[1], [0], [0], [1], [0, 0, 1, 1], [], []>} : vector<1x64xf32>, vector<64x8xf32>, vector<1x8xf32> -> vector<1x8xf32>
    %c0_126 = arith.constant 0 : index
    %c0_127 = arith.constant 0 : index
    %196 = vector.load %arg7[%c0_126, %c0_127] : memref<1x8xf32, #tpu.memory_space<vmem>>, vector<1x8xf32>
    %197 = arith.addf %195, %196 : vector<1x8xf32>
    %cst_128 = arith.constant 0.000000e+00 : f32
    %198 = vector.broadcast %cst_128 : f32 to vector<1x8xf32>
    %199 = arith.maximumf %197, %198 : vector<1x8xf32>
    %c0_129 = arith.constant 0 : index
    %c0_130 = arith.constant 0 : index
    %200 = vector.load %arg9[%c0_129, %c0_130] : memref<8x128xf32, #tpu.memory_space<vmem>>, vector<8x128xf32>
    %cst_131 = arith.constant dense<0.000000e+00> : vector<1x128xf32>
    %201 = tpu.matmul %199, %200, %cst_131 {dimension_numbers = #tpu.dot_dimension_numbers<[1], [0], [0], [1], [0, 0, 1, 1], [], []>} : vector<1x8xf32>, vector<8x128xf32>, vector<1x128xf32> -> vector<1x128xf32>
    %c0_132 = arith.constant 0 : index
    %c0_133 = arith.constant 0 : index
    %202 = vector.load %arg8[%c0_132, %c0_133] : memref<512x128xf32, #tpu.memory_space<vmem>>, vector<512x128xf32>
    %cst_134 = arith.constant dense<0.000000e+00> : vector<16x128xf32>
    %203 = tpu.matmul %189, %202, %cst_134 {dimension_numbers = #tpu.dot_dimension_numbers<[1], [0], [0], [1], [0, 0, 1, 1], [], []>} : vector<16x512xf32>, vector<512x128xf32>, vector<16x128xf32> -> vector<16x128xf32>
    %204 = vector.broadcast %201 : vector<1x128xf32> to vector<16x128xf32>
    %205 = arith.addf %203, %204 : vector<16x128xf32>
    %c0_135 = arith.constant 0 : index
    %c0_136 = arith.constant 0 : index
    %206 = vector.load %arg10[%c0_135, %c0_136] : memref<1x128xf32, #tpu.memory_space<vmem>>, vector<1x128xf32>
    %207 = vector.broadcast %206 : vector<1x128xf32> to vector<16x128xf32>
    %208 = arith.addf %205, %207 : vector<16x128xf32>
    %cst_137 = arith.constant 0.000000e+00 : f32
    %209 = vector.broadcast %cst_137 : f32 to vector<16x128xf32>
    %210 = arith.maximumf %208, %209 : vector<16x128xf32>
    %c0_138 = arith.constant 0 : index
    %c0_139 = arith.constant 0 : index
    %c0_140 = arith.constant 0 : index
    %211 = vector.load %arg11[%c0_138, %c0_139, %c0_140] : memref<1x16x128xf32, #tpu.memory_space<vmem>>, vector<1x16x128xf32>
    %212 = vector.shape_cast %211 : vector<1x16x128xf32> to vector<16x128xf32>
    %213 = vector.shape_cast %210 : vector<16x128xf32> to vector<1x16x128xf32>
    tpu.vector_store %arg11[%c0_138, %c0_139, %c0_140], %213 {strides = array<i32>} : memref<1x16x128xf32, #tpu.memory_space<vmem>>, vector<1x16x128xf32>,
    return
  }
  func.func @transform_0(%arg0: i32) -> (i32, i32, i32) {
    %c0_i32 = arith.constant 0 : i32
    %c0_i32_0 = arith.constant 0 : i32
    %c0_i32_1 = arith.constant 0 : i32
    return %arg0, %c0_i32, %c0_i32_0 : i32, i32, i32
  }
  func.func @transform_1(%arg0: i32) -> (i32, i32) {
    %c0_i32 = arith.constant 0 : i32
    %c0_i32_0 = arith.constant 0 : i32
    %c0_i32_1 = arith.constant 0 : i32
    return %c0_i32, %c0_i32_0 : i32, i32
  }
  func.func @transform_2(%arg0: i32) -> (i32, i32) {
    %c0_i32 = arith.constant 0 : i32
    %c0_i32_0 = arith.constant 0 : i32
    %c0_i32_1 = arith.constant 0 : i32
    return %c0_i32, %c0_i32_0 : i32, i32
  }
  func.func @transform_3(%arg0: i32) -> (i32, i32) {
    %c0_i32 = arith.constant 0 : i32
    %c0_i32_0 = arith.constant 0 : i32
    %c0_i32_1 = arith.constant 0 : i32
    return %c0_i32, %c0_i32_0 : i32, i32
  }
  func.func @transform_4(%arg0: i32) -> (i32, i32) {
    %c0_i32 = arith.constant 0 : i32
    %c0_i32_0 = arith.constant 0 : i32
    %c0_i32_1 = arith.constant 0 : i32
    return %c0_i32, %c0_i32_0 : i32, i32
  }
  func.func @transform_5(%arg0: i32) -> (i32, i32) {
    %c0_i32 = arith.constant 0 : i32
    %c0_i32_0 = arith.constant 0 : i32
    %c0_i32_1 = arith.constant 0 : i32
    return %c0_i32, %c0_i32_0 : i32, i32
  }
  func.func @transform_6(%arg0: i32) -> (i32, i32) {
    %c0_i32 = arith.constant 0 : i32
    %c0_i32_0 = arith.constant 0 : i32
    %c0_i32_1 = arith.constant 0 : i32
    return %c0_i32, %c0_i32_0 : i32, i32
  }
  func.func @transform_7(%arg0: i32) -> (i32, i32) {
    %c0_i32 = arith.constant 0 : i32
    %c0_i32_0 = arith.constant 0 : i32
    %c0_i32_1 = arith.constant 0 : i32
    return %c0_i32, %c0_i32_0 : i32, i32
  }
  func.func @transform_8(%arg0: i32) -> (i32, i32) {
    %c0_i32 = arith.constant 0 : i32
    %c0_i32_0 = arith.constant 0 : i32
    %c0_i32_1 = arith.constant 0 : i32
    return %c0_i32, %c0_i32_0 : i32, i32
  }
  func.func @transform_9(%arg0: i32) -> (i32, i32) {
    %c0_i32 = arith.constant 0 : i32
    %c0_i32_0 = arith.constant 0 : i32
    %c0_i32_1 = arith.constant 0 : i32
    return %c0_i32, %c0_i32_0 : i32, i32
  }
  func.func @transform_10(%arg0: i32) -> (i32, i32, i32) {
    %c0_i32 = arith.constant 0 : i32
    %c0_i32_0 = arith.constant 0 : i32
    %c0_i32_1 = arith.constant 0 : i32
    return %arg0, %c0_i32, %c0_i32_0 : i32, i32, i32
  }
}

</mosaic_0001>

<llo_original>
// kernel: tile.124
$region0: #{tile.124}
  %s0 = inlined_call_operand.vmem [shape: f32[8,16,8], index: 0, kind: input, shape index: {}]
  %s1 = inlined_call_operand.vmem [shape: f32[8,128], index: 1, kind: output, shape index: {}]
  %s2 = smov 3
  %v3 = vld [vmem:[%s0] ss:$16 sm:%s2]
  %s4 = smov 12
  %v5 = vld [vmem:[%s0] ss:$16 sm:%s4]
  %vm6 = vcmask 1043458
  %v7 = vsel %vm6, %v5, %v3
  %s8 = smov 48
  %v9 = vld [vmem:[%s0] ss:$16 sm:%s8]
  %vm10 = vcmask 1045508
  %v11 = vsel %vm10, %v9, %v7
  %s12 = smov 192
  %v13 = vld [vmem:[%s0] ss:$16 sm:%s12]
  %vm14 = vcmask 1047558
  %v15 = vsel %vm14, %v13, %v11
  %vm16 = vcmask 64512
  %17 = vst.msk [vmem:[%s1] sm:$0xff] %vm16, %v15
  %s18 = scalar_lea.vmem %s0, 15
  %s19 = smov 3
  %v20 = vld [vmem:[%s18] ss:$16 sm:%s19]
  %s21 = scalar_lea.vmem %s0, 15
  %s22 = smov 12
  %v23 = vld [vmem:[%s21] ss:$16 sm:%s22]
  %vm24 = vcmask 1043458
  %v25 = vsel %vm24, %v23, %v20
  %s26 = scalar_lea.vmem %s0, 15
  %s27 = smov 48
  %v28 = vld [vmem:[%s26] ss:$16 sm:%s27]
  %vm29 = vcmask 1045508
  %v30 = vsel %vm29, %v28, %v25
  %s31 = scalar_lea.vmem %s0, 15
  %s32 = smov 192
  %v33 = vld [vmem:[%s31] ss:$16 sm:%s32]
  %vm34 = vcmask 1047558
  %v35 = vsel %vm34, %v33, %v30
  %36 = vrot.lane.b32.xlu0 %v35, 120
  %v37 = vpop.permute.xlu0 %36
  %vm38 = vcmask 1048512
  %39 = vst.msk [vmem:[%s1] sm:$0xff] %vm38, %v37
  %s40 = scalar_lea.vmem %s0, 14
  %s41 = smov 3
  %v42 = vld [vmem:[%s40] ss:$16 sm:%s41]
  %s43 = scalar_lea.vmem %s0, 14
  %s44 = smov 12
  %v45 = vld [vmem:[%s43] ss:$16 sm:%s44]
  %vm46 = vcmask 1043458
  %v47 = vsel %vm46, %v45, %v42
  %s48 = scalar_lea.vmem %s0, 14
  %s49 = smov 48
  %v50 = vld [vmem:[%s48] ss:$16 sm:%s49]
  %vm51 = vcmask 1045508
  %v52 = vsel %vm51, %v50, %v47
  %s53 = scalar_lea.vmem %s0, 14
  %s54 = smov 192
  %v55 = vld [vmem:[%s53] ss:$16 sm:%s54]
  %vm56 = vcmask 1047558
  %v57 = vsel %vm56, %v55, %v52
  %58 = vrot.lane.b32.xlu0 %v57, 112
  %v59 = vpop.permute.xlu0 %58
  %vm60 = vcmask 982912
  %61 = vst.msk [vmem:[%s1] sm:$0xff] %vm60, %v59
  %s62 = scalar_lea.vmem %s0, 13
  %s63 = smov 3
  %v64 = vld [vmem:[%s62] ss:$16 sm:%s63]
  %s65 = scalar_lea.vmem %s0, 13
  %s66 = smov 12
  %v67 = vld [vmem:[%s65] ss:$16 sm:%s66]
  %vm68 = vcmask 1043458
  %v69 = vsel %vm68, %v67, %v64
  %s70 = scalar_lea.vmem %s0, 13
  %s71 = smov 48
  %v72 = vld [vmem:[%s70] ss:$16 sm:%s71]
  %vm73 = vcmask 1045508
  %v74 = vsel %vm73, %v72, %v69
  %s75 = scalar_lea.vmem %s0, 13
  %s76 = smov 192
  %v77 = vld [vmem:[%s75] ss:$16 sm:%s76]
  %vm78 = vcmask 1047558
  %v79 = vsel %vm78, %v77, %v74
  %80 = vrot.lane.b32.xlu0 %v79, 104
  %v81 = vpop.permute.xlu0 %80
  %vm82 = vcmask 917312
  %83 = vst.msk [vmem:[%s1] sm:$0xff] %vm82, %v81
  %s84 = scalar_lea.vmem %s0, 12
  %s85 = smov 3
  %v86 = vld [vmem:[%s84] ss:$16 sm:%s85]
  %s87 = scalar_lea.vmem %s0, 12
  %s88 = smov 12
  %v89 = vld [vmem:[%s87] ss:$16 sm:%s88]
  %vm90 = vcmask 1043458
  %v91 = vsel %vm90, %v89, %v86
  %s92 = scalar_lea.vmem %s0, 12
  %s93 = smov 48
  %v94 = vld [vmem:[%s92] ss:$16 sm:%s93]
  %vm95 = vcmask 1045508
  %v96 = vsel %vm95, %v94, %v91
  %s97 = scalar_lea.vmem %s0, 12
  %s98 = smov 192
  %v99 = vld [vmem:[%s97] ss:$16 sm:%s98]
  %vm100 = vcmask 1047558
  %v101 = vsel %vm100, %v99, %v96
  %102 = vrot.lane.b32.xlu0 %v101, 96
  %v103 = vpop.permute.xlu0 %102
  %vm104 = vcmask 851712
  %105 = vst.msk [vmem:[%s1] sm:$0xff] %vm104, %v103
  %s106 = scalar_lea.vmem %s0, 11
  %s107 = smov 3
  %v108 = vld [vmem:[%s106] ss:$16 sm:%s107]
  %s109 = scalar_lea.vmem %s0, 11
  %s110 = smov 12
  %v111 = vld [vmem:[%s109] ss:$16 sm:%s110]
  %vm112 = vcmask 1043458
  %v113 = vsel %vm112, %v111, %v108
  %s114 = scalar_lea.vmem %s0, 11
  %s115 = smov 48
  %v116 = vld [vmem:[%s114] ss:$16 sm:%s115]
  %vm117 = vcmask 1045508
  %v118 = vsel %vm117, %v116, %v113
  %s119 = scalar_lea.vmem %s0, 11
  %s120 = smov 192
  %v121 = vld [vmem:[%s119] ss:$16 sm:%s120]
  %vm122 = vcmask 1047558
  %v123 = vsel %vm122, %v121, %v118
  %124 = vrot.lane.b32.xlu0 %v123, 88
  %v125 = vpop.permute.xlu0 %124
  %vm126 = vcmask 786112
  %127 = vst.msk [vmem:[%s1] sm:$0xff] %vm126, %v125
  %s128 = scalar_lea.vmem %s0, 10
  %s129 = smov 3
  %v130 = vld [vmem:[%s128] ss:$16 sm:%s129]
  %s131 = scalar_lea.vmem %s0, 10
  %s132 = smov 12
  %v133 = vld [vmem:[%s131] ss:$16 sm:%s132]
  %vm134 = vcmask 1043458
  %v135 = vsel %vm134, %v133, %v130
  %s136 = scalar_lea.vmem %s0, 10
  %s137 = smov 48
  %v138 = vld [vmem:[%s136] ss:$16 sm:%s137]
  %vm139 = vcmask 1045508
  %v140 = vsel %vm139, %v138, %v135
  %s141 = scalar_lea.vmem %s0, 10
  %s142 = smov 192
  %v143 = vld [vmem:[%s141] ss:$16 sm:%s142]
  %vm144 = vcmask 1047558
  %v145 = vsel %vm144, %v143, %v140
  %146 = vrot.lane.b32.xlu0 %v145, 80
  %v147 = vpop.permute.xlu0 %146
  %vm148 = vcmask 720512
  %149 = vst.msk [vmem:[%s1] sm:$0xff] %vm148, %v147
  %s150 = scalar_lea.vmem %s0, 9
  %s151 = smov 3
  %v152 = vld [vmem:[%s150] ss:$16 sm:%s151]
  %s153 = scalar_lea.vmem %s0, 9
  %s154 = smov 12
  %v155 = vld [vmem:[%s153] ss:$16 sm:%s154]
  %vm156 = vcmask 1043458
  %v157 = vsel %vm156, %v155, %v152
  %s158 = scalar_lea.vmem %s0, 9
  %s159 = smov 48
  %v160 = vld [vmem:[%s158] ss:$16 sm:%s159]
  %vm161 = vcmask 1045508
  %v162 = vsel %vm161, %v160, %v157
  %s163 = scalar_lea.vmem %s0, 9
  %s164 = smov 192
  %v165 = vld [vmem:[%s163] ss:$16 sm:%s164]
  %vm166 = vcmask 1047558
  %v167 = vsel %vm166, %v165, %v162
  %168 = vrot.lane.b32.xlu0 %v167, 72
  %v169 = vpop.permute.xlu0 %168
  %vm170 = vcmask 654912
  %171 = vst.msk [vmem:[%s1] sm:$0xff] %vm170, %v169
  %s172 = scalar_lea.vmem %s0, 8
  %s173 = smov 3
  %v174 = vld [vmem:[%s172] ss:$16 sm:%s173]
  %s175 = scalar_lea.vmem %s0, 8
  %s176 = smov 12
  %v177 = vld [vmem:[%s175] ss:$16 sm:%s176]
  %vm178 = vcmask 1043458
  %v179 = vsel %vm178, %v177, %v174
  %s180 = scalar_lea.vmem %s0, 8
  %s181 = smov 48
  %v182 = vld [vmem:[%s180] ss:$16 sm:%s181]
  %vm183 = vcmask 1045508
  %v184 = vsel %vm183, %v182, %v179
  %s185 = scalar_lea.vmem %s0, 8
  %s186 = smov 192
  %v187 = vld [vmem:[%s185] ss:$16 sm:%s186]
  %vm188 = vcmask 1047558
  %v189 = vsel %vm188, %v187, %v184
  %190 = vrot.lane.b32.xlu0 %v189, 64
  %v191 = vpop.permute.xlu0 %190
  %vm192 = vcmask 589312
  %193 = vst.msk [vmem:[%s1] sm:$0xff] %vm192, %v191
  %s194 = scalar_lea.vmem %s0, 7
  %s195 = smov 3
  %v196 = vld [vmem:[%s194] ss:$16 sm:%s195]
  %s197 = scalar_lea.vmem %s0, 7
  %s198 = smov 12
  %v199 = vld [vmem:[%s197] ss:$16 sm:%s198]
  %vm200 = vcmask 1043458
  %v201 = vsel %vm200, %v199, %v196
  %s202 = scalar_lea.vmem %s0, 7
  %s203 = smov 48
  %v204 = vld [vmem:[%s202] ss:$16 sm:%s203]
  %vm205 = vcmask 1045508
  %v206 = vsel %vm205, %v204, %v201
  %s207 = scalar_lea.vmem %s0, 7
  %s208 = smov 192
  %v209 = vld [vmem:[%s207] ss:$16 sm:%s208]
  %vm210 = vcmask 1047558
  %v211 = vsel %vm210, %v209, %v206
  %212 = vrot.lane.b32.xlu0 %v211, 56
  %v213 = vpop.permute.xlu0 %212
  %vm214 = vcmask 523712
  %215 = vst.msk [vmem:[%s1] sm:$0xff] %vm214, %v213
  %s216 = scalar_lea.vmem %s0, 6
  %s217 = smov 3
  %v218 = vld [vmem:[%s216] ss:$16 sm:%s217]
  %s219 = scalar_lea.vmem %s0, 6
  %s220 = smov 12
  %v221 = vld [vmem:[%s219] ss:$16 sm:%s220]
  %vm222 = vcmask 1043458
  %v223 = vsel %vm222, %v221, %v218
  %s224 = scalar_lea.vmem %s0, 6
  %s225 = smov 48
  %v226 = vld [vmem:[%s224] ss:$16 sm:%s225]
  %vm227 = vcmask 1045508
  %v228 = vsel %vm227, %v226, %v223
  %s229 = scalar_lea.vmem %s0, 6
  %s230 = smov 192
  %v231 = vld [vmem:[%s229] ss:$16 sm:%s230]
  %vm232 = vcmask 1047558
  %v233 = vsel %vm232, %v231, %v228
  %234 = vrot.lane.b32.xlu0 %v233, 48
  %v235 = vpop.permute.xlu0 %234
  %vm236 = vcmask 458112
  %237 = vst.msk [vmem:[%s1] sm:$0xff] %vm236, %v235
  %s238 = scalar_lea.vmem %s0, 5
  %s239 = smov 3
  %v240 = vld [vmem:[%s238] ss:$16 sm:%s239]
  %s241 = scalar_lea.vmem %s0, 5
  %s242 = smov 12
  %v243 = vld [vmem:[%s241] ss:$16 sm:%s242]
  %vm244 = vcmask 1043458
  %v245 = vsel %vm244, %v243, %v240
  %s246 = scalar_lea.vmem %s0, 5
  %s247 = smov 48
  %v248 = vld [vmem:[%s246] ss:$16 sm:%s247]
  %vm249 = vcmask 1045508
  %v250 = vsel %vm249, %v248, %v245
  %s251 = scalar_lea.vmem %s0, 5
  %s252 = smov 192
  %v253 = vld [vmem:[%s251] ss:$16 sm:%s252]
  %vm254 = vcmask 1047558
  %v255 = vsel %vm254, %v253, %v250
  %256 = vrot.lane.b32.xlu0 %v255, 40
  %v257 = vpop.permute.xlu0 %256
  %vm258 = vcmask 392512
  %259 = vst.msk [vmem:[%s1] sm:$0xff] %vm258, %v257
  %s260 = scalar_lea.vmem %s0, 4
  %s261 = smov 3
  %v262 = vld [vmem:[%s260] ss:$16 sm:%s261]
  %s263 = scalar_lea.vmem %s0, 4
  %s264 = smov 12
  %v265 = vld [vmem:[%s263] ss:$16 sm:%s264]
  %vm266 = vcmask 1043458
  %v267 = vsel %vm266, %v265, %v262
  %s268 = scalar_lea.vmem %s0, 4
  %s269 = smov 48
  %v270 = vld [vmem:[%s268] ss:$16 sm:%s269]
  %vm271 = vcmask 1045508
  %v272 = vsel %vm271, %v270, %v267
  %s273 = scalar_lea.vmem %s0, 4
  %s274 = smov 192
  %v275 = vld [vmem:[%s273] ss:$16 sm:%s274]
  %vm276 = vcmask 1047558
  %v277 = vsel %vm276, %v275, %v272
  %278 = vrot.lane.b32.xlu0 %v277, 32
  %v279 = vpop.permute.xlu0 %278
  %vm280 = vcmask 326912
  %281 = vst.msk [vmem:[%s1] sm:$0xff] %vm280, %v279
  %s282 = scalar_lea.vmem %s0, 3
  %s283 = smov 3
  %v284 = vld [vmem:[%s282] ss:$16 sm:%s283]
  %s285 = scalar_lea.vmem %s0, 3
  %s286 = smov 12
  %v287 = vld [vmem:[%s285] ss:$16 sm:%s286]
  %vm288 = vcmask 1043458
  %v289 = vsel %vm288, %v287, %v284
  %s290 = scalar_lea.vmem %s0, 3
  %s291 = smov 48
  %v292 = vld [vmem:[%s290] ss:$16 sm:%s291]
  %vm293 = vcmask 1045508
  %v294 = vsel %vm293, %v292, %v289
  %s295 = scalar_lea.vmem %s0, 3
  %s296 = smov 192
  %v297 = vld [vmem:[%s295] ss:$16 sm:%s296]
  %vm298 = vcmask 1047558
  %v299 = vsel %vm298, %v297, %v294
  %300 = vrot.lane.b32.xlu0 %v299, 24
  %v301 = vpop.permute.xlu0 %300
  %vm302 = vcmask 261312
  %303 = vst.msk [vmem:[%s1] sm:$0xff] %vm302, %v301
  %s304 = scalar_lea.vmem %s0, 2
  %s305 = smov 3
  %v306 = vld [vmem:[%s304] ss:$16 sm:%s305]
  %s307 = scalar_lea.vmem %s0, 2
  %s308 = smov 12
  %v309 = vld [vmem:[%s307] ss:$16 sm:%s308]
  %vm310 = vcmask 1043458
  %v311 = vsel %vm310, %v309, %v306
  %s312 = scalar_lea.vmem %s0, 2
  %s313 = smov 48
  %v314 = vld [vmem:[%s312] ss:$16 sm:%s313]
  %vm315 = vcmask 1045508
  %v316 = vsel %vm315, %v314, %v311
  %s317 = scalar_lea.vmem %s0, 2
  %s318 = smov 192
  %v319 = vld [vmem:[%s317] ss:$16 sm:%s318]
  %vm320 = vcmask 1047558
  %v321 = vsel %vm320, %v319, %v316
  %322 = vrot.lane.b32.xlu0 %v321, 16
  %v323 = vpop.permute.xlu0 %322
  %vm324 = vcmask 195712
  %325 = vst.msk [vmem:[%s1] sm:$0xff] %vm324, %v323
  %s326 = scalar_lea.vmem %s0, 1
  %s327 = smov 3
  %v328 = vld [vmem:[%s326] ss:$16 sm:%s327]
  %s329 = scalar_lea.vmem %s0, 1
  %s330 = smov 12
  %v331 = vld [vmem:[%s329] ss:$16 sm:%s330]
  %vm332 = vcmask 1043458
  %v333 = vsel %vm332, %v331, %v328
  %s334 = scalar_lea.vmem %s0, 1
  %s335 = smov 48
  %v336 = vld [vmem:[%s334] ss:$16 sm:%s335]
  %vm337 = vcmask 1045508
  %v338 = vsel %vm337, %v336, %v333
  %s339 = scalar_lea.vmem %s0, 1
  %s340 = smov 192
  %v341 = vld [vmem:[%s339] ss:$16 sm:%s340]
  %vm342 = vcmask 1047558
  %v343 = vsel %vm342, %v341, %v338
  %344 = vrot.lane.b32.xlu0 %v343, 8
  %v345 = vpop.permute.xlu0 %344
  %vm346 = vcmask 130112
  %347 = vst.msk [vmem:[%s1] sm:$0xff] %vm346, %v345

// kernel: tile.103
$region0: #{tile.103}
  #allocation0 [shape = 's32[1]{0}', space=sflag, size = 0x4, scoped, tag = 'scoped memory for tile.103']
  %s0 = inlined_call_operand.vmem [shape: f32[8], index: 0, kind: input, shape index: {}]
  %s1 = inlined_call_operand.vmem [shape: f32[16,8], index: 1, kind: output, shape index: {}]
  // Predicated region
  $region2: #{tile.103} parent=0 // pred_check
    _
  $region3: #{tile.103} parent=0 // pred_check_branch
    %3 = sbr.rel (0) target = $region5
  $region4: #{tile.103} parent=0 // pred_region
    _
  $region5: #{tile.103} parent=0 // pred_fallthru
    _
  %v4 = vld [vmem:[%s0] ss:$0 sm:$0xff]
  %5 = vst [vmem:[%s1] sm:$0xff] %v4
  %s6 = scalar_lea.vmem %s1, 8
  %7 = vst [vmem:[%s6] sm:$0xff] %v4

// kernel: tile.104
$region0: #{tile.104}
  %s0 = inlined_call_operand.vmem [shape: f32[16,8], index: 0, kind: input, shape index: {}]
  %s1 = inlined_call_operand.vmem [shape: f32[128], index: 1, kind: output, shape index: {}]
  $region1: #{tile.104} parent=0
    #allocation0 [shape = 'u8[4096]{0}', space=vmem, size = 0x1000, scoped, tag = 'scoped mem for output reshape']
    %v2 = vld [vmem:[%s0] sm:$0x1]
    %vm3 = vcmask 64512
    %4 = vst.msk [vmem:[#allocation0] sm:$0x1] %vm3, %v2
    %s5 = scalar_lea.vmem %s0, 15
    %v6 = vld [vmem:[%s5] sm:$0x1]
    %7 = vrot.lane.b32.xlu0 %v6, 120
    %v8 = vpop.permute.xlu0 %7
    %vm9 = vcmask 1048512
    %10 = vst.msk [vmem:[#allocation0] sm:$0x1] %vm9, %v8
    %s11 = scalar_lea.vmem %s0, 14
    %v12 = vld [vmem:[%s11] sm:$0x1]
    %13 = vrot.lane.b32.xlu0 %v12, 112
    %v14 = vpop.permute.xlu0 %13
    %vm15 = vcmask 982912
    %16 = vst.msk [vmem:[#allocation0] sm:$0x1] %vm15, %v14
    %s17 = scalar_lea.vmem %s0, 13
    %v18 = vld [vmem:[%s17] sm:$0x1]
    %19 = vrot.lane.b32.xlu0 %v18, 104
    %v20 = vpop.permute.xlu0 %19
    %vm21 = vcmask 917312
    %22 = vst.msk [vmem:[#allocation0] sm:$0x1] %vm21, %v20
    %s23 = scalar_lea.vmem %s0, 12
    %v24 = vld [vmem:[%s23] sm:$0x1]
    %25 = vrot.lane.b32.xlu0 %v24, 96
    %v26 = vpop.permute.xlu0 %25
    %vm27 = vcmask 851712
    %28 = vst.msk [vmem:[#allocation0] sm:$0x1] %vm27, %v26
    %s29 = scalar_lea.vmem %s0, 11
    %v30 = vld [vmem:[%s29] sm:$0x1]
    %31 = vrot.lane.b32.xlu0 %v30, 88
    %v32 = vpop.permute.xlu0 %31
    %vm33 = vcmask 786112
    %34 = vst.msk [vmem:[#allocation0] sm:$0x1] %vm33, %v32
    %s35 = scalar_lea.vmem %s0, 10
    %v36 = vld [vmem:[%s35] sm:$0x1]
    %37 = vrot.lane.b32.xlu0 %v36, 80
    %v38 = vpop.permute.xlu0 %37
    %vm39 = vcmask 720512
    %40 = vst.msk [vmem:[#allocation0] sm:$0x1] %vm39, %v38
    %s41 = scalar_lea.vmem %s0, 9
    %v42 = vld [vmem:[%s41] sm:$0x1]
    %43 = vrot.lane.b32.xlu0 %v42, 72
    %v44 = vpop.permute.xlu0 %43
    %vm45 = vcmask 654912
    %46 = vst.msk [vmem:[#allocation0] sm:$0x1] %vm45, %v44
    %s47 = scalar_lea.vmem %s0, 8
    %v48 = vld [vmem:[%s47] sm:$0x1]
    %49 = vrot.lane.b32.xlu0 %v48, 64
    %v50 = vpop.permute.xlu0 %49
    %vm51 = vcmask 589312
    %52 = vst.msk [vmem:[#allocation0] sm:$0x1] %vm51, %v50
    %s53 = scalar_lea.vmem %s0, 7
    %v54 = vld [vmem:[%s53] sm:$0x1]
    %55 = vrot.lane.b32.xlu0 %v54, 56
    %v56 = vpop.permute.xlu0 %55
    %vm57 = vcmask 523712
    %58 = vst.msk [vmem:[#allocation0] sm:$0x1] %vm57, %v56
    %s59 = scalar_lea.vmem %s0, 6
    %v60 = vld [vmem:[%s59] sm:$0x1]
    %61 = vrot.lane.b32.xlu0 %v60, 48
    %v62 = vpop.permute.xlu0 %61
    %vm63 = vcmask 458112
    %64 = vst.msk [vmem:[#allocation0] sm:$0x1] %vm63, %v62
    %s65 = scalar_lea.vmem %s0, 5
    %v66 = vld [vmem:[%s65] sm:$0x1]
    %67 = vrot.lane.b32.xlu0 %v66, 40
    %v68 = vpop.permute.xlu0 %67
    %vm69 = vcmask 392512
    %70 = vst.msk [vmem:[#allocation0] sm:$0x1] %vm69, %v68
    %s71 = scalar_lea.vmem %s0, 4
    %v72 = vld [vmem:[%s71] sm:$0x1]
    %73 = vrot.lane.b32.xlu0 %v72, 32
    %v74 = vpop.permute.xlu0 %73
    %vm75 = vcmask 326912
    %76 = vst.msk [vmem:[#allocation0] sm:$0x1] %vm75, %v74
    %s77 = scalar_lea.vmem %s0, 3
    %v78 = vld [vmem:[%s77] sm:$0x1]
    %79 = vrot.lane.b32.xlu0 %v78, 24
    %v80 = vpop.permute.xlu0 %79
    %vm81 = vcmask 261312
    %82 = vst.msk [vmem:[#allocation0] sm:$0x1] %vm81, %v80
    %s83 = scalar_lea.vmem %s0, 2
    %v84 = vld [vmem:[%s83] sm:$0x1]
    %85 = vrot.lane.b32.xlu0 %v84, 16
    %v86 = vpop.permute.xlu0 %85
    %vm87 = vcmask 195712
    %88 = vst.msk [vmem:[#allocation0] sm:$0x1] %vm87, %v86
    %s89 = scalar_lea.vmem %s0, 1
    %v90 = vld [vmem:[%s89] sm:$0x1]
    %91 = vrot.lane.b32.xlu0 %v90, 8
    %v92 = vpop.permute.xlu0 %91
    %vm93 = vcmask 130112
    %94 = vst.msk [vmem:[#allocation0] sm:$0x1] %vm93, %v92
    %s96 = sshll.u32 1, 1
    %s97 = ssub.s32 %s96, 1
    %v99 = vld [vmem:[#allocation0] sm:%s97]
    %s100 = sshll.u32 1, 1
    %s101 = ssub.s32 %s100, 1
    %102 = vst [vmem:[%s1] sm:%s101] %v99

// kernel: tile.73
$region0: #{tile.73}
  #allocation0 [shape = 's32[1]{0}', space=sflag, size = 0x4, scoped, tag = 'scoped memory for tile.73']
  %s0 = inlined_call_operand.vmem [shape: f32[4], index: 0, kind: input, shape index: {}]
  %s1 = inlined_call_operand.vmem [shape: f32[16,4], index: 1, kind: output, shape index: {}]
  // Predicated region
  $region2: #{tile.73} parent=0 // pred_check
    _
  $region3: #{tile.73} parent=0 // pred_check_branch
    %3 = sbr.rel (0) target = $region5
  $region4: #{tile.73} parent=0 // pred_region
    _
  $region5: #{tile.73} parent=0 // pred_fallthru
    _
  %v4 = vld [vmem:[%s0] ss:$0 sm:$0xff]
  %5 = vst [vmem:[%s1] sm:$0xff] %v4
  %s6 = scalar_lea.vmem %s1, 8
  %7 = vst [vmem:[%s6] sm:$0xff] %v4

// kernel: tile.92
$region0: #{tile.92}
  %s0 = inlined_call_operand.vmem [shape: f32[16,4], index: 0, kind: input, shape index: {}]
  %s1 = inlined_call_operand.vmem [shape: f32[1,64], index: 1, kind: output, shape index: {}]
  $region1: #{tile.92} parent=0
    #allocation0 [shape = 'u8[4096]{0}', space=vmem, size = 0x1000, scoped, tag = 'scoped mem for output reshape']
    %v2 = vld [vmem:[%s0] sm:$0x1]
    %vm3 = vcmask 31744
    %4 = vst.msk [vmem:[#allocation0] sm:$0x1] %vm3, %v2
    %s5 = scalar_lea.vmem %s0, 15
    %v6 = vld [vmem:[%s5] sm:$0x1]
    %7 = vrot.lane.b32.xlu0 %v6, 60
    %v8 = vpop.permute.xlu0 %7
    %vm9 = vcmask 523744
    %10 = vst.msk [vmem:[#allocation0] sm:$0x1] %vm9, %v8
    %s11 = scalar_lea.vmem %s0, 14
    %v12 = vld [vmem:[%s11] sm:$0x1]
    %13 = vrot.lane.b32.xlu0 %v12, 56
    %v14 = vpop.permute.xlu0 %13
    %vm15 = vcmask 490944
    %16 = vst.msk [vmem:[#allocation0] sm:$0x1] %vm15, %v14
    %s17 = scalar_lea.vmem %s0, 13
    %v18 = vld [vmem:[%s17] sm:$0x1]
    %19 = vrot.lane.b32.xlu0 %v18, 52
    %v20 = vpop.permute.xlu0 %19
    %vm21 = vcmask 458144
    %22 = vst.msk [vmem:[#allocation0] sm:$0x1] %vm21, %v20
    %s23 = scalar_lea.vmem %s0, 12
    %v24 = vld [vmem:[%s23] sm:$0x1]
    %25 = vrot.lane.b32.xlu0 %v24, 48
    %v26 = vpop.permute.xlu0 %25
    %vm27 = vcmask 425344
    %28 = vst.msk [vmem:[#allocation0] sm:$0x1] %vm27, %v26
    %s29 = scalar_lea.vmem %s0, 11
    %v30 = vld [vmem:[%s29] sm:$0x1]
    %31 = vrot.lane.b32.xlu0 %v30, 44
    %v32 = vpop.permute.xlu0 %31
    %vm33 = vcmask 392544
    %34 = vst.msk [vmem:[#allocation0] sm:$0x1] %vm33, %v32
    %s35 = scalar_lea.vmem %s0, 10
    %v36 = vld [vmem:[%s35] sm:$0x1]
    %37 = vrot.lane.b32.xlu0 %v36, 40
    %v38 = vpop.permute.xlu0 %37
    %vm39 = vcmask 359744
    %40 = vst.msk [vmem:[#allocation0] sm:$0x1] %vm39, %v38
    %s41 = scalar_lea.vmem %s0, 9
    %v42 = vld [vmem:[%s41] sm:$0x1]
    %43 = vrot.lane.b32.xlu0 %v42, 36
    %v44 = vpop.permute.xlu0 %43
    %vm45 = vcmask 326944
    %46 = vst.msk [vmem:[#allocation0] sm:$0x1] %vm45, %v44
    %s47 = scalar_lea.vmem %s0, 8
    %v48 = vld [vmem:[%s47] sm:$0x1]
    %49 = vrot.lane.b32.xlu0 %v48, 32
    %v50 = vpop.permute.xlu0 %49
    %vm51 = vcmask 294144
    %52 = vst.msk [vmem:[#allocation0] sm:$0x1] %vm51, %v50
    %s53 = scalar_lea.vmem %s0, 7
    %v54 = vld [vmem:[%s53] sm:$0x1]
    %55 = vrot.lane.b32.xlu0 %v54, 28
    %v56 = vpop.permute.xlu0 %55
    %vm57 = vcmask 261344
    %58 = vst.msk [vmem:[#allocation0] sm:$0x1] %vm57, %v56
    %s59 = scalar_lea.vmem %s0, 6
    %v60 = vld [vmem:[%s59] sm:$0x1]
    %61 = vrot.lane.b32.xlu0 %v60, 24
    %v62 = vpop.permute.xlu0 %61
    %vm63 = vcmask 228544
    %64 = vst.msk [vmem:[#allocation0] sm:$0x1] %vm63, %v62
    %s65 = scalar_lea.vmem %s0, 5
    %v66 = vld [vmem:[%s65] sm:$0x1]
    %67 = vrot.lane.b32.xlu0 %v66, 20
    %v68 = vpop.permute.xlu0 %67
    %vm69 = vcmask 195744
    %70 = vst.msk [vmem:[#allocation0] sm:$0x1] %vm69, %v68
    %s71 = scalar_lea.vmem %s0, 4
    %v72 = vld [vmem:[%s71] sm:$0x1]
    %73 = vrot.lane.b32.xlu0 %v72, 16
    %v74 = vpop.permute.xlu0 %73
    %vm75 = vcmask 162944
    %76 = vst.msk [vmem:[#allocation0] sm:$0x1] %vm75, %v74
    %s77 = scalar_lea.vmem %s0, 3
    %v78 = vld [vmem:[%s77] sm:$0x1]
    %79 = vrot.lane.b32.xlu0 %v78, 12
    %v80 = vpop.permute.xlu0 %79
    %vm81 = vcmask 130144
    %82 = vst.msk [vmem:[#allocation0] sm:$0x1] %vm81, %v80
    %s83 = scalar_lea.vmem %s0, 2
    %v84 = vld [vmem:[%s83] sm:$0x1]
    %85 = vrot.lane.b32.xlu0 %v84, 8
    %v86 = vpop.permute.xlu0 %85
    %vm87 = vcmask 97344
    %88 = vst.msk [vmem:[#allocation0] sm:$0x1] %vm87, %v86
    %s89 = scalar_lea.vmem %s0, 1
    %v90 = vld [vmem:[%s89] sm:$0x1]
    %91 = vrot.lane.b32.xlu0 %v90, 4
    %v92 = vpop.permute.xlu0 %91
    %vm93 = vcmask 64544
    %94 = vst.msk [vmem:[#allocation0] sm:$0x1] %vm93, %v92
    %s96 = sshll.u32 1, 1
    %s97 = ssub.s32 %s96, 1
    %v99 = vld [vmem:[#allocation0] sm:%s97]
    %s100 = sshll.u32 1, 1
    %s101 = ssub.s32 %s100, 1
    %102 = vst [vmem:[%s1] sm:%s101] %v99

// kernel: tile.129
$region0: #{tile.129}
  %s0 = inlined_call_operand.vmem [shape: f32[16,8], index: 0, kind: input, shape index: {}]
  %s1 = inlined_call_operand.vmem [shape: f32[1,128], index: 1, kind: output, shape index: {}]
  $region1: #{tile.129} parent=0
    #allocation0 [shape = 'u8[4096]{0}', space=vmem, size = 0x1000, scoped, tag = 'scoped mem for output reshape']
    %v2 = vld [vmem:[%s0] sm:$0x1]
    %vm3 = vcmask 64512
    %4 = vst.msk [vmem:[#allocation0] sm:$0x1] %vm3, %v2
    %s5 = scalar_lea.vmem %s0, 15
    %v6 = vld [vmem:[%s5] sm:$0x1]
    %7 = vrot.lane.b32.xlu0 %v6, 120
    %v8 = vpop.permute.xlu0 %7
    %vm9 = vcmask 1048512
    %10 = vst.msk [vmem:[#allocation0] sm:$0x1] %vm9, %v8
    %s11 = scalar_lea.vmem %s0, 14
    %v12 = vld [vmem:[%s11] sm:$0x1]
    %13 = vrot.lane.b32.xlu0 %v12, 112
    %v14 = vpop.permute.xlu0 %13
    %vm15 = vcmask 982912
    %16 = vst.msk [vmem:[#allocation0] sm:$0x1] %vm15, %v14
    %s17 = scalar_lea.vmem %s0, 13
    %v18 = vld [vmem:[%s17] sm:$0x1]
    %19 = vrot.lane.b32.xlu0 %v18, 104
    %v20 = vpop.permute.xlu0 %19
    %vm21 = vcmask 917312
    %22 = vst.msk [vmem:[#allocation0] sm:$0x1] %vm21, %v20
    %s23 = scalar_lea.vmem %s0, 12
    %v24 = vld [vmem:[%s23] sm:$0x1]
    %25 = vrot.lane.b32.xlu0 %v24, 96
    %v26 = vpop.permute.xlu0 %25
    %vm27 = vcmask 851712
    %28 = vst.msk [vmem:[#allocation0] sm:$0x1] %vm27, %v26
    %s29 = scalar_lea.vmem %s0, 11
    %v30 = vld [vmem:[%s29] sm:$0x1]
    %31 = vrot.lane.b32.xlu0 %v30, 88
    %v32 = vpop.permute.xlu0 %31
    %vm33 = vcmask 786112
    %34 = vst.msk [vmem:[#allocation0] sm:$0x1] %vm33, %v32
    %s35 = scalar_lea.vmem %s0, 10
    %v36 = vld [vmem:[%s35] sm:$0x1]
    %37 = vrot.lane.b32.xlu0 %v36, 80
    %v38 = vpop.permute.xlu0 %37
    %vm39 = vcmask 720512
    %40 = vst.msk [vmem:[#allocation0] sm:$0x1] %vm39, %v38
    %s41 = scalar_lea.vmem %s0, 9
    %v42 = vld [vmem:[%s41] sm:$0x1]
    %43 = vrot.lane.b32.xlu0 %v42, 72
    %v44 = vpop.permute.xlu0 %43
    %vm45 = vcmask 654912
    %46 = vst.msk [vmem:[#allocation0] sm:$0x1] %vm45, %v44
    %s47 = scalar_lea.vmem %s0, 8
    %v48 = vld [vmem:[%s47] sm:$0x1]
    %49 = vrot.lane.b32.xlu0 %v48, 64
    %v50 = vpop.permute.xlu0 %49
    %vm51 = vcmask 589312
    %52 = vst.msk [vmem:[#allocation0] sm:$0x1] %vm51, %v50
    %s53 = scalar_lea.vmem %s0, 7
    %v54 = vld [vmem:[%s53] sm:$0x1]
    %55 = vrot.lane.b32.xlu0 %v54, 56
    %v56 = vpop.permute.xlu0 %55
    %vm57 = vcmask 523712
    %58 = vst.msk [vmem:[#allocation0] sm:$0x1] %vm57, %v56
    %s59 = scalar_lea.vmem %s0, 6
    %v60 = vld [vmem:[%s59] sm:$0x1]
    %61 = vrot.lane.b32.xlu0 %v60, 48
    %v62 = vpop.permute.xlu0 %61
    %vm63 = vcmask 458112
    %64 = vst.msk [vmem:[#allocation0] sm:$0x1] %vm63, %v62
    %s65 = scalar_lea.vmem %s0, 5
    %v66 = vld [vmem:[%s65] sm:$0x1]
    %67 = vrot.lane.b32.xlu0 %v66, 40
    %v68 = vpop.permute.xlu0 %67
    %vm69 = vcmask 392512
    %70 = vst.msk [vmem:[#allocation0] sm:$0x1] %vm69, %v68
    %s71 = scalar_lea.vmem %s0, 4
    %v72 = vld [vmem:[%s71] sm:$0x1]
    %73 = vrot.lane.b32.xlu0 %v72, 32
    %v74 = vpop.permute.xlu0 %73
    %vm75 = vcmask 326912
    %76 = vst.msk [vmem:[#allocation0] sm:$0x1] %vm75, %v74
    %s77 = scalar_lea.vmem %s0, 3
    %v78 = vld [vmem:[%s77] sm:$0x1]
    %79 = vrot.lane.b32.xlu0 %v78, 24
    %v80 = vpop.permute.xlu0 %79
    %vm81 = vcmask 261312
    %82 = vst.msk [vmem:[#allocation0] sm:$0x1] %vm81, %v80
    %s83 = scalar_lea.vmem %s0, 2
    %v84 = vld [vmem:[%s83] sm:$0x1]
    %85 = vrot.lane.b32.xlu0 %v84, 16
    %v86 = vpop.permute.xlu0 %85
    %vm87 = vcmask 195712
    %88 = vst.msk [vmem:[#allocation0] sm:$0x1] %vm87, %v86
    %s89 = scalar_lea.vmem %s0, 1
    %v90 = vld [vmem:[%s89] sm:$0x1]
    %91 = vrot.lane.b32.xlu0 %v90, 8
    %v92 = vpop.permute.xlu0 %91
    %vm93 = vcmask 130112
    %94 = vst.msk [vmem:[#allocation0] sm:$0x1] %vm93, %v92
    %s96 = sshll.u32 1, 1
    %s97 = ssub.s32 %s96, 1
    %v99 = vld [vmem:[#allocation0] sm:%s97]
    %s100 = sshll.u32 1, 1
    %s101 = ssub.s32 %s100, 1
    %102 = vst [vmem:[%s1] sm:%s101] %v99

// kernel: aspp_forward.1
$region0: #{aspp_forward.1}
  #allocation0 [shape = 'u32[]', space=smem, size = 0x4, offset = 0x4, fixed_abs, tag = 'smem constant byte address 0x4 - core index']
  #allocation1 [shape = 'u32[144,128]{1,0:T(1,128)}', space=vmem, size = 0x12000, scoped, tag = 'internal scratch']
  %s0 = inlined_call_operand.vmem [shape: f32[2,52,208], index: 0, kind: input, shape index: {}]
  %s1 = inlined_call_operand.vmem [shape: f32[27,64], index: 1, kind: input, shape index: {}]
  %s2 = inlined_call_operand.vmem [shape: f32[3,64], index: 2, kind: input, shape index: {}]
  %s3 = inlined_call_operand.vmem [shape: f32[256,512], index: 3, kind: input, shape index: {}]
  %s4 = inlined_call_operand.vmem [shape: f32[1,512], index: 4, kind: input, shape index: {}]
  %s5 = inlined_call_operand.vmem [shape: f32[64,8], index: 5, kind: input, shape index: {}]
  %s6 = inlined_call_operand.vmem [shape: f32[1,8], index: 6, kind: input, shape index: {}]
  %s7 = inlined_call_operand.vmem [shape: f32[512,128], index: 7, kind: input, shape index: {}]
  %s8 = inlined_call_operand.vmem [shape: f32[8,128], index: 8, kind: input, shape index: {}]
  %s9 = inlined_call_operand.vmem [shape: f32[1,128], index: 9, kind: input, shape index: {}]
  %s10 = inlined_call_operand.vmem [shape: f32[2,16,128], index: 10, kind: output, shape index: {}]
  %s11 = sld [smem:[#allocation0]]
  $region73: #{aspp_forward.1} parent=0
    _
  %s13 = ssub.s32 1, %s11
  %s14 = scalar_select 0, %s13, %s11
  loop: start=0, step=1, limit=4
  $region2: #{aspp_forward.1} parent=0 // loop_pre_header
    _
  $region3: #{aspp_forward.1} parent=0 // loop_header
    %s16 = sphi 0, %s20
    %p17 = scmp.ge.s32.totalorder %s16, 4
    %s26 = sphi 0, %s28
    %s29 = sphi 0, %s26
    %s30 = sphi 0, %s29
    %s46 = sphi 0, %s30
    %s50 = sphi 0, %s50
    %s52 = sphi 0, %s50
    %s53 = sphi 0, %s52
    %s67 = sphi 0, %s53
    %s71 = sphi 0, %s71
    %s73 = sphi 0, %s71
    %s74 = sphi 0, %s73
    %s88 = sphi 0, %s74
    %s92 = sphi 0, %s92
    %s94 = sphi 0, %s92
    %s95 = sphi 0, %s94
    %s109 = sphi 0, %s95
    %s113 = sphi 0, %s113
    %s115 = sphi 0, %s113
    %s116 = sphi 0, %s115
    %s130 = sphi 0, %s116
    %s134 = sphi 0, %s134
    %s136 = sphi 0, %s134
    %s137 = sphi 0, %s136
    %s151 = sphi 0, %s137
    %s155 = sphi 0, %s155
    %s157 = sphi 0, %s155
    %s158 = sphi 0, %s157
    %s172 = sphi 0, %s158
    %s176 = sphi 0, %s176
    %s178 = sphi 0, %s176
    %s179 = sphi 0, %s178
    %s193 = sphi 0, %s179
    %s197 = sphi 0, %s197
    %s199 = sphi 0, %s197
    %s200 = sphi 0, %s199
    %s214 = sphi 0, %s200
    %s218 = sphi 0, %s218
    %s220 = sphi 0, %s218
    %s221 = sphi 0, %s220
    %s235 = sphi 0, %s221
    %s241 = sphi 0, %s243
    %s244 = sphi 0, %s241
    %s245 = sphi 0, %s244
    %s261 = sphi 0, %s245
  $region4: #{aspp_forward.1} parent=0 // loop_header_branch
    %19 = sbr.rel (%p17) target = $region8
  $region5: #{aspp_forward.1} parent=0 // loop_body
    %s21 = ssub.s32 %s16, 1
    %s22 = ssub.s32 %s16, 2
    %s23 = sadd.s32 %s16, 1
    %s24 = ssub.s32 %s16, %s23
    %p25 = scmp.eq.s32.totalorder %s24, 0
    %s27 = sadd.s32 %s26, 1
    %s28 = scalar_select %p25, %s26, %s27
    %p31 = pneg %p25
    %p32 = scmp.eq.s32.totalorder %s16, 1
    %p33 = por %p31, %p32
    %p34 = scmp.ne.s32.totalorder %s26, %s29
    %p35 = scmp.eq.s32.totalorder %s16, 0
    %p36 = por %p34, %p35
    %p37 = scmp.ne.s32.totalorder %s26, %s29
    %p38 = scmp.eq.s32.totalorder %s21, 1
    %p39 = por %p37, %p38
    %p40 = scmp.ne.s32.totalorder %s29, %s30
    %p41 = scmp.eq.s32.totalorder %s21, 0
    %p42 = por %p40, %p41
    %p43 = scmp.ne.s32.totalorder %s29, %s30
    %p44 = scmp.eq.s32.totalorder %s22, 1
    %p45 = por %p43, %p44
    %p47 = scmp.ne.s32.totalorder %s30, %s46
    %p48 = scmp.eq.s32.totalorder %s22, 0
    %p49 = por %p47, %p48
    %s51 = sadd.s32 %s50, 1
    %p54 = scmp.eq.s32.totalorder %s16, 1
    %p55 = scmp.ne.s32.totalorder %s50, %s52
    %p56 = scmp.eq.s32.totalorder %s16, 0
    %p57 = por %p55, %p56
    %p58 = scmp.ne.s32.totalorder %s50, %s52
    %p59 = scmp.eq.s32.totalorder %s21, 1
    %p60 = por %p58, %p59
    %p61 = scmp.ne.s32.totalorder %s52, %s53
    %p62 = scmp.eq.s32.totalorder %s21, 0
    %p63 = por %p61, %p62
    %p64 = scmp.ne.s32.totalorder %s52, %s53
    %p65 = scmp.eq.s32.totalorder %s22, 1
    %p66 = por %p64, %p65
    %p68 = scmp.ne.s32.totalorder %s53, %s67
    %p69 = scmp.eq.s32.totalorder %s22, 0
    %p70 = por %p68, %p69
    %s72 = sadd.s32 %s71, 1
    %p75 = scmp.eq.s32.totalorder %s16, 1
    %p76 = scmp.ne.s32.totalorder %s71, %s73
    %p77 = scmp.eq.s32.totalorder %s16, 0
    %p78 = por %p76, %p77
    %p79 = scmp.ne.s32.totalorder %s71, %s73
    %p80 = scmp.eq.s32.totalorder %s21, 1
    %p81 = por %p79, %p80
    %p82 = scmp.ne.s32.totalorder %s73, %s74
    %p83 = scmp.eq.s32.totalorder %s21, 0
    %p84 = por %p82, %p83
    %p85 = scmp.ne.s32.totalorder %s73, %s74
    %p86 = scmp.eq.s32.totalorder %s22, 1
    %p87 = por %p85, %p86
    %p89 = scmp.ne.s32.totalorder %s74, %s88
    %p90 = scmp.eq.s32.totalorder %s22, 0
    %p91 = por %p89, %p90
    %s93 = sadd.s32 %s92, 1
    %p96 = scmp.eq.s32.totalorder %s16, 1
    %p97 = scmp.ne.s32.totalorder %s92, %s94
    %p98 = scmp.eq.s32.totalorder %s16, 0
    %p99 = por %p97, %p98
    %p100 = scmp.ne.s32.totalorder %s92, %s94
    %p101 = scmp.eq.s32.totalorder %s21, 1
    %p102 = por %p100, %p101
    %p103 = scmp.ne.s32.totalorder %s94, %s95
    %p104 = scmp.eq.s32.totalorder %s21, 0
    %p105 = por %p103, %p104
    %p106 = scmp.ne.s32.totalorder %s94, %s95
    %p107 = scmp.eq.s32.totalorder %s22, 1
    %p108 = por %p106, %p107
    %p110 = scmp.ne.s32.totalorder %s95, %s109
    %p111 = scmp.eq.s32.totalorder %s22, 0
    %p112 = por %p110, %p111
    %s114 = sadd.s32 %s113, 1
    %p117 = scmp.eq.s32.totalorder %s16, 1
    %p118 = scmp.ne.s32.totalorder %s113, %s115
    %p119 = scmp.eq.s32.totalorder %s16, 0
    %p120 = por %p118, %p119
    %p121 = scmp.ne.s32.totalorder %s113, %s115
    %p122 = scmp.eq.s32.totalorder %s21, 1
    %p123 = por %p121, %p122
    %p124 = scmp.ne.s32.totalorder %s115, %s116
    %p125 = scmp.eq.s32.totalorder %s21, 0
    %p126 = por %p124, %p125
    %p127 = scmp.ne.s32.totalorder %s115, %s116
    %p128 = scmp.eq.s32.totalorder %s22, 1
    %p129 = por %p127, %p128
    %p131 = scmp.ne.s32.totalorder %s116, %s130
    %p132 = scmp.eq.s32.totalorder %s22, 0
    %p133 = por %p131, %p132
    %s135 = sadd.s32 %s134, 1
    %p138 = scmp.eq.s32.totalorder %s16, 1
    %p139 = scmp.ne.s32.totalorder %s134, %s136
    %p140 = scmp.eq.s32.totalorder %s16, 0
    %p141 = por %p139, %p140
    %p142 = scmp.ne.s32.totalorder %s134, %s136
    %p143 = scmp.eq.s32.totalorder %s21, 1
    %p144 = por %p142, %p143
    %p145 = scmp.ne.s32.totalorder %s136, %s137
    %p146 = scmp.eq.s32.totalorder %s21, 0
    %p147 = por %p145, %p146
    %p148 = scmp.ne.s32.totalorder %s136, %s137
    %p149 = scmp.eq.s32.totalorder %s22, 1
    %p150 = por %p148, %p149
    %p152 = scmp.ne.s32.totalorder %s137, %s151
    %p153 = scmp.eq.s32.totalorder %s22, 0
    %p154 = por %p152, %p153
    %s156 = sadd.s32 %s155, 1
    %p159 = scmp.eq.s32.totalorder %s16, 1
    %p160 = scmp.ne.s32.totalorder %s155, %s157
    %p161 = scmp.eq.s32.totalorder %s16, 0
    %p162 = por %p160, %p161
    %p163 = scmp.ne.s32.totalorder %s155, %s157
    %p164 = scmp.eq.s32.totalorder %s21, 1
    %p165 = por %p163, %p164
    %p166 = scmp.ne.s32.totalorder %s157, %s158
    %p167 = scmp.eq.s32.totalorder %s21, 0
    %p168 = por %p166, %p167
    %p169 = scmp.ne.s32.totalorder %s157, %s158
    %p170 = scmp.eq.s32.totalorder %s22, 1
    %p171 = por %p169, %p170
    %p173 = scmp.ne.s32.totalorder %s158, %s172
    %p174 = scmp.eq.s32.totalorder %s22, 0
    %p175 = por %p173, %p174
    %s177 = sadd.s32 %s176, 1
    %p180 = scmp.eq.s32.totalorder %s16, 1
    %p181 = scmp.ne.s32.totalorder %s176, %s178
    %p182 = scmp.eq.s32.totalorder %s16, 0
    %p183 = por %p181, %p182
    %p184 = scmp.ne.s32.totalorder %s176, %s178
    %p185 = scmp.eq.s32.totalorder %s21, 1
    %p186 = por %p184, %p185
    %p187 = scmp.ne.s32.totalorder %s178, %s179
    %p188 = scmp.eq.s32.totalorder %s21, 0
    %p189 = por %p187, %p188
    %p190 = scmp.ne.s32.totalorder %s178, %s179
    %p191 = scmp.eq.s32.totalorder %s22, 1
    %p192 = por %p190, %p191
    %p194 = scmp.ne.s32.totalorder %s179, %s193
    %p195 = scmp.eq.s32.totalorder %s22, 0
    %p196 = por %p194, %p195
    %s198 = sadd.s32 %s197, 1
    %p201 = scmp.eq.s32.totalorder %s16, 1
    %p202 = scmp.ne.s32.totalorder %s197, %s199
    %p203 = scmp.eq.s32.totalorder %s16, 0
    %p204 = por %p202, %p203
    %p205 = scmp.ne.s32.totalorder %s197, %s199
    %p206 = scmp.eq.s32.totalorder %s21, 1
    %p207 = por %p205, %p206
    %p208 = scmp.ne.s32.totalorder %s199, %s200
    %p209 = scmp.eq.s32.totalorder %s21, 0
    %p210 = por %p208, %p209
    %p211 = scmp.ne.s32.totalorder %s199, %s200
    %p212 = scmp.eq.s32.totalorder %s22, 1
    %p213 = por %p211, %p212
    %p215 = scmp.ne.s32.totalorder %s200, %s214
    %p216 = scmp.eq.s32.totalorder %s22, 0
    %p217 = por %p215, %p216
    %s219 = sadd.s32 %s218, 1
    %p222 = scmp.eq.s32.totalorder %s16, 1
    %p223 = scmp.ne.s32.totalorder %s218, %s220
    %p224 = scmp.eq.s32.totalorder %s16, 0
    %p225 = por %p223, %p224
    %p226 = scmp.ne.s32.totalorder %s218, %s220
    %p227 = scmp.eq.s32.totalorder %s21, 1
    %p228 = por %p226, %p227
    %p229 = scmp.ne.s32.totalorder %s220, %s221
    %p230 = scmp.eq.s32.totalorder %s21, 0
    %p231 = por %p229, %p230
    %p232 = scmp.ne.s32.totalorder %s220, %s221
    %p233 = scmp.eq.s32.totalorder %s22, 1
    %p234 = por %p232, %p233
    %p236 = scmp.ne.s32.totalorder %s221, %s235
    %p237 = scmp.eq.s32.totalorder %s22, 0
    %p238 = por %p236, %p237
    %s239 = ssub.s32 %s16, %s23
    %p240 = scmp.eq.s32.totalorder %s239, 0
    %s242 = sadd.s32 %s241, 1
    %s243 = scalar_select %p240, %s241, %s242
    %p246 = pneg %p240
    %p247 = scmp.eq.s32.totalorder %s16, 1
    %p248 = por %p246, %p247
    %p249 = scmp.ne.s32.totalorder %s241, %s244
    %p250 = scmp.eq.s32.totalorder %s16, 0
    %p251 = por %p249, %p250
    %p252 = scmp.ne.s32.totalorder %s241, %s244
    %p253 = scmp.eq.s32.totalorder %s21, 1
    %p254 = por %p252, %p253
    %p255 = scmp.ne.s32.totalorder %s244, %s245
    %p256 = scmp.eq.s32.totalorder %s21, 0
    %p257 = por %p255, %p256
    %p258 = scmp.ne.s32.totalorder %s244, %s245
    %p259 = scmp.eq.s32.totalorder %s22, 1
    %p260 = por %p258, %p259
    %p262 = scmp.ne.s32.totalorder %s245, %s261
    %p263 = scmp.eq.s32.totalorder %s22, 0
    %p264 = por %p262, %p263
    %p265 = scmp.le.s32.totalorder 1, %s16
    %p266 = scmp.lt.s32.totalorder %s16, 3
    %p267 = pnand %p265, %p266
    %p268 = pneg %p267
    // Predicated region
    $region9: #{aspp_forward.1} parent=5 // pred_check
      _
    $region10: #{aspp_forward.1} parent=5 // pred_check_branch
      %270 = sbr.rel (%p267) target = $region12
    $region11: #{aspp_forward.1} parent=5 // pred_region
      %s271 = ssub.s32 %s16, 1
      // Predicated region
      $region13: #{aspp_forward.1} parent=11 // pred_check
        %p272 = pneg %p63
      $region14: #{aspp_forward.1} parent=11 // pred_check_branch
        %274 = sbr.rel (%p272) target = $region16
      $region15: #{aspp_forward.1} parent=11 // pred_region
        _
      $region16: #{aspp_forward.1} parent=11 // pred_fallthru
        _
      // Predicated region
      $region17: #{aspp_forward.1} parent=11 // pred_check
        %p275 = pneg %p84
      $region18: #{aspp_forward.1} parent=11 // pred_check_branch
        %277 = sbr.rel (%p275) target = $region20
      $region19: #{aspp_forward.1} parent=11 // pred_region
        _
      $region20: #{aspp_forward.1} parent=11 // pred_fallthru
        _
      // Predicated region
      $region21: #{aspp_forward.1} parent=11 // pred_check
        %p278 = pneg %p105
      $region22: #{aspp_forward.1} parent=11 // pred_check_branch
        %280 = sbr.rel (%p278) target = $region24
      $region23: #{aspp_forward.1} parent=11 // pred_region
        _
      $region24: #{aspp_forward.1} parent=11 // pred_fallthru
        _
      // Predicated region
      $region25: #{aspp_forward.1} parent=11 // pred_check
        %p281 = pneg %p126
      $region26: #{aspp_forward.1} parent=11 // pred_check_branch
        %283 = sbr.rel (%p281) target = $region28
      $region27: #{aspp_forward.1} parent=11 // pred_region
        _
      $region28: #{aspp_forward.1} parent=11 // pred_fallthru
        _
      // Predicated region
      $region29: #{aspp_forward.1} parent=11 // pred_check
        %p284 = pneg %p147
      $region30: #{aspp_forward.1} parent=11 // pred_check_branch
        %286 = sbr.rel (%p284) target = $region32
      $region31: #{aspp_forward.1} parent=11 // pred_region
        _
      $region32: #{aspp_forward.1} parent=11 // pred_fallthru
        _
      // Predicated region
      $region33: #{aspp_forward.1} parent=11 // pred_check
        %p287 = pneg %p168
      $region34: #{aspp_forward.1} parent=11 // pred_check_branch
        %289 = sbr.rel (%p287) target = $region36
      $region35: #{aspp_forward.1} parent=11 // pred_region
        _
      $region36: #{aspp_forward.1} parent=11 // pred_fallthru
        _
      // Predicated region
      $region37: #{aspp_forward.1} parent=11 // pred_check
        %p290 = pneg %p189
      $region38: #{aspp_forward.1} parent=11 // pred_check_branch
        %292 = sbr.rel (%p290) target = $region40
      $region39: #{aspp_forward.1} parent=11 // pred_region
        _
      $region40: #{aspp_forward.1} parent=11 // pred_fallthru
        _
      // Predicated region
      $region41: #{aspp_forward.1} parent=11 // pred_check
        %p293 = pneg %p210
      $region42: #{aspp_forward.1} parent=11 // pred_check_branch
        %295 = sbr.rel (%p293) target = $region44
      $region43: #{aspp_forward.1} parent=11 // pred_region
        _
      $region44: #{aspp_forward.1} parent=11 // pred_fallthru
        _
      // Predicated region
      $region45: #{aspp_forward.1} parent=11 // pred_check
        %p296 = pneg %p231
      $region46: #{aspp_forward.1} parent=11 // pred_check_branch
        %298 = sbr.rel (%p296) target = $region48
      $region47: #{aspp_forward.1} parent=11 // pred_region
        _
      $region48: #{aspp_forward.1} parent=11 // pred_fallthru
        _
    $region12: #{aspp_forward.1} parent=5 // pred_fallthru
      _
    %p299 = scmp.lt.s32.totalorder %s16, 2
    // Predicated region
    $region49: #{aspp_forward.1} parent=5 // pred_check
      %p300 = pneg %p299
    $region50: #{aspp_forward.1} parent=5 // pred_check_branch
      %302 = sbr.rel (%p300) target = $region52
    $region51: #{aspp_forward.1} parent=5 // pred_region
      // Predicated region
      $region53: #{aspp_forward.1} parent=51 // pred_check
        %p303 = pneg %p36
      $region54: #{aspp_forward.1} parent=51 // pred_check_branch
        %305 = sbr.rel (%p303) target = $region56
      $region55: #{aspp_forward.1} parent=51 // pred_region
        %p306 = scmp.lt.s32.totalorder %s16, 1
        %s307 = scalar_select %p306, %s16, 1
        %s308 = smul.addr %s307, 14
        %s309 = smul.addr %s308, 8
        %s310 = scalar_lea.vmem %s0, %s309
      $region56: #{aspp_forward.1} parent=51 // pred_fallthru
        _
    $region52: #{aspp_forward.1} parent=5 // pred_fallthru
      _
    %p311 = scmp.le.s32.totalorder 1, %s16
    %p312 = scmp.lt.s32.totalorder %s16, 3
    %p313 = pnand %p311, %p312
    %p314 = pneg %p313
    // Predicated region
    $region57: #{aspp_forward.1} parent=5 // pred_check
      _
    $region58: #{aspp_forward.1} parent=5 // pred_check_branch
      %316 = sbr.rel (%p313) target = $region60
    $region59: #{aspp_forward.1} parent=5 // pred_region
      %s317 = ssub.s32 %s16, 1
      %p318 = scmp.lt.s32.totalorder %s21, 1
      %s319 = scalar_select %p318, %s21, 1
      %s320 = smul.addr %s319, 14
      %s321 = smul.addr %s320, 8
      %s322 = scalar_lea.vmem %s0, %s321
      %p323 = pneg %p42
      %p324 = pneg %p39
      %p325 = pneg %p63
      %p326 = pneg %p60
      %p327 = pneg %p84
      %p328 = pneg %p81
      %p329 = pneg %p105
      %p330 = pneg %p102
      %p331 = pneg %p126
      %p332 = pneg %p123
      %p333 = pneg %p147
      %p334 = pneg %p144
      %p335 = pneg %p168
      %p336 = pneg %p165
      %p337 = pneg %p189
      %p338 = pneg %p186
      %p339 = pneg %p210
      %p340 = pneg %p207
      %p341 = pneg %p231
      %p342 = pneg %p228
      %p343 = pneg %p257
      %p344 = pneg %p254
      %p345 = scmp.lt.s32.totalorder %s21, 1
      %s346 = scalar_select %p345, %s21, 1
      %s347 = smul.addr %s346, 2
      %s348 = smul.addr %s347, 8
      %s349 = scalar_lea.vmem %s10, %s348
      %p350 = scmp.lt.s32.totalorder %s21, 1
      %s351 = scalar_select %p350, %s21, 1
      %s352 = smul.addr %s351, 14
      %s353 = smul.addr %s352, 8
      %s354 = scalar_lea.vmem %s0, %s353
      %p355 = scmp.lt.s32.totalorder %s21, 1
      %s356 = scalar_select %p355, %s21, 1
      %s357 = smul.addr %s356, 2
      %s358 = smul.addr %s357, 8
      %s359 = scalar_lea.vmem %s10, %s358
      %v360 = vld [vmem:[%s354 + $0x20] sm:$0xfc]
      %v361 = vld [vmem:[%s354 + $0x28] sm:$0xfc]
      %v362 = vld [vmem:[%s354 + $0x30] sm:$0xff]
      %v363 = vld [vmem:[%s354 + $0x38] sm:$0xff]
      %v364 = vld [vmem:[%s354 + $0x40] sm:$0x3]
      %v365 = vld [vmem:[%s354 + $0x48] sm:$0x3]
      %v366 = vld [vmem:[%s354 + $0x10] sm:$0xf0]
      %v367 = vld [vmem:[%s354 + $0x20] sm:$0xff]
      %v368 = vld [vmem:[%s354 + $0x30] sm:$0xf]
      %v369 = vld [vmem:[%s1] sm:$0x1]
      %v370 = vlaneseq
      %v371 = vshrl.u32 %v370, 7
      %v372 = vsub.s32 0, %v371
      %v373 = vrot.slane %v369, %v372
      %375 = vrot.lane.b32.xlu0 %v373, 48
      %v376 = vpop.permute.xlu0 %375
      %v378 = vmul.f32 %v366, %v376
      %v379 = vmul.f32 %v367, %v376
      %v380 = vmul.f32 %v368, %v376
      %v381 = vadd.f32 %v378, 0.0
      %v382 = vadd.f32 %v379, 0.0
      %v383 = vadd.f32 %v380, 0.0
      %v384 = vld [vmem:[%s354 + $0x18] sm:$0xf0]
      %v385 = vld [vmem:[%s354 + $0x28] sm:$0xff]
      %v386 = vld [vmem:[%s354 + $0x38] sm:$0xf]
      %v387 = vld [vmem:[%s1 + $0x1] sm:$0x1]
      %v388 = vlaneseq
      %v389 = vshrl.u32 %v388, 7
      %v390 = vsub.s32 0, %v389
      %v391 = vrot.slane %v387, %v390
      %393 = vrot.lane.b32.xlu0 %v391, 72
      %v394 = vpop.permute.xlu0 %393
      %v396 = vmul.f32 %v366, %v394
      %v397 = vmul.f32 %v384, %v394
      %v398 = vmul.f32 %v367, %v394
      %v399 = vmul.f32 %v385, %v394
      %v400 = vmul.f32 %v368, %v394
      %v401 = vmul.f32 %v386, %v394
      %408 = vrot.lane.b32.xlu0 %v396, 104
      %v409 = vpop.permute.xlu0 %408
      %410 = vrot.lane.b32.xlu0 %v397, 104
      %v411 = vpop.permute.xlu0 %410
      %412 = vrot.lane.b32.xlu0 %v398, 104
      %v413 = vpop.permute.xlu0 %412
      %414 = vrot.lane.b32.xlu0 %v399, 104
      %v415 = vpop.permute.xlu0 %414
      %416 = vrot.lane.b32.xlu0 %v400, 104
      %v417 = vpop.permute.xlu0 %416
      %418 = vrot.lane.b32.xlu0 %v401, 104
      %v419 = vpop.permute.xlu0 %418
      %vm420 = vcmask 850944
      %v421 = vsel %vm420, %v409, %v411
      %v422 = vsel %vm420, %v413, %v415
      %v423 = vsel %vm420, %v417, %v419
      %v427 = vadd.f32 %v381, %v421
      %v428 = vadd.f32 %v382, %v422
      %v429 = vadd.f32 %v383, %v423
      %v430 = vld [vmem:[%s1 + $0x2] sm:$0x1]
      %v431 = vlaneseq
      %v432 = vshrl.u32 %v431, 7
      %v433 = vsub.s32 0, %v432
      %v434 = vrot.slane %v430, %v433
      %436 = vrot.lane.b32.xlu0 %v434, 96
      %v437 = vpop.permute.xlu0 %436
      %v439 = vmul.f32 %v366, %v437
      %v440 = vmul.f32 %v384, %v437
      %v441 = vmul.f32 %v367, %v437
      %v442 = vmul.f32 %v385, %v437
      %v443 = vmul.f32 %v368, %v437
      %v444 = vmul.f32 %v386, %v437
      %451 = vrot.lane.b32.xlu0 %v439, 80
      %v452 = vpop.permute.xlu0 %451
      %453 = vrot.lane.b32.xlu0 %v440, 80
      %v454 = vpop.permute.xlu0 %453
      %455 = vrot.lane.b32.xlu0 %v441, 80
      %v456 = vpop.permute.xlu0 %455
      %457 = vrot.lane.b32.xlu0 %v442, 80
      %v458 = vpop.permute.xlu0 %457
      %459 = vrot.lane.b32.xlu0 %v443, 80
      %v460 = vpop.permute.xlu0 %459
      %461 = vrot.lane.b32.xlu0 %v444, 80
      %v462 = vpop.permute.xlu0 %461
      %vm463 = vcmask 654336
      %v464 = vsel %vm463, %v452, %v454
      %v465 = vsel %vm463, %v456, %v458
      %v466 = vsel %vm463, %v460, %v462
      %v470 = vadd.f32 %v427, %v464
      %v471 = vadd.f32 %v428, %v465
      %v472 = vadd.f32 %v429, %v466
      %v473 = vld [vmem:[%s1 + $0x3] sm:$0x1]
      %v474 = vlaneseq
      %v475 = vshrl.u32 %v474, 7
      %v476 = vsub.s32 0, %v475
      %v477 = vrot.slane %v473, %v476
      %479 = vrot.lane.b32.xlu0 %v477, 48
      %v480 = vpop.permute.xlu0 %479
      %v482 = vmul.f32 %v360, %v480
      %v483 = vmul.f32 %v362, %v480
      %v484 = vmul.f32 %v364, %v480
      %vm488 = vcmask 1041408
      %v489 = vrot.slane %v482, 6
      %v490 = vrot.slane %v483, 6
      %v491 = vsel %vm488, %v489, %v490
      %v492 = vrot.slane %v484, 6
      %v493 = vsel %vm488, %v490, %v492
      %v497 = vadd.f32 %v470, %v489
      %v498 = vadd.f32 %v471, %v491
      %v499 = vadd.f32 %v472, %v493
      %v500 = vld [vmem:[%s1 + $0x4] sm:$0x1]
      %v501 = vlaneseq
      %v502 = vshrl.u32 %v501, 7
      %v503 = vsub.s32 0, %v502
      %v504 = vrot.slane %v500, %v503
      %506 = vrot.lane.b32.xlu0 %v504, 72
      %v507 = vpop.permute.xlu0 %506
      %v509 = vmul.f32 %v360, %v507
      %v510 = vmul.f32 %v361, %v507
      %v511 = vmul.f32 %v362, %v507
      %v512 = vmul.f32 %v363, %v507
      %v513 = vmul.f32 %v364, %v507
      %v514 = vmul.f32 %v365, %v507
      %v521 = vrot.slane %v509, 6
      %v522 = vrot.slane %v510, 6
      %v523 = vrot.slane %v511, 6
      %v524 = vsel %vm488, %v521, %v523
      %v525 = vrot.slane %v512, 6
      %v526 = vsel %vm488, %v522, %v525
      %v527 = vrot.slane %v513, 6
      %v528 = vsel %vm488, %v523, %v527
      %v529 = vrot.slane %v514, 6
      %v530 = vsel %vm488, %v525, %v529
      %531 = vrot.lane.b32.xlu0 %v521, 104
      %v532 = vpop.permute.xlu0 %531
      %533 = vrot.lane.b32.xlu0 %v522, 104
      %v534 = vpop.permute.xlu0 %533
      %535 = vrot.lane.b32.xlu0 %v524, 104
      %v536 = vpop.permute.xlu0 %535
      %537 = vrot.lane.b32.xlu0 %v526, 104
      %v538 = vpop.permute.xlu0 %537
      %539 = vrot.lane.b32.xlu0 %v528, 104
      %v540 = vpop.permute.xlu0 %539
      %541 = vrot.lane.b32.xlu0 %v530, 104
      %v542 = vpop.permute.xlu0 %541
      %v543 = vsel %vm420, %v532, %v534
      %v544 = vsel %vm420, %v536, %v538
      %v545 = vsel %vm420, %v540, %v542
      %v549 = vadd.f32 %v497, %v543
      %v550 = vadd.f32 %v498, %v544
      %v551 = vadd.f32 %v499, %v545
      %v552 = vld [vmem:[%s1 + $0x5] sm:$0x1]
      %v553 = vlaneseq
      %v554 = vshrl.u32 %v553, 7
      %v555 = vsub.s32 0, %v554
      %v556 = vrot.slane %v552, %v555
      %558 = vrot.lane.b32.xlu0 %v556, 96
      %v559 = vpop.permute.xlu0 %558
      %v561 = vmul.f32 %v360, %v559
      %v562 = vmul.f32 %v361, %v559
      %v563 = vmul.f32 %v362, %v559
      %v564 = vmul.f32 %v363, %v559
      %v565 = vmul.f32 %v364, %v559
      %v566 = vmul.f32 %v365, %v559
      %v573 = vrot.slane %v561, 6
      %v574 = vrot.slane %v562, 6
      %v575 = vrot.slane %v563, 6
      %v576 = vsel %vm488, %v573, %v575
      %v577 = vrot.slane %v564, 6
      %v578 = vsel %vm488, %v574, %v577
      %v579 = vrot.slane %v565, 6
      %v580 = vsel %vm488, %v575, %v579
      %v581 = vrot.slane %v566, 6
      %v582 = vsel %vm488, %v577, %v581
      %583 = vrot.lane.b32.xlu0 %v573, 80
      %v584 = vpop.permute.xlu0 %583
      %585 = vrot.lane.b32.xlu0 %v574, 80
      %v586 = vpop.permute.xlu0 %585
      %587 = vrot.lane.b32.xlu0 %v576, 80
      %v588 = vpop.permute.xlu0 %587
      %589 = vrot.lane.b32.xlu0 %v578, 80
      %v590 = vpop.permute.xlu0 %589
      %591 = vrot.lane.b32.xlu0 %v580, 80
      %v592 = vpop.permute.xlu0 %591
      %593 = vrot.lane.b32.xlu0 %v582, 80
      %v594 = vpop.permute.xlu0 %593
      %v595 = vsel %vm463, %v584, %v586
      %v596 = vsel %vm463, %v588, %v590
      %v597 = vsel %vm463, %v592, %v594
      %v601 = vadd.f32 %v549, %v595
      %v602 = vadd.f32 %v550, %v596
      %v603 = vadd.f32 %v551, %v597
      %v604 = vld [vmem:[%s354 + $0x40] sm:$0xff]
      %v605 = vld [vmem:[%s1 + $0x6] sm:$0x1]
      %v606 = vlaneseq
      %v607 = vshrl.u32 %v606, 7
      %v608 = vsub.s32 0, %v607
      %v609 = vrot.slane %v605, %v608
      %611 = vrot.lane.b32.xlu0 %v609, 48
      %v612 = vpop.permute.xlu0 %611
      %v614 = vmul.f32 %v362, %v612
      %v615 = vmul.f32 %v604, %v612
      %vm618 = vcmask 1043456
      %v619 = vrot.slane %v614, 4
      %v620 = vrot.slane %v615, 4
      %v621 = vsel %vm618, %v619, %v620
      %v625 = vadd.f32 %v601, %v619
      %v626 = vadd.f32 %v602, %v621
      %v627 = vadd.f32 %v603, %v620
      %v628 = vld [vmem:[%s354 + $0x48] sm:$0xff]
      %v629 = vld [vmem:[%s1 + $0x7] sm:$0x1]
      %v630 = vlaneseq
      %v631 = vshrl.u32 %v630, 7
      %v632 = vsub.s32 0, %v631
      %v633 = vrot.slane %v629, %v632
      %635 = vrot.lane.b32.xlu0 %v633, 72
      %v636 = vpop.permute.xlu0 %635
      %v638 = vmul.f32 %v362, %v636
      %v639 = vmul.f32 %v363, %v636
      %v640 = vmul.f32 %v604, %v636
      %v641 = vmul.f32 %v628, %v636
      %v646 = vrot.slane %v638, 4
      %v647 = vrot.slane %v639, 4
      %v648 = vrot.slane %v640, 4
      %v649 = vsel %vm618, %v646, %v648
      %v650 = vrot.slane %v641, 4
      %v651 = vsel %vm618, %v647, %v650
      %652 = vrot.lane.b32.xlu0 %v646, 104
      %v653 = vpop.permute.xlu0 %652
      %654 = vrot.lane.b32.xlu0 %v647, 104
      %v655 = vpop.permute.xlu0 %654
      %656 = vrot.lane.b32.xlu0 %v649, 104
      %v657 = vpop.permute.xlu0 %656
      %658 = vrot.lane.b32.xlu0 %v651, 104
      %v659 = vpop.permute.xlu0 %658
      %660 = vrot.lane.b32.xlu0 %v648, 104
      %v661 = vpop.permute.xlu0 %660
      %662 = vrot.lane.b32.xlu0 %v650, 104
      %v663 = vpop.permute.xlu0 %662
      %v664 = vsel %vm420, %v653, %v655
      %v665 = vsel %vm420, %v657, %v659
      %v666 = vsel %vm420, %v661, %v663
      %v670 = vadd.f32 %v625, %v664
      %v671 = vadd.f32 %v626, %v665
      %v672 = vadd.f32 %v627, %v666
      %v673 = vld [vmem:[%s1 + $0x8] sm:$0x1]
      %v674 = vlaneseq
      %v675 = vshrl.u32 %v674, 7
      %v676 = vsub.s32 0, %v675
      %v677 = vrot.slane %v673, %v676
      %679 = vrot.lane.b32.xlu0 %v677, 96
      %v680 = vpop.permute.xlu0 %679
      %v682 = vmul.f32 %v362, %v680
      %v683 = vmul.f32 %v363, %v680
      %v684 = vmul.f32 %v604, %v680
      %v685 = vmul.f32 %v628, %v680
      %v690 = vrot.slane %v682, 4
      %v691 = vrot.slane %v683, 4
      %v692 = vrot.slane %v684, 4
      %v693 = vsel %vm618, %v690, %v692
      %v694 = vrot.slane %v685, 4
      %v695 = vsel %vm618, %v691, %v694
      %696 = vrot.lane.b32.xlu0 %v690, 80
      %v697 = vpop.permute.xlu0 %696
      %698 = vrot.lane.b32.xlu0 %v691, 80
      %v699 = vpop.permute.xlu0 %698
      %700 = vrot.lane.b32.xlu0 %v693, 80
      %v701 = vpop.permute.xlu0 %700
      %702 = vrot.lane.b32.xlu0 %v695, 80
      %v703 = vpop.permute.xlu0 %702
      %704 = vrot.lane.b32.xlu0 %v692, 80
      %v705 = vpop.permute.xlu0 %704
      %706 = vrot.lane.b32.xlu0 %v694, 80
      %v707 = vpop.permute.xlu0 %706
      %v708 = vsel %vm463, %v697, %v699
      %v709 = vsel %vm463, %v701, %v703
      %v710 = vsel %vm463, %v705, %v707
      %v714 = vadd.f32 %v670, %v708
      %v715 = vadd.f32 %v671, %v709
      %v716 = vadd.f32 %v672, %v710
      %v717 = vld [vmem:[%s2] sm:$0x1]
      %v718 = vlaneseq
      %v719 = vshrl.u32 %v718, 7
      %v720 = vsub.s32 0, %v719
      %v721 = vrot.slane %v717, %v720
      %723 = vrot.lane.b32.xlu0 %v721, 48
      %v724 = vpop.permute.xlu0 %723
      %v726 = vadd.f32 %v714, %v724
      %v727 = vadd.f32 %v715, %v724
      %v728 = vadd.f32 %v716, %v724
      %v729 = vmax.f32 %v726, 0.0
      %v730 = vmax.f32 %v727, 0.0
      %v731 = vmax.f32 %v728, 0.0
      %v732 = vld [vmem:[%s354] sm:$0xc0]
      %v733 = vld [vmem:[%s354 + $0x10] sm:$0xff]
      %v734 = vld [vmem:[%s354 + $0x20] sm:$0x3f]
      %v735 = vld [vmem:[%s1 + $0x9] sm:$0x1]
      %v736 = vlaneseq
      %v737 = vshrl.u32 %v736, 7
      %v738 = vsub.s32 0, %v737
      %v739 = vrot.slane %v735, %v738
      %741 = vrot.lane.b32.xlu0 %v739, 24
      %v742 = vpop.permute.xlu0 %741
      %v744 = vmul.f32 %v732, %v742
      %v745 = vmul.f32 %v733, %v742
      %v746 = vmul.f32 %v734, %v742
      %v747 = vadd.f32 %v744, 0.0
      %v748 = vadd.f32 %v745, 0.0
      %v749 = vadd.f32 %v746, 0.0
      %v750 = vld [vmem:[%s354 + $0x8] sm:$0xc0]
      %v751 = vld [vmem:[%s354 + $0x18] sm:$0xff]
      %v752 = vld [vmem:[%s354 + $0x28] sm:$0x3f]
      %v753 = vld [vmem:[%s1 + $0xa] sm:$0x1]
      %v754 = vlaneseq
      %v755 = vshrl.u32 %v754, 7
      %v756 = vsub.s32 0, %v755
      %v757 = vrot.slane %v753, %v756
      %759 = vrot.lane.b32.xlu0 %v757, 72
      %v760 = vpop.permute.xlu0 %759
      %v762 = vmul.f32 %v732, %v760
      %v763 = vmul.f32 %v750, %v760
      %v764 = vmul.f32 %v733, %v760
      %v765 = vmul.f32 %v751, %v760
      %v766 = vmul.f32 %v734, %v760
      %v767 = vmul.f32 %v752, %v760
      %774 = vrot.lane.b32.xlu0 %v762, 80
      %v775 = vpop.permute.xlu0 %774
      %776 = vrot.lane.b32.xlu0 %v763, 80
      %v777 = vpop.permute.xlu0 %776
      %778 = vrot.lane.b32.xlu0 %v764, 80
      %v779 = vpop.permute.xlu0 %778
      %780 = vrot.lane.b32.xlu0 %v765, 80
      %v781 = vpop.permute.xlu0 %780
      %782 = vrot.lane.b32.xlu0 %v766, 80
      %v783 = vpop.permute.xlu0 %782
      %784 = vrot.lane.b32.xlu0 %v767, 80
      %v785 = vpop.permute.xlu0 %784
      %v786 = vsel %vm463, %v775, %v777
      %v787 = vsel %vm463, %v779, %v781
      %v788 = vsel %vm463, %v783, %v785
      %v792 = vadd.f32 %v747, %v786
      %v793 = vadd.f32 %v748, %v787
      %v794 = vadd.f32 %v749, %v788
      %v795 = vld [vmem:[%s1 + $0xb] sm:$0x1]
      %v796 = vlaneseq
      %v797 = vshrl.u32 %v796, 7
      %v798 = vsub.s32 0, %v797
      %v799 = vrot.slane %v795, %v798
      %801 = vrot.lane.b32.xlu0 %v799, 120
      %v802 = vpop.permute.xlu0 %801
      %v804 = vmul.f32 %v732, %v802
      %v805 = vmul.f32 %v750, %v802
      %v806 = vmul.f32 %v733, %v802
      %v807 = vmul.f32 %v751, %v802
      %v808 = vmul.f32 %v734, %v802
      %v809 = vmul.f32 %v752, %v802
      %816 = vrot.lane.b32.xlu0 %v804, 32
      %v817 = vpop.permute.xlu0 %816
      %818 = vrot.lane.b32.xlu0 %v805, 32
      %v819 = vpop.permute.xlu0 %818
      %820 = vrot.lane.b32.xlu0 %v806, 32
      %v821 = vpop.permute.xlu0 %820
      %822 = vrot.lane.b32.xlu0 %v807, 32
      %v823 = vpop.permute.xlu0 %822
      %824 = vrot.lane.b32.xlu0 %v808, 32
      %v825 = vpop.permute.xlu0 %824
      %826 = vrot.lane.b32.xlu0 %v809, 32
      %v827 = vpop.permute.xlu0 %826
      %vm828 = vcmask 261120
      %v829 = vsel %vm828, %v817, %v819
      %v830 = vsel %vm828, %v821, %v823
      %v831 = vsel %vm828, %v825, %v827
      %v835 = vadd.f32 %v792, %v829
      %v836 = vadd.f32 %v793, %v830
      %v837 = vadd.f32 %v794, %v831
      %v838 = vld [vmem:[%s1 + $0xc] sm:$0x1]
      %v839 = vlaneseq
      %v840 = vshrl.u32 %v839, 7
      %v841 = vsub.s32 0, %v840
      %v842 = vrot.slane %v838, %v841
      %844 = vrot.lane.b32.xlu0 %v842, 24
      %v845 = vpop.permute.xlu0 %844
      %v847 = vmul.f32 %v360, %v845
      %v848 = vmul.f32 %v362, %v845
      %v849 = vmul.f32 %v364, %v845
      %v853 = vrot.slane %v847, 4
      %v854 = vrot.slane %v848, 4
      %v855 = vsel %vm618, %v853, %v854
      %v856 = vrot.slane %v849, 4
      %v857 = vsel %vm618, %v854, %v856
      %v861 = vadd.f32 %v835, %v853
      %v862 = vadd.f32 %v836, %v855
      %v863 = vadd.f32 %v837, %v857
      %v864 = vld [vmem:[%s1 + $0xd] sm:$0x1]
      %v865 = vlaneseq
      %v866 = vshrl.u32 %v865, 7
      %v867 = vsub.s32 0, %v866
      %v868 = vrot.slane %v864, %v867
      %870 = vrot.lane.b32.xlu0 %v868, 72
      %v871 = vpop.permute.xlu0 %870
      %v873 = vmul.f32 %v360, %v871
      %v874 = vmul.f32 %v361, %v871
      %v875 = vmul.f32 %v362, %v871
      %v876 = vmul.f32 %v363, %v871
      %v877 = vmul.f32 %v364, %v871
      %v878 = vmul.f32 %v365, %v871
      %v885 = vrot.slane %v873, 4
      %v886 = vrot.slane %v874, 4
      %v887 = vrot.slane %v875, 4
      %v888 = vsel %vm618, %v885, %v887
      %v889 = vrot.slane %v876, 4
      %v890 = vsel %vm618, %v886, %v889
      %v891 = vrot.slane %v877, 4
      %v892 = vsel %vm618, %v887, %v891
      %v893 = vrot.slane %v878, 4
      %v894 = vsel %vm618, %v889, %v893
      %895 = vrot.lane.b32.xlu0 %v885, 80
      %v896 = vpop.permute.xlu0 %895
      %897 = vrot.lane.b32.xlu0 %v886, 80
      %v898 = vpop.permute.xlu0 %897
      %899 = vrot.lane.b32.xlu0 %v888, 80
      %v900 = vpop.permute.xlu0 %899
      %901 = vrot.lane.b32.xlu0 %v890, 80
      %v902 = vpop.permute.xlu0 %901
      %903 = vrot.lane.b32.xlu0 %v892, 80
      %v904 = vpop.permute.xlu0 %903
      %905 = vrot.lane.b32.xlu0 %v894, 80
      %v906 = vpop.permute.xlu0 %905
      %v907 = vsel %vm463, %v896, %v898
      %v908 = vsel %vm463, %v900, %v902
      %v909 = vsel %vm463, %v904, %v906
      %v913 = vadd.f32 %v861, %v907
      %v914 = vadd.f32 %v862, %v908
      %v915 = vadd.f32 %v863, %v909
      %v916 = vld [vmem:[%s1 + $0xe] sm:$0x1]
      %v917 = vlaneseq
      %v918 = vshrl.u32 %v917, 7
      %v919 = vsub.s32 0, %v918
      %v920 = vrot.slane %v916, %v919
      %922 = vrot.lane.b32.xlu0 %v920, 120
      %v923 = vpop.permute.xlu0 %922
      %v925 = vmul.f32 %v360, %v923
      %v926 = vmul.f32 %v361, %v923
      %v927 = vmul.f32 %v362, %v923
      %v928 = vmul.f32 %v363, %v923
      %v929 = vmul.f32 %v364, %v923
      %v930 = vmul.f32 %v365, %v923
      %v937 = vrot.slane %v925, 4
      %v938 = vrot.slane %v926, 4
      %v939 = vrot.slane %v927, 4
      %v940 = vsel %vm618, %v937, %v939
      %v941 = vrot.slane %v928, 4
      %v942 = vsel %vm618, %v938, %v941
      %v943 = vrot.slane %v929, 4
      %v944 = vsel %vm618, %v939, %v943
      %v945 = vrot.slane %v930, 4
      %v946 = vsel %vm618, %v941, %v945
      %947 = vrot.lane.b32.xlu0 %v937, 32
      %v948 = vpop.permute.xlu0 %947
      %949 = vrot.lane.b32.xlu0 %v938, 32
      %v950 = vpop.permute.xlu0 %949
      %951 = vrot.lane.b32.xlu0 %v940, 32
      %v952 = vpop.permute.xlu0 %951
      %953 = vrot.lane.b32.xlu0 %v942, 32
      %v954 = vpop.permute.xlu0 %953
      %955 = vrot.lane.b32.xlu0 %v944, 32
      %v956 = vpop.permute.xlu0 %955
      %957 = vrot.lane.b32.xlu0 %v946, 32
      %v958 = vpop.permute.xlu0 %957
      %v959 = vsel %vm828, %v948, %v950
      %v960 = vsel %vm828, %v952, %v954
      %v961 = vsel %vm828, %v956, %v958
      %v965 = vadd.f32 %v913, %v959
      %v966 = vadd.f32 %v914, %v960
      %v967 = vadd.f32 %v915, %v961
      %v968 = vld [vmem:[%s354 + $0x30] sm:$0xc0]
      %v969 = vld [vmem:[%s354 + $0x50] sm:$0x3f]
      %v970 = vld [vmem:[%s1 + $0xf] sm:$0x1]
      %v971 = vlaneseq
      %v972 = vshrl.u32 %v971, 7
      %v973 = vsub.s32 0, %v972
      %v974 = vrot.slane %v970, %v973
      %976 = vrot.lane.b32.xlu0 %v974, 24
      %v977 = vpop.permute.xlu0 %976
      %v979 = vmul.f32 %v968, %v977
      %v980 = vmul.f32 %v604, %v977
      %v981 = vmul.f32 %v969, %v977
      %v982 = vadd.f32 %v965, %v979
      %v983 = vadd.f32 %v966, %v980
      %v984 = vadd.f32 %v967, %v981
      %v985 = vld [vmem:[%s354 + $0x38] sm:$0xc0]
      %v986 = vld [vmem:[%s354 + $0x58] sm:$0x3f]
      %v987 = vld [vmem:[%s1 + $0x10] sm:$0x1]
      %v988 = vlaneseq
      %v989 = vshrl.u32 %v988, 7
      %v990 = vsub.s32 0, %v989
      %v991 = vrot.slane %v987, %v990
      %993 = vrot.lane.b32.xlu0 %v991, 72
      %v994 = vpop.permute.xlu0 %993
      %v996 = vmul.f32 %v968, %v994
      %v997 = vmul.f32 %v985, %v994
      %v998 = vmul.f32 %v604, %v994
      %v999 = vmul.f32 %v628, %v994
      %v1000 = vmul.f32 %v969, %v994
      %v1001 = vmul.f32 %v986, %v994
      %1008 = vrot.lane.b32.xlu0 %v996, 80
      %v1009 = vpop.permute.xlu0 %1008
      %1010 = vrot.lane.b32.xlu0 %v997, 80
      %v1011 = vpop.permute.xlu0 %1010
      %1012 = vrot.lane.b32.xlu0 %v998, 80
      %v1013 = vpop.permute.xlu0 %1012
      %1014 = vrot.lane.b32.xlu0 %v999, 80
      %v1015 = vpop.permute.xlu0 %1014
      %1016 = vrot.lane.b32.xlu0 %v1000, 80
      %v1017 = vpop.permute.xlu0 %1016
      %1018 = vrot.lane.b32.xlu0 %v1001, 80
      %v1019 = vpop.permute.xlu0 %1018
      %v1020 = vsel %vm463, %v1009, %v1011
      %v1021 = vsel %vm463, %v1013, %v1015
      %v1022 = vsel %vm463, %v1017, %v1019
      %v1026 = vadd.f32 %v982, %v1020
      %v1027 = vadd.f32 %v983, %v1021
      %v1028 = vadd.f32 %v984, %v1022
      %v1029 = vld [vmem:[%s1 + $0x11] sm:$0x1]
      %v1030 = vlaneseq
      %v1031 = vshrl.u32 %v1030, 7
      %v1032 = vsub.s32 0, %v1031
      %v1033 = vrot.slane %v1029, %v1032
      %1035 = vrot.lane.b32.xlu0 %v1033, 120
      %v1036 = vpop.permute.xlu0 %1035
      %v1038 = vmul.f32 %v968, %v1036
      %v1039 = vmul.f32 %v985, %v1036
      %v1040 = vmul.f32 %v604, %v1036
      %v1041 = vmul.f32 %v628, %v1036
      %v1042 = vmul.f32 %v969, %v1036
      %v1043 = vmul.f32 %v986, %v1036
      %1050 = vrot.lane.b32.xlu0 %v1038, 32
      %v1051 = vpop.permute.xlu0 %1050
      %1052 = vrot.lane.b32.xlu0 %v1039, 32
      %v1053 = vpop.permute.xlu0 %1052
      %1054 = vrot.lane.b32.xlu0 %v1040, 32
      %v1055 = vpop.permute.xlu0 %1054
      %1056 = vrot.lane.b32.xlu0 %v1041, 32
      %v1057 = vpop.permute.xlu0 %1056
      %1058 = vrot.lane.b32.xlu0 %v1042, 32
      %v1059 = vpop.permute.xlu0 %1058
      %1060 = vrot.lane.b32.xlu0 %v1043, 32
      %v1061 = vpop.permute.xlu0 %1060
      %v1062 = vsel %vm828, %v1051, %v1053
      %v1063 = vsel %vm828, %v1055, %v1057
      %v1064 = vsel %vm828, %v1059, %v1061
      %v1068 = vadd.f32 %v1026, %v1062
      %v1069 = vadd.f32 %v1027, %v1063
      %v1070 = vadd.f32 %v1028, %v1064
      %v1071 = vld [vmem:[%s2 + $0x1] sm:$0x1]
      %v1072 = vlaneseq
      %v1073 = vshrl.u32 %v1072, 7
      %v1074 = vsub.s32 0, %v1073
      %v1075 = vrot.slane %v1071, %v1074
      %1077 = vrot.lane.b32.xlu0 %v1075, 24
      %v1078 = vpop.permute.xlu0 %1077
      %v1080 = vadd.f32 %v1068, %v1078
      %v1081 = vadd.f32 %v1069, %v1078
      %v1082 = vadd.f32 %v1070, %v1078
      %v1083 = vmax.f32 %v1080, 0.0
      %v1084 = vmax.f32 %v1081, 0.0
      %v1085 = vmax.f32 %v1082, 0.0
      %v1086 = vld [vmem:[%s354] sm:$0xff]
      %v1087 = vld [vmem:[%s1 + $0x12] sm:$0x1]
      %v1088 = vlaneseq
      %v1089 = vshrl.u32 %v1088, 7
      %v1090 = vsub.s32 0, %v1089
      %v1091 = vrot.slane %v1087, %v1090
      %v1092 = vmul.f32 %v1086, %v1091
      %v1093 = vmul.f32 %v733, %v1091
      %v1094 = vadd.f32 %v1092, 0.0
      %v1095 = vadd.f32 %v1093, 0.0
      %v1096 = vld [vmem:[%s354 + $0x8] sm:$0xff]
      %v1097 = vld [vmem:[%s1 + $0x13] sm:$0x1]
      %v1098 = vlaneseq
      %v1099 = vshrl.u32 %v1098, 7
      %v1100 = vsub.s32 0, %v1099
      %v1101 = vrot.slane %v1097, %v1100
      %1103 = vrot.lane.b32.xlu0 %v1101, 72
      %v1104 = vpop.permute.xlu0 %1103
      %v1106 = vmul.f32 %v1086, %v1104
      %v1107 = vmul.f32 %v1096, %v1104
      %v1108 = vmul.f32 %v733, %v1104
      %v1109 = vmul.f32 %v751, %v1104
      %1114 = vrot.lane.b32.xlu0 %v1106, 56
      %v1115 = vpop.permute.xlu0 %1114
      %1116 = vrot.lane.b32.xlu0 %v1107, 56
      %v1117 = vpop.permute.xlu0 %1116
      %1118 = vrot.lane.b32.xlu0 %v1108, 56
      %v1119 = vpop.permute.xlu0 %1118
      %1120 = vrot.lane.b32.xlu0 %v1109, 56
      %v1121 = vpop.permute.xlu0 %1120
      %vm1122 = vcmask 457728
      %v1123 = vsel %vm1122, %v1115, %v1117
      %v1124 = vsel %vm1122, %v1119, %v1121
      %v1127 = vadd.f32 %v1094, %v1123
      %v1128 = vadd.f32 %v1095, %v1124
      %v1129 = vld [vmem:[%s1 + $0x14] sm:$0x1]
      %v1130 = vlaneseq
      %v1131 = vshrl.u32 %v1130, 7
      %v1132 = vsub.s32 0, %v1131
      %v1133 = vrot.slane %v1129, %v1132
      %1135 = vrot.lane.b32.xlu0 %v1133, 16
      %v1136 = vpop.permute.xlu0 %1135
      %v1138 = vmul.f32 %v1096, %v1136
      %v1139 = vmul.f32 %v751, %v1136
      %1142 = vrot.lane.b32.xlu0 %v1138, 112
      %v1143 = vpop.permute.xlu0 %1142
      %1144 = vrot.lane.b32.xlu0 %v1139, 112
      %v1145 = vpop.permute.xlu0 %1144
      %v1148 = vadd.f32 %v1127, %v1143
      %v1149 = vadd.f32 %v1128, %v1145
      %v1150 = vld [vmem:[%s1 + $0x15] sm:$0x1]
      %v1151 = vlaneseq
      %v1152 = vshrl.u32 %v1151, 7
      %v1153 = vsub.s32 0, %v1152
      %v1154 = vrot.slane %v1150, %v1153
      %v1155 = vmul.f32 %v360, %v1154
      %v1156 = vmul.f32 %v362, %v1154
      %v1157 = vmul.f32 %v364, %v1154
      %vm1161 = vcmask 1045504
      %v1162 = vrot.slane %v1155, 2
      %v1163 = vrot.slane %v1156, 2
      %v1164 = vsel %vm1161, %v1162, %v1163
      %v1165 = vrot.slane %v1157, 2
      %v1166 = vsel %vm1161, %v1163, %v1165
      %v1169 = vadd.f32 %v1148, %v1164
      %v1170 = vadd.f32 %v1149, %v1166
      %v1171 = vld [vmem:[%s1 + $0x16] sm:$0x1]
      %v1172 = vlaneseq
      %v1173 = vshrl.u32 %v1172, 7
      %v1174 = vsub.s32 0, %v1173
      %v1175 = vrot.slane %v1171, %v1174
      %1177 = vrot.lane.b32.xlu0 %v1175, 72
      %v1178 = vpop.permute.xlu0 %1177
      %v1180 = vmul.f32 %v360, %v1178
      %v1181 = vmul.f32 %v361, %v1178
      %v1182 = vmul.f32 %v362, %v1178
      %v1183 = vmul.f32 %v363, %v1178
      %v1184 = vmul.f32 %v364, %v1178
      %v1185 = vmul.f32 %v365, %v1178
      %v1192 = vrot.slane %v1180, 2
      %v1193 = vrot.slane %v1182, 2
      %v1194 = vsel %vm1161, %v1192, %v1193
      %v1195 = vrot.slane %v1181, 2
      %v1196 = vrot.slane %v1183, 2
      %v1197 = vsel %vm1161, %v1195, %v1196
      %v1198 = vrot.slane %v1184, 2
      %v1199 = vsel %vm1161, %v1193, %v1198
      %v1200 = vrot.slane %v1185, 2
      %v1201 = vsel %vm1161, %v1196, %v1200
      %1202 = vrot.lane.b32.xlu0 %v1194, 56
      %v1203 = vpop.permute.xlu0 %1202
      %1204 = vrot.lane.b32.xlu0 %v1197, 56
      %v1205 = vpop.permute.xlu0 %1204
      %1206 = vrot.lane.b32.xlu0 %v1199, 56
      %v1207 = vpop.permute.xlu0 %1206
      %1208 = vrot.lane.b32.xlu0 %v1201, 56
      %v1209 = vpop.permute.xlu0 %1208
      %v1210 = vsel %vm1122, %v1203, %v1205
      %v1211 = vsel %vm1122, %v1207, %v1209
      %v1214 = vadd.f32 %v1169, %v1210
      %v1215 = vadd.f32 %v1170, %v1211
      %v1216 = vld [vmem:[%s1 + $0x17] sm:$0x1]
      %v1217 = vlaneseq
      %v1218 = vshrl.u32 %v1217, 7
      %v1219 = vsub.s32 0, %v1218
      %v1220 = vrot.slane %v1216, %v1219
      %1222 = vrot.lane.b32.xlu0 %v1220, 16
      %v1223 = vpop.permute.xlu0 %1222
      %v1225 = vmul.f32 %v361, %v1223
      %v1226 = vmul.f32 %v363, %v1223
      %v1227 = vmul.f32 %v365, %v1223
      %v1231 = vrot.slane %v1225, 2
      %v1232 = vrot.slane %v1226, 2
      %v1233 = vsel %vm1161, %v1231, %v1232
      %v1234 = vrot.slane %v1227, 2
      %v1235 = vsel %vm1161, %v1232, %v1234
      %1236 = vrot.lane.b32.xlu0 %v1233, 112
      %v1237 = vpop.permute.xlu0 %1236
      %1238 = vrot.lane.b32.xlu0 %v1235, 112
      %v1239 = vpop.permute.xlu0 %1238
      %v1242 = vadd.f32 %v1214, %v1237
      %v1243 = vadd.f32 %v1215, %v1239
      %v1244 = vld [vmem:[%s354 + $0x40] sm:$0xf0]
      %v1245 = vld [vmem:[%s354 + $0x50] sm:$0xff]
      %v1246 = vld [vmem:[%s354 + $0x60] sm:$0xf]
      %v1247 = vld [vmem:[%s1 + $0x18] sm:$0x1]
      %v1248 = vlaneseq
      %v1249 = vshrl.u32 %v1248, 7
      %v1250 = vsub.s32 0, %v1249
      %v1251 = vrot.slane %v1247, %v1250
      %v1252 = vmul.f32 %v1244, %v1251
      %v1253 = vmul.f32 %v1245, %v1251
      %v1254 = vmul.f32 %v1246, %v1251
      %v1258 = vrot.slane %v1252, 4
      %v1259 = vrot.slane %v1253, 4
      %v1260 = vsel %vm618, %v1258, %v1259
      %v1261 = vrot.slane %v1254, 4
      %v1262 = vsel %vm618, %v1259, %v1261
      %v1265 = vadd.f32 %v1242, %v1260
      %v1266 = vadd.f32 %v1243, %v1262
      %v1267 = vld [vmem:[%s354 + $0x48] sm:$0xf0]
      %v1268 = vld [vmem:[%s354 + $0x58] sm:$0xff]
      %v1269 = vld [vmem:[%s354 + $0x68] sm:$0xf]
      %v1270 = vld [vmem:[%s1 + $0x19] sm:$0x1]
      %v1271 = vlaneseq
      %v1272 = vshrl.u32 %v1271, 7
      %v1273 = vsub.s32 0, %v1272
      %v1274 = vrot.slane %v1270, %v1273
      %1276 = vrot.lane.b32.xlu0 %v1274, 72
      %v1277 = vpop.permute.xlu0 %1276
      %v1279 = vmul.f32 %v1244, %v1277
      %v1280 = vmul.f32 %v1267, %v1277
      %v1281 = vmul.f32 %v1245, %v1277
      %v1282 = vmul.f32 %v1268, %v1277
      %v1283 = vmul.f32 %v1246, %v1277
      %v1284 = vmul.f32 %v1269, %v1277
      %v1291 = vrot.slane %v1279, 4
      %v1292 = vrot.slane %v1281, 4
      %v1293 = vsel %vm618, %v1291, %v1292
      %v1294 = vrot.slane %v1280, 4
      %v1295 = vrot.slane %v1282, 4
      %v1296 = vsel %vm618, %v1294, %v1295
      %v1297 = vrot.slane %v1283, 4
      %v1298 = vsel %vm618, %v1292, %v1297
      %v1299 = vrot.slane %v1284, 4
      %v1300 = vsel %vm618, %v1295, %v1299
      %1301 = vrot.lane.b32.xlu0 %v1293, 56
      %v1302 = vpop.permute.xlu0 %1301
      %1303 = vrot.lane.b32.xlu0 %v1296, 56
      %v1304 = vpop.permute.xlu0 %1303
      %1305 = vrot.lane.b32.xlu0 %v1298, 56
      %v1306 = vpop.permute.xlu0 %1305
      %1307 = vrot.lane.b32.xlu0 %v1300, 56
      %v1308 = vpop.permute.xlu0 %1307
      %v1309 = vsel %vm1122, %v1302, %v1304
      %v1310 = vsel %vm1122, %v1306, %v1308
      %v1313 = vadd.f32 %v1265, %v1309
      %v1314 = vadd.f32 %v1266, %v1310
      %v1315 = vld [vmem:[%s1 + $0x1a] sm:$0x1]
      %v1316 = vlaneseq
      %v1317 = vshrl.u32 %v1316, 7
      %v1318 = vsub.s32 0, %v1317
      %v1319 = vrot.slane %v1315, %v1318
      %1321 = vrot.lane.b32.xlu0 %v1319, 16
      %v1322 = vpop.permute.xlu0 %1321
      %v1324 = vmul.f32 %v1267, %v1322
      %v1325 = vmul.f32 %v1268, %v1322
      %v1326 = vmul.f32 %v1269, %v1322
      %v1330 = vrot.slane %v1324, 4
      %v1331 = vrot.slane %v1325, 4
      %v1332 = vsel %vm618, %v1330, %v1331
      %v1333 = vrot.slane %v1326, 4
      %v1334 = vsel %vm618, %v1331, %v1333
      %1335 = vrot.lane.b32.xlu0 %v1332, 112
      %v1336 = vpop.permute.xlu0 %1335
      %1337 = vrot.lane.b32.xlu0 %v1334, 112
      %v1338 = vpop.permute.xlu0 %1337
      %v1341 = vadd.f32 %v1313, %v1336
      %v1342 = vadd.f32 %v1314, %v1338
      %v1343 = vld [vmem:[%s2 + $0x2] sm:$0x1]
      %v1344 = vlaneseq
      %v1345 = vshrl.u32 %v1344, 7
      %v1346 = vsub.s32 0, %v1345
      %v1347 = vrot.slane %v1343, %v1346
      %v1348 = vadd.f32 %v1341, %v1347
      %v1349 = vadd.f32 %v1342, %v1347
      %v1350 = vmax.f32 %v1348, 0.0
      %v1351 = vmax.f32 %v1349, 0.0
      %1358 = vrot.lane.b32.xlu0 %v360, 56
      %v1359 = vpop.permute.xlu0 %1358
      %1360 = vrot.lane.b32.xlu0 %v361, 56
      %v1361 = vpop.permute.xlu0 %1360
      %1362 = vrot.lane.b32.xlu0 %v362, 56
      %v1363 = vpop.permute.xlu0 %1362
      %1364 = vrot.lane.b32.xlu0 %v363, 56
      %v1365 = vpop.permute.xlu0 %1364
      %1366 = vrot.lane.b32.xlu0 %v364, 56
      %v1367 = vpop.permute.xlu0 %1366
      %1368 = vrot.lane.b32.xlu0 %v365, 56
      %v1369 = vpop.permute.xlu0 %1368
      %v1370 = vsel %vm1122, %v1359, %v1361
      %v1371 = vsel %vm1122, %v1363, %v1365
      %v1372 = vsel %vm1122, %v1367, %v1369
      %v1379 = vrot.slane %v729, 2
      %v1380 = vrot.slane %v730, 2
      %v1381 = vsel %vm1161, %v1379, %v1380
      %v1382 = vrot.slane %v731, 2
      %v1383 = vsel %vm1161, %v1380, %v1382
      %1384 = vrot.lane.b32.xlu0 %v1381, 16
      %v1385 = vpop.permute.xlu0 %1384
      %1386 = vrot.lane.b32.xlu0 %v1383, 16
      %v1387 = vpop.permute.xlu0 %1386
      %1388 = vrot.lane.b32.xlu0 %v1382, 16
      %v1389 = vpop.permute.xlu0 %1388
      %v1396 = vrot.slane %v1083, 4
      %v1397 = vrot.slane %v1084, 4
      %v1398 = vsel %vm618, %v1396, %v1397
      %v1399 = vrot.slane %v1085, 4
      %v1400 = vsel %vm618, %v1397, %v1399
      %1401 = vrot.lane.b32.xlu0 %v1398, 104
      %v1402 = vpop.permute.xlu0 %1401
      %1403 = vrot.lane.b32.xlu0 %v1400, 104
      %v1404 = vpop.permute.xlu0 %1403
      %1405 = vrot.lane.b32.xlu0 %v1399, 104
      %v1406 = vpop.permute.xlu0 %1405
      %v1412 = vrot.slane %v1350, 6
      %v1413 = vrot.slane %v1351, 6
      %v1414 = vsel %vm488, %v1412, %v1413
      %1415 = vrot.lane.b32.xlu0 %v1412, 64
      %v1416 = vpop.permute.xlu0 %1415
      %1417 = vrot.lane.b32.xlu0 %v1414, 64
      %v1418 = vpop.permute.xlu0 %1417
      %1419 = vrot.lane.b32.xlu0 %v1413, 64
      %v1420 = vpop.permute.xlu0 %1419
      %vm1424 = vcmask 523264
      %v1425 = vsel %vm1424, %v1370, %v1385
      %v1426 = vsel %vm1424, %v1371, %v1387
      %v1427 = vsel %vm1424, %v1372, %v1389
      %v1428 = vsel %vm1424, %v1402, %v1416
      %v1429 = vsel %vm1424, %v1404, %v1418
      %v1430 = vsel %vm1424, %v1406, %v1420
      %v1431 = vld [vmem:[%s3] sm:$0xff]
      %v1432 = vld [vmem:[%s3 + $0x8] sm:$0xff]
      %v1433 = vld [vmem:[%s3 + $0x10] sm:$0xff]
      %v1434 = vld [vmem:[%s3 + $0x18] sm:$0xff]
      %v1435 = vld [vmem:[%s3 + $0x20] sm:$0xff]
      %v1436 = vld [vmem:[%s3 + $0x28] sm:$0xff]
      %v1437 = vld [vmem:[%s3 + $0x30] sm:$0xff]
      %v1438 = vld [vmem:[%s3 + $0x38] sm:$0xff]
      %v1439 = vld [vmem:[%s3 + $0x40] sm:$0xff]
      %v1440 = vld [vmem:[%s3 + $0x48] sm:$0xff]
      %v1441 = vld [vmem:[%s3 + $0x50] sm:$0xff]
      %v1442 = vld [vmem:[%s3 + $0x58] sm:$0xff]
      %v1443 = vld [vmem:[%s3 + $0x60] sm:$0xff]
      %v1444 = vld [vmem:[%s3 + $0x68] sm:$0xff]
      %v1445 = vld [vmem:[%s3 + $0x70] sm:$0xff]
      %v1446 = vld [vmem:[%s3 + $0x78] sm:$0xff]
      %v1447 = vld [vmem:[%s3 + $0x80] sm:$0xff]
      %v1448 = vld [vmem:[%s3 + $0x88] sm:$0xff]
      %v1449 = vld [vmem:[%s3 + $0x90] sm:$0xff]
      %v1450 = vld [vmem:[%s3 + $0x98] sm:$0xff]
      %v1451 = vld [vmem:[%s3 + $0xa0] sm:$0xff]
      %v1452 = vld [vmem:[%s3 + $0xa8] sm:$0xff]
      %v1453 = vld [vmem:[%s3 + $0xb0] sm:$0xff]
      %v1454 = vld [vmem:[%s3 + $0xb8] sm:$0xff]
      %v1455 = vld [vmem:[%s3 + $0xc0] sm:$0xff]
      %v1456 = vld [vmem:[%s3 + $0xc8] sm:$0xff]
      %v1457 = vld [vmem:[%s3 + $0xd0] sm:$0xff]
      %v1458 = vld [vmem:[%s3 + $0xd8] sm:$0xff]
      %v1459 = vld [vmem:[%s3 + $0xe0] sm:$0xff]
      %v1460 = vld [vmem:[%s3 + $0xe8] sm:$0xff]
      %v1461 = vld [vmem:[%s3 + $0xf0] sm:$0xff]
      %v1462 = vld [vmem:[%s3 + $0xf8] sm:$0xff]
      %v1463 = vld [vmem:[%s3 + $0x100] sm:$0xff]
      %v1464 = vld [vmem:[%s3 + $0x108] sm:$0xff]
      %v1465 = vld [vmem:[%s3 + $0x110] sm:$0xff]
      %v1466 = vld [vmem:[%s3 + $0x118] sm:$0xff]
      %v1467 = vld [vmem:[%s3 + $0x120] sm:$0xff]
      %v1468 = vld [vmem:[%s3 + $0x128] sm:$0xff]
      %v1469 = vld [vmem:[%s3 + $0x130] sm:$0xff]
      %v1470 = vld [vmem:[%s3 + $0x138] sm:$0xff]
      %v1471 = vld [vmem:[%s3 + $0x140] sm:$0xff]
      %v1472 = vld [vmem:[%s3 + $0x148] sm:$0xff]
      %v1473 = vld [vmem:[%s3 + $0x150] sm:$0xff]
      %v1474 = vld [vmem:[%s3 + $0x158] sm:$0xff]
      %v1475 = vld [vmem:[%s3 + $0x160] sm:$0xff]
      %v1476 = vld [vmem:[%s3 + $0x168] sm:$0xff]
      %v1477 = vld [vmem:[%s3 + $0x170] sm:$0xff]
      %v1478 = vld [vmem:[%s3 + $0x178] sm:$0xff]
      %v1479 = vld [vmem:[%s3 + $0x180] sm:$0xff]
      %v1480 = vld [vmem:[%s3 + $0x188] sm:$0xff]
      %v1481 = vld [vmem:[%s3 + $0x190] sm:$0xff]
      %v1482 = vld [vmem:[%s3 + $0x198] sm:$0xff]
      %v1483 = vld [vmem:[%s3 + $0x1a0] sm:$0xff]
      %v1484 = vld [vmem:[%s3 + $0x1a8] sm:$0xff]
      %v1485 = vld [vmem:[%s3 + $0x1b0] sm:$0xff]
      %v1486 = vld [vmem:[%s3 + $0x1b8] sm:$0xff]
      %v1487 = vld [vmem:[%s3 + $0x1c0] sm:$0xff]
      %v1488 = vld [vmem:[%s3 + $0x1c8] sm:$0xff]
      %v1489 = vld [vmem:[%s3 + $0x1d0] sm:$0xff]
      %v1490 = vld [vmem:[%s3 + $0x1d8] sm:$0xff]
      %v1491 = vld [vmem:[%s3 + $0x1e0] sm:$0xff]
      %v1492 = vld [vmem:[%s3 + $0x1e8] sm:$0xff]
      %v1493 = vld [vmem:[%s3 + $0x1f0] sm:$0xff]
      %v1494 = vld [vmem:[%s3 + $0x1f8] sm:$0xff]
      %v1495 = vld [vmem:[%s3 + $0x200] sm:$0xff]
      %v1496 = vld [vmem:[%s3 + $0x208] sm:$0xff]
      %v1497 = vld [vmem:[%s3 + $0x210] sm:$0xff]
      %v1498 = vld [vmem:[%s3 + $0x218] sm:$0xff]
      %v1499 = vld [vmem:[%s3 + $0x220] sm:$0xff]
      %v1500 = vld [vmem:[%s3 + $0x228] sm:$0xff]
      %v1501 = vld [vmem:[%s3 + $0x230] sm:$0xff]
      %v1502 = vld [vmem:[%s3 + $0x238] sm:$0xff]
      %v1503 = vld [vmem:[%s3 + $0x240] sm:$0xff]
      %v1504 = vld [vmem:[%s3 + $0x248] sm:$0xff]
      %v1505 = vld [vmem:[%s3 + $0x250] sm:$0xff]
      %v1506 = vld [vmem:[%s3 + $0x258] sm:$0xff]
      %v1507 = vld [vmem:[%s3 + $0x260] sm:$0xff]
      %v1508 = vld [vmem:[%s3 + $0x268] sm:$0xff]
      %v1509 = vld [vmem:[%s3 + $0x270] sm:$0xff]
      %v1510 = vld [vmem:[%s3 + $0x278] sm:$0xff]
      %v1511 = vld [vmem:[%s3 + $0x280] sm:$0xff]
      %v1512 = vld [vmem:[%s3 + $0x288] sm:$0xff]
      %v1513 = vld [vmem:[%s3 + $0x290] sm:$0xff]
      %v1514 = vld [vmem:[%s3 + $0x298] sm:$0xff]
      %v1515 = vld [vmem:[%s3 + $0x2a0] sm:$0xff]
      %v1516 = vld [vmem:[%s3 + $0x2a8] sm:$0xff]
      %v1517 = vld [vmem:[%s3 + $0x2b0] sm:$0xff]
      %v1518 = vld [vmem:[%s3 + $0x2b8] sm:$0xff]
      %v1519 = vld [vmem:[%s3 + $0x2c0] sm:$0xff]
      %v1520 = vld [vmem:[%s3 + $0x2c8] sm:$0xff]
      %v1521 = vld [vmem:[%s3 + $0x2d0] sm:$0xff]
      %v1522 = vld [vmem:[%s3 + $0x2d8] sm:$0xff]
      %v1523 = vld [vmem:[%s3 + $0x2e0] sm:$0xff]
      %v1524 = vld [vmem:[%s3 + $0x2e8] sm:$0xff]
      %v1525 = vld [vmem:[%s3 + $0x2f0] sm:$0xff]
      %v1526 = vld [vmem:[%s3 + $0x2f8] sm:$0xff]
      %v1527 = vld [vmem:[%s3 + $0x300] sm:$0xff]
      %v1528 = vld [vmem:[%s3 + $0x308] sm:$0xff]
      %v1529 = vld [vmem:[%s3 + $0x310] sm:$0xff]
      %v1530 = vld [vmem:[%s3 + $0x318] sm:$0xff]
      %v1531 = vld [vmem:[%s3 + $0x320] sm:$0xff]
      %v1532 = vld [vmem:[%s3 + $0x328] sm:$0xff]
      %v1533 = vld [vmem:[%s3 + $0x330] sm:$0xff]
      %v1534 = vld [vmem:[%s3 + $0x338] sm:$0xff]
      %v1535 = vld [vmem:[%s3 + $0x340] sm:$0xff]
      %v1536 = vld [vmem:[%s3 + $0x348] sm:$0xff]
      %v1537 = vld [vmem:[%s3 + $0x350] sm:$0xff]
      %v1538 = vld [vmem:[%s3 + $0x358] sm:$0xff]
      %v1539 = vld [vmem:[%s3 + $0x360] sm:$0xff]
      %v1540 = vld [vmem:[%s3 + $0x368] sm:$0xff]
      %v1541 = vld [vmem:[%s3 + $0x370] sm:$0xff]
      %v1542 = vld [vmem:[%s3 + $0x378] sm:$0xff]
      %v1543 = vld [vmem:[%s3 + $0x380] sm:$0xff]
      %v1544 = vld [vmem:[%s3 + $0x388] sm:$0xff]
      %v1545 = vld [vmem:[%s3 + $0x390] sm:$0xff]
      %v1546 = vld [vmem:[%s3 + $0x398] sm:$0xff]
      %v1547 = vld [vmem:[%s3 + $0x3a0] sm:$0xff]
      %v1548 = vld [vmem:[%s3 + $0x3a8] sm:$0xff]
      %v1549 = vld [vmem:[%s3 + $0x3b0] sm:$0xff]
      %v1550 = vld [vmem:[%s3 + $0x3b8] sm:$0xff]
      %v1551 = vld [vmem:[%s3 + $0x3c0] sm:$0xff]
      %v1552 = vld [vmem:[%s3 + $0x3c8] sm:$0xff]
      %v1553 = vld [vmem:[%s3 + $0x3d0] sm:$0xff]
      %v1554 = vld [vmem:[%s3 + $0x3d8] sm:$0xff]
      %v1555 = vld [vmem:[%s3 + $0x3e0] sm:$0xff]
      %v1556 = vld [vmem:[%s3 + $0x3e8] sm:$0xff]
      %v1557 = vld [vmem:[%s3 + $0x3f0] sm:$0xff]
      %v1558 = vld [vmem:[%s3 + $0x3f8] sm:$0xff]
      %v1559 = vld [vmem:[%s4] sm:$0xf]
      %v1561 = vlaneseq
      %v1562 = vshrl.u32 %v1561, 7
      %v1563 = vsub.s32 0, %v1562
      %v1564 = vrot.slane %v1559, %v1563
      %v1565 = vlaneseq
      %v1566 = vshrl.u32 %v1565, 7
      %v1567 = vsub.s32 1, %v1566
      %v1568 = vrot.slane %v1559, %v1567
      %v1569 = vlaneseq
      %v1570 = vshrl.u32 %v1569, 7
      %v1571 = vsub.s32 2, %v1570
      %v1572 = vrot.slane %v1559, %v1571
      %v1573 = vlaneseq
      %v1574 = vshrl.u32 %v1573, 7
      %v1575 = vsub.s32 3, %v1574
      %v1576 = vrot.slane %v1559, %v1575
      %v1587 = vrot.slane %v1425, 2
      %v1588 = vrot.slane %v1426, 2
      %v1589 = vsel %vm1161, %v1587, %v1588
      %v1590 = vrot.slane %v1428, 2
      %v1591 = vrot.slane %v1429, 2
      %v1592 = vsel %vm1161, %v1590, %v1591
      %v1593 = vrot.slane %v1427, 2
      %v1594 = vsel %vm1161, %v1588, %v1593
      %v1595 = vrot.slane %v1430, 2
      %v1596 = vsel %vm1161, %v1591, %v1595
      %1601 = vmatprep.subr.mxu0 %v1492
      %1602 = vmatpush1.msra.mxu0 %v1491
      %1603 = vmatprep.subr.mxu0 %v1488
      %1604 = vmatpush1.msra.mxu0 %v1487
      %1605 = vmatprep.subr.mxu0 %v1484
      %1606 = vmatpush1.msra.mxu0 %v1483
      %1607 = vmatprep.subr.mxu0 %v1480
      %1608 = vmatpush1.msra.mxu0 %v1479
      %1609 = vmatprep.subr.mxu0 %v1476
      %1610 = vmatpush1.msra.mxu0 %v1475
      %1611 = vmatprep.subr.mxu0 %v1472
      %1612 = vmatpush1.msra.mxu0 %v1471
      %1613 = vmatprep.subr.mxu0 %v1468
      %1614 = vmatpush1.msra.mxu0 %v1467
      %1615 = vmatprep.subr.mxu0 %v1464
      %1616 = vmatpush1.msra.mxu0 %v1463
      %1617 = vmatprep.subr.mxu0 %v1460
      %1618 = vmatpush1.msra.mxu0 %v1459
      %1619 = vmatprep.subr.mxu0 %v1456
      %1620 = vmatpush1.msra.mxu0 %v1455
      %1621 = vmatprep.subr.mxu0 %v1452
      %1622 = vmatpush1.msra.mxu0 %v1451
      %1623 = vmatprep.subr.mxu0 %v1448
      %1624 = vmatpush1.msra.mxu0 %v1447
      %1625 = vmatprep.subr.mxu0 %v1444
      %1626 = vmatpush1.msra.mxu0 %v1443
      %1627 = vmatprep.subr.mxu0 %v1440
      %1628 = vmatpush1.msra.mxu0 %v1439
      %1629 = vmatprep.subr.mxu0 %v1436
      %1630 = vmatpush1.msra.mxu0 %v1435
      %1631 = vmatprep.subr.mxu0 %v1432
      %1632 = vmatpush1.msra.mxu0 %v1431
      %1633 = vmatprep.subr.mxu0 %v1556
      %1634 = vmatpush2.msra.mxu0 %v1555
      %1635 = vmatprep.subr.mxu0 %v1552
      %1636 = vmatpush2.msra.mxu0 %v1551
      %1637 = vmatprep.subr.mxu0 %v1548
      %1638 = vmatpush2.msra.mxu0 %v1547
      %1639 = vmatprep.subr.mxu0 %v1544
      %1640 = vmatpush2.msra.mxu0 %v1543
      %1641 = vmatprep.subr.mxu0 %v1540
      %1642 = vmatpush2.msra.mxu0 %v1539
      %1643 = vmatprep.subr.mxu0 %v1536
      %1644 = vmatpush2.msra.mxu0 %v1535
      %1645 = vmatprep.subr.mxu0 %v1532
      %1646 = vmatpush2.msra.mxu0 %v1531
      %1647 = vmatprep.subr.mxu0 %v1528
      %1648 = vmatpush2.msra.mxu0 %v1527
      %1649 = vmatprep.subr.mxu0 %v1524
      %1650 = vmatpush2.msra.mxu0 %v1523
      %1651 = vmatprep.subr.mxu0 %v1520
      %1652 = vmatpush2.msra.mxu0 %v1519
      %1653 = vmatprep.subr.mxu0 %v1516
      %1654 = vmatpush2.msra.mxu0 %v1515
      %1655 = vmatprep.subr.mxu0 %v1512
      %1656 = vmatpush2.msra.mxu0 %v1511
      %1657 = vmatprep.subr.mxu0 %v1508
      %1658 = vmatpush2.msra.mxu0 %v1507
      %1659 = vmatprep.subr.mxu0 %v1504
      %1660 = vmatpush2.msra.mxu0 %v1503
      %1661 = vmatprep.subr.mxu0 %v1500
      %1662 = vmatpush2.msra.mxu0 %v1499
      %1663 = vmatprep.subr.mxu0 %v1496
      %1664 = vmatpush2.msra.mxu0 %v1495
      %1665 = vmatprep.mubr.f32.mxu0 %v1592
      %1666 = vmatmul.mubr.f32.gmra.mxu0 %v1589
      %v1667 = vpop.f32.mrf.mxu0
      %v1668 = vadd.f32 %v1564, %v1667
      %v1669 = vpop.f32.mrf.mxu0
      %v1670 = vadd.f32 %v1568, %v1669
      %1671 = vmatprep.mubr.f32.mxu0 %v1596
      %1672 = vmatmul.mubr.f32.gmra.mxu0 %v1594
      %v1673 = vpop.f32.mrf.mxu0
      %v1674 = vadd.f32 %v1564, %v1673
      %v1675 = vpop.f32.mrf.mxu0
      %v1676 = vadd.f32 %v1568, %v1675
      %1677 = vdwg.mxu0
      %1678 = vmatprep.subr.mxu0 %v1494
      %1679 = vmatpush1.msra.mxu0 %v1493
      %1680 = vmatprep.subr.mxu0 %v1490
      %1681 = vmatpush1.msra.mxu0 %v1489
      %1682 = vmatprep.subr.mxu0 %v1486
      %1683 = vmatpush1.msra.mxu0 %v1485
      %1684 = vmatprep.subr.mxu0 %v1482
      %1685 = vmatpush1.msra.mxu0 %v1481
      %1686 = vmatprep.subr.mxu0 %v1478
      %1687 = vmatpush1.msra.mxu0 %v1477
      %1688 = vmatprep.subr.mxu0 %v1474
      %1689 = vmatpush1.msra.mxu0 %v1473
      %1690 = vmatprep.subr.mxu0 %v1470
      %1691 = vmatpush1.msra.mxu0 %v1469
      %1692 = vmatprep.subr.mxu0 %v1466
      %1693 = vmatpush1.msra.mxu0 %v1465
      %1694 = vmatprep.subr.mxu0 %v1462
      %1695 = vmatpush1.msra.mxu0 %v1461
      %1696 = vmatprep.subr.mxu0 %v1458
      %1697 = vmatpush1.msra.mxu0 %v1457
      %1698 = vmatprep.subr.mxu0 %v1454
      %1699 = vmatpush1.msra.mxu0 %v1453
      %1700 = vmatprep.subr.mxu0 %v1450
      %1701 = vmatpush1.msra.mxu0 %v1449
      %1702 = vmatprep.subr.mxu0 %v1446
      %1703 = vmatpush1.msra.mxu0 %v1445
      %1704 = vmatprep.subr.mxu0 %v1442
      %1705 = vmatpush1.msra.mxu0 %v1441
      %1706 = vmatprep.subr.mxu0 %v1438
      %1707 = vmatpush1.msra.mxu0 %v1437
      %1708 = vmatprep.subr.mxu0 %v1434
      %1709 = vmatpush1.msra.mxu0 %v1433
      %1710 = vmatprep.subr.mxu0 %v1558
      %1711 = vmatpush2.msra.mxu0 %v1557
      %1712 = vmatprep.subr.mxu0 %v1554
      %1713 = vmatpush2.msra.mxu0 %v1553
      %1714 = vmatprep.subr.mxu0 %v1550
      %1715 = vmatpush2.msra.mxu0 %v1549
      %1716 = vmatprep.subr.mxu0 %v1546
      %1717 = vmatpush2.msra.mxu0 %v1545
      %1718 = vmatprep.subr.mxu0 %v1542
      %1719 = vmatpush2.msra.mxu0 %v1541
      %1720 = vmatprep.subr.mxu0 %v1538
      %1721 = vmatpush2.msra.mxu0 %v1537
      %1722 = vmatprep.subr.mxu0 %v1534
      %1723 = vmatpush2.msra.mxu0 %v1533
      %1724 = vmatprep.subr.mxu0 %v1530
      %1725 = vmatpush2.msra.mxu0 %v1529
      %1726 = vmatprep.subr.mxu0 %v1526
      %1727 = vmatpush2.msra.mxu0 %v1525
      %1728 = vmatprep.subr.mxu0 %v1522
      %1729 = vmatpush2.msra.mxu0 %v1521
      %1730 = vmatprep.subr.mxu0 %v1518
      %1731 = vmatpush2.msra.mxu0 %v1517
      %1732 = vmatprep.subr.mxu0 %v1514
      %1733 = vmatpush2.msra.mxu0 %v1513
      %1734 = vmatprep.subr.mxu0 %v1510
      %1735 = vmatpush2.msra.mxu0 %v1509
      %1736 = vmatprep.subr.mxu0 %v1506
      %1737 = vmatpush2.msra.mxu0 %v1505
      %1738 = vmatprep.subr.mxu0 %v1502
      %1739 = vmatpush2.msra.mxu0 %v1501
      %1740 = vmatprep.subr.mxu0 %v1498
      %1741 = vmatpush2.msra.mxu0 %v1497
      %1742 = vmatprep.mubr.f32.mxu0 %v1592
      %1743 = vmatmul.mubr.f32.gmra.mxu0 %v1589
      %v1744 = vpop.f32.mrf.mxu0
      %v1745 = vadd.f32 %v1572, %v1744
      %v1746 = vpop.f32.mrf.mxu0
      %v1747 = vadd.f32 %v1576, %v1746
      %1748 = vmatprep.mubr.f32.mxu0 %v1596
      %1749 = vmatmul.mubr.f32.gmra.mxu0 %v1594
      %v1750 = vpop.f32.mrf.mxu0
      %v1751 = vadd.f32 %v1572, %v1750
      %v1752 = vpop.f32.mrf.mxu0
      %v1753 = vadd.f32 %v1576, %v1752
      %1754 = vdwg.mxu0
      %v1755 = vmax.f32 %v1668, 0.0
      %v1756 = vmax.f32 %v1670, 0.0
      %v1757 = vmax.f32 %v1745, 0.0
      %v1758 = vmax.f32 %v1747, 0.0
      %v1759 = vmax.f32 %v1674, 0.0
      %v1760 = vmax.f32 %v1676, 0.0
      %v1761 = vmax.f32 %v1751, 0.0
      %v1762 = vmax.f32 %v1753, 0.0
      %v1763 = vrot.slane %v360, 2
      %v1764 = vrot.slane %v362, 2
      %v1765 = vsel %vm1161, %v1763, %v1764
      %v1766 = vrot.slane %v361, 2
      %v1767 = vrot.slane %v363, 2
      %v1768 = vsel %vm1161, %v1766, %v1767
      %v1769 = vrot.slane %v364, 2
      %v1770 = vsel %vm1161, %v1764, %v1769
      %v1771 = vrot.slane %v365, 2
      %v1772 = vsel %vm1161, %v1767, %v1771
      %vm1777 = vcmask 1048128
      %v1778 = vsel %vm1777, %v1765, 0.0
      %v1779 = vsel %vm1777, %v1770, 0.0
      %v1780 = vadd.f32 %v1778, %v1779
      %v1781 = vrot.slane %v1780, 4
      %v1782 = vadd.f32 %v1780, %v1781
      %v1783 = vrot.slane %v1782, 2
      %v1784 = vadd.f32 %v1782, %v1783
      %v1785 = vrot.slane %v1784, 1
      %v1786 = vadd.f32 %v1784, %v1785
      %vm1787 = vcmask 64512
      %v1788 = vsel %vm1787, %v1768, 0.0
      %v1789 = vsel %vm1787, %v1772, 0.0
      %v1790 = vadd.f32 %v1788, %v1789
      %v1791 = vrot.slane %v1790, 4
      %v1792 = vadd.f32 %v1790, %v1791
      %v1793 = vrot.slane %v1792, 2
      %v1794 = vadd.f32 %v1792, %v1793
      %v1795 = vrot.slane %v1794, 1
      %v1796 = vadd.f32 %v1794, %v1795
      %v1797 = vrcp.pop 16.0
      %v1798 = vmul.f32 %v1786, %v1797
      %v1799 = vmul.f32 %v1796, %v1797
      %v1800 = vld [vmem:[%s5] sm:$0xff]
      %v1801 = vld [vmem:[%s5 + $0x8] sm:$0xff]
      %v1802 = vld [vmem:[%s5 + $0x10] sm:$0xff]
      %v1803 = vld [vmem:[%s5 + $0x18] sm:$0xff]
      %v1804 = vld [vmem:[%s5 + $0x20] sm:$0xff]
      %v1805 = vld [vmem:[%s5 + $0x28] sm:$0xff]
      %v1806 = vld [vmem:[%s5 + $0x30] sm:$0xff]
      %v1807 = vld [vmem:[%s5 + $0x38] sm:$0xff]
      %v1808 = vld [vmem:[%s6] sm:$0x1]
      %1811 = vrot.lane.b32.xlu0 %v1798, 56
      %v1812 = vpop.permute.xlu0 %1811
      %1813 = vrot.lane.b32.xlu0 %v1799, 56
      %v1814 = vpop.permute.xlu0 %1813
      %v1815 = vsel %vm1122, %v1812, %v1814
      %v1816 = vsel %vm1424, %v1815, 0
      %1818 = vmatprep.subr.mxu0 0.0
      %1819 = vmatpush1.msra.mxu0 0.0
      %1820 = vmatprep.subr.mxu0 0.0
      %1821 = vmatpush1.msra.mxu0 0.0
      %1822 = vmatprep.subr.mxu0 0.0
      %1823 = vmatpush1.msra.mxu0 0.0
      %1824 = vmatprep.subr.mxu0 0.0
      %1825 = vmatpush1.msra.mxu0 0.0
      %1826 = vmatprep.subr.mxu0 0.0
      %1827 = vmatpush1.msra.mxu0 0.0
      %1828 = vmatprep.subr.mxu0 0.0
      %1829 = vmatpush1.msra.mxu0 0.0
      %1830 = vmatprep.subr.mxu0 0.0
      %1831 = vmatpush1.msra.mxu0 0.0
      %1832 = vmatprep.subr.mxu0 0.0
      %1833 = vmatpush1.msra.mxu0 0.0
      %1834 = vmatprep.subr.mxu0 0.0
      %1835 = vmatpush1.msra.mxu0 %v1807
      %1836 = vmatprep.subr.mxu0 0.0
      %1837 = vmatpush1.msra.mxu0 %v1806
      %1838 = vmatprep.subr.mxu0 0.0
      %1839 = vmatpush1.msra.mxu0 %v1805
      %1840 = vmatprep.subr.mxu0 0.0
      %1841 = vmatpush1.msra.mxu0 %v1804
      %1842 = vmatprep.subr.mxu0 0.0
      %1843 = vmatpush1.msra.mxu0 %v1803
      %1844 = vmatprep.subr.mxu0 0.0
      %1845 = vmatpush1.msra.mxu0 %v1802
      %1846 = vmatprep.subr.mxu0 0.0
      %1847 = vmatpush1.msra.mxu0 %v1801
      %1848 = vmatprep.subr.mxu0 0.0
      %1849 = vmatpush1.msra.mxu0 %v1800
      %1850 = vmatprep.subr.mxu0 0.0
      %1851 = vmatpush2.msra.mxu0 0.0
      %1852 = vmatprep.subr.mxu0 0.0
      %1853 = vmatpush2.msra.mxu0 0.0
      %1854 = vmatprep.subr.mxu0 0.0
      %1855 = vmatpush2.msra.mxu0 0.0
      %1856 = vmatprep.subr.mxu0 0.0
      %1857 = vmatpush2.msra.mxu0 0.0
      %1858 = vmatprep.subr.mxu0 0.0
      %1859 = vmatpush2.msra.mxu0 0.0
      %1860 = vmatprep.subr.mxu0 0.0
      %1861 = vmatpush2.msra.mxu0 0.0
      %1862 = vmatprep.subr.mxu0 0.0
      %1863 = vmatpush2.msra.mxu0 0.0
      %1864 = vmatprep.subr.mxu0 0.0
      %1865 = vmatpush2.msra.mxu0 0.0
      %1866 = vmatprep.subr.mxu0 0.0
      %1867 = vmatpush2.msra.mxu0 0.0
      %1868 = vmatprep.subr.mxu0 0.0
      %1869 = vmatpush2.msra.mxu0 0.0
      %1870 = vmatprep.subr.mxu0 0.0
      %1871 = vmatpush2.msra.mxu0 0.0
      %1872 = vmatprep.subr.mxu0 0.0
      %1873 = vmatpush2.msra.mxu0 0.0
      %1874 = vmatprep.subr.mxu0 0.0
      %1875 = vmatpush2.msra.mxu0 0.0
      %1876 = vmatprep.subr.mxu0 0.0
      %1877 = vmatpush2.msra.mxu0 0.0
      %1878 = vmatprep.subr.mxu0 0.0
      %1879 = vmatpush2.msra.mxu0 0.0
      %1880 = vmatprep.subr.mxu0 0.0
      %1881 = vmatpush2.msra.mxu0 0.0
      %1882 = vmatprep.mubr.f32.mxu0 0.0
      %1883 = vmatmul.mubr.f32.gmra.mxu0 %v1816
      %v1884 = vpop.f32.mrf.mxu0
      %v1885 = vadd.f32 %v1808, %v1884
      %v1886 = vpop.f32.mrf.mxu0
      %1887 = vdwg.mxu0
      %v1888 = vmax.f32 %v1885, 0.0
      %v1889 = vld [vmem:[%s8] sm:$0xff]
      %v1891 = vsel %vm1787, %v1888, 0
      %1893 = vmatprep.subr.mxu0 0.0
      %1894 = vmatpush1.msra.mxu0 0.0
      %1895 = vmatprep.subr.mxu0 0.0
      %1896 = vmatpush1.msra.mxu0 0.0
      %1897 = vmatprep.subr.mxu0 0.0
      %1898 = vmatpush1.msra.mxu0 0.0
      %1899 = vmatprep.subr.mxu0 0.0
      %1900 = vmatpush1.msra.mxu0 0.0
      %1901 = vmatprep.subr.mxu0 0.0
      %1902 = vmatpush1.msra.mxu0 0.0
      %1903 = vmatprep.subr.mxu0 0.0
      %1904 = vmatpush1.msra.mxu0 0.0
      %1905 = vmatprep.subr.mxu0 0.0
      %1906 = vmatpush1.msra.mxu0 0.0
      %1907 = vmatprep.subr.mxu0 0.0
      %1908 = vmatpush1.msra.mxu0 0.0
      %1909 = vmatprep.subr.mxu0 0.0
      %1910 = vmatpush1.msra.mxu0 0.0
      %1911 = vmatprep.subr.mxu0 0.0
      %1912 = vmatpush1.msra.mxu0 0.0
      %1913 = vmatprep.subr.mxu0 0.0
      %1914 = vmatpush1.msra.mxu0 0.0
      %1915 = vmatprep.subr.mxu0 0.0
      %1916 = vmatpush1.msra.mxu0 0.0
      %1917 = vmatprep.subr.mxu0 0.0
      %1918 = vmatpush1.msra.mxu0 0.0
      %1919 = vmatprep.subr.mxu0 0.0
      %1920 = vmatpush1.msra.mxu0 0.0
      %1921 = vmatprep.subr.mxu0 0.0
      %1922 = vmatpush1.msra.mxu0 0.0
      %1923 = vmatprep.subr.mxu0 0.0
      %1924 = vmatpush1.msra.mxu0 %v1889
      %1925 = vmatprep.subr.mxu0 0.0
      %1926 = vmatpush2.msra.mxu0 0.0
      %1927 = vmatprep.subr.mxu0 0.0
      %1928 = vmatpush2.msra.mxu0 0.0
      %1929 = vmatprep.subr.mxu0 0.0
      %1930 = vmatpush2.msra.mxu0 0.0
      %1931 = vmatprep.subr.mxu0 0.0
      %1932 = vmatpush2.msra.mxu0 0.0
      %1933 = vmatprep.subr.mxu0 0.0
      %1934 = vmatpush2.msra.mxu0 0.0
      %1935 = vmatprep.subr.mxu0 0.0
      %1936 = vmatpush2.msra.mxu0 0.0
      %1937 = vmatprep.subr.mxu0 0.0
      %1938 = vmatpush2.msra.mxu0 0.0
      %1939 = vmatprep.subr.mxu0 0.0
      %1940 = vmatpush2.msra.mxu0 0.0
      %1941 = vmatprep.subr.mxu0 0.0
      %1942 = vmatpush2.msra.mxu0 0.0
      %1943 = vmatprep.subr.mxu0 0.0
      %1944 = vmatpush2.msra.mxu0 0.0
      %1945 = vmatprep.subr.mxu0 0.0
      %1946 = vmatpush2.msra.mxu0 0.0
      %1947 = vmatprep.subr.mxu0 0.0
      %1948 = vmatpush2.msra.mxu0 0.0
      %1949 = vmatprep.subr.mxu0 0.0
      %1950 = vmatpush2.msra.mxu0 0.0
      %1951 = vmatprep.subr.mxu0 0.0
      %1952 = vmatpush2.msra.mxu0 0.0
      %1953 = vmatprep.subr.mxu0 0.0
      %1954 = vmatpush2.msra.mxu0 0.0
      %1955 = vmatprep.subr.mxu0 0.0
      %1956 = vmatpush2.msra.mxu0 0.0
      %1957 = vmatprep.mubr.f32.mxu0 0.0
      %1958 = vmatmul.mubr.f32.gmra.mxu0 %v1891
      %v1959 = vpop.f32.mrf.mxu0
      %v1960 = vadd.f32 0.0, %v1959
      %v1961 = vpop.f32.mrf.mxu0
      %1962 = vdwg.mxu0
      %v1963 = vld [vmem:[%s7] sm:$0xff]
      %v1964 = vld [vmem:[%s7 + $0x8] sm:$0xff]
      %v1965 = vld [vmem:[%s7 + $0x10] sm:$0xff]
      %v1966 = vld [vmem:[%s7 + $0x18] sm:$0xff]
      %v1967 = vld [vmem:[%s7 + $0x20] sm:$0xff]
      %v1968 = vld [vmem:[%s7 + $0x28] sm:$0xff]
      %v1969 = vld [vmem:[%s7 + $0x30] sm:$0xff]
      %v1970 = vld [vmem:[%s7 + $0x38] sm:$0xff]
      %v1971 = vld [vmem:[%s7 + $0x40] sm:$0xff]
      %v1972 = vld [vmem:[%s7 + $0x48] sm:$0xff]
      %v1973 = vld [vmem:[%s7 + $0x50] sm:$0xff]
      %v1974 = vld [vmem:[%s7 + $0x58] sm:$0xff]
      %v1975 = vld [vmem:[%s7 + $0x60] sm:$0xff]
      %v1976 = vld [vmem:[%s7 + $0x68] sm:$0xff]
      %v1977 = vld [vmem:[%s7 + $0x70] sm:$0xff]
      %v1978 = vld [vmem:[%s7 + $0x78] sm:$0xff]
      %v1979 = vld [vmem:[%s7 + $0x80] sm:$0xff]
      %v1980 = vld [vmem:[%s7 + $0x88] sm:$0xff]
      %v1981 = vld [vmem:[%s7 + $0x90] sm:$0xff]
      %v1982 = vld [vmem:[%s7 + $0x98] sm:$0xff]
      %v1983 = vld [vmem:[%s7 + $0xa0] sm:$0xff]
      %v1984 = vld [vmem:[%s7 + $0xa8] sm:$0xff]
      %v1985 = vld [vmem:[%s7 + $0xb0] sm:$0xff]
      %v1986 = vld [vmem:[%s7 + $0xb8] sm:$0xff]
      %v1987 = vld [vmem:[%s7 + $0xc0] sm:$0xff]
      %v1988 = vld [vmem:[%s7 + $0xc8] sm:$0xff]
      %v1989 = vld [vmem:[%s7 + $0xd0] sm:$0xff]
      %v1990 = vld [vmem:[%s7 + $0xd8] sm:$0xff]
      %v1991 = vld [vmem:[%s7 + $0xe0] sm:$0xff]
      %v1992 = vld [vmem:[%s7 + $0xe8] sm:$0xff]
      %v1993 = vld [vmem:[%s7 + $0xf0] sm:$0xff]
      %v1994 = vld [vmem:[%s7 + $0xf8] sm:$0xff]
      %v1995 = vld [vmem:[%s7 + $0x100] sm:$0xff]
      %v1996 = vld [vmem:[%s7 + $0x108] sm:$0xff]
      %v1997 = vld [vmem:[%s7 + $0x110] sm:$0xff]
      %v1998 = vld [vmem:[%s7 + $0x118] sm:$0xff]
      %v1999 = vld [vmem:[%s7 + $0x120] sm:$0xff]
      %v2000 = vld [vmem:[%s7 + $0x128] sm:$0xff]
      %v2001 = vld [vmem:[%s7 + $0x130] sm:$0xff]
      %v2002 = vld [vmem:[%s7 + $0x138] sm:$0xff]
      %v2003 = vld [vmem:[%s7 + $0x140] sm:$0xff]
      %v2004 = vld [vmem:[%s7 + $0x148] sm:$0xff]
      %v2005 = vld [vmem:[%s7 + $0x150] sm:$0xff]
      %v2006 = vld [vmem:[%s7 + $0x158] sm:$0xff]
      %v2007 = vld [vmem:[%s7 + $0x160] sm:$0xff]
      %v2008 = vld [vmem:[%s7 + $0x168] sm:$0xff]
      %v2009 = vld [vmem:[%s7 + $0x170] sm:$0xff]
      %v2010 = vld [vmem:[%s7 + $0x178] sm:$0xff]
      %v2011 = vld [vmem:[%s7 + $0x180] sm:$0xff]
      %v2012 = vld [vmem:[%s7 + $0x188] sm:$0xff]
      %v2013 = vld [vmem:[%s7 + $0x190] sm:$0xff]
      %v2014 = vld [vmem:[%s7 + $0x198] sm:$0xff]
      %v2015 = vld [vmem:[%s7 + $0x1a0] sm:$0xff]
      %v2016 = vld [vmem:[%s7 + $0x1a8] sm:$0xff]
      %v2017 = vld [vmem:[%s7 + $0x1b0] sm:$0xff]
      %v2018 = vld [vmem:[%s7 + $0x1b8] sm:$0xff]
      %v2019 = vld [vmem:[%s7 + $0x1c0] sm:$0xff]
      %v2020 = vld [vmem:[%s7 + $0x1c8] sm:$0xff]
      %v2021 = vld [vmem:[%s7 + $0x1d0] sm:$0xff]
      %v2022 = vld [vmem:[%s7 + $0x1d8] sm:$0xff]
      %v2023 = vld [vmem:[%s7 + $0x1e0] sm:$0xff]
      %v2024 = vld [vmem:[%s7 + $0x1e8] sm:$0xff]
      %v2025 = vld [vmem:[%s7 + $0x1f0] sm:$0xff]
      %v2026 = vld [vmem:[%s7 + $0x1f8] sm:$0xff]
      %v2027 = vlaneseq
      %v2028 = vshrl.u32 %v2027, 7
      %v2029 = vsub.s32 0, %v2028
      %v2030 = vrot.slane %v1960, %v2029
      %2031 = vmatprep.subr.mxu0 0.0
      %2032 = vmatpush1.msra.mxu0 %v1978
      %2033 = vmatprep.subr.mxu0 0.0
      %2034 = vmatpush1.msra.mxu0 %v1977
      %2035 = vmatprep.subr.mxu0 0.0
      %2036 = vmatpush1.msra.mxu0 %v1976
      %2037 = vmatprep.subr.mxu0 0.0
      %2038 = vmatpush1.msra.mxu0 %v1975
      %2039 = vmatprep.subr.mxu0 0.0
      %2040 = vmatpush1.msra.mxu0 %v1974
      %2041 = vmatprep.subr.mxu0 0.0
      %2042 = vmatpush1.msra.mxu0 %v1973
      %2043 = vmatprep.subr.mxu0 0.0
      %2044 = vmatpush1.msra.mxu0 %v1972
      %2045 = vmatprep.subr.mxu0 0.0
      %2046 = vmatpush1.msra.mxu0 %v1971
      %2047 = vmatprep.subr.mxu0 0.0
      %2048 = vmatpush1.msra.mxu0 %v1970
      %2049 = vmatprep.subr.mxu0 0.0
      %2050 = vmatpush1.msra.mxu0 %v1969
      %2051 = vmatprep.subr.mxu0 0.0
      %2052 = vmatpush1.msra.mxu0 %v1968
      %2053 = vmatprep.subr.mxu0 0.0
      %2054 = vmatpush1.msra.mxu0 %v1967
      %2055 = vmatprep.subr.mxu0 0.0
      %2056 = vmatpush1.msra.mxu0 %v1966
      %2057 = vmatprep.subr.mxu0 0.0
      %2058 = vmatpush1.msra.mxu0 %v1965
      %2059 = vmatprep.subr.mxu0 0.0
      %2060 = vmatpush1.msra.mxu0 %v1964
      %2061 = vmatprep.subr.mxu0 0.0
      %2062 = vmatpush1.msra.mxu0 %v1963
      %2063 = vmatprep.subr.mxu0 0.0
      %2064 = vmatpush2.msra.mxu0 %v1994
      %2065 = vmatprep.subr.mxu0 0.0
      %2066 = vmatpush2.msra.mxu0 %v1993
      %2067 = vmatprep.subr.mxu0 0.0
      %2068 = vmatpush2.msra.mxu0 %v1992
      %2069 = vmatprep.subr.mxu0 0.0
      %2070 = vmatpush2.msra.mxu0 %v1991
      %2071 = vmatprep.subr.mxu0 0.0
      %2072 = vmatpush2.msra.mxu0 %v1990
      %2073 = vmatprep.subr.mxu0 0.0
      %2074 = vmatpush2.msra.mxu0 %v1989
      %2075 = vmatprep.subr.mxu0 0.0
      %2076 = vmatpush2.msra.mxu0 %v1988
      %2077 = vmatprep.subr.mxu0 0.0
      %2078 = vmatpush2.msra.mxu0 %v1987
      %2079 = vmatprep.subr.mxu0 0.0
      %2080 = vmatpush2.msra.mxu0 %v1986
      %2081 = vmatprep.subr.mxu0 0.0
      %2082 = vmatpush2.msra.mxu0 %v1985
      %2083 = vmatprep.subr.mxu0 0.0
      %2084 = vmatpush2.msra.mxu0 %v1984
      %2085 = vmatprep.subr.mxu0 0.0
      %2086 = vmatpush2.msra.mxu0 %v1983
      %2087 = vmatprep.subr.mxu0 0.0
      %2088 = vmatpush2.msra.mxu0 %v1982
      %2089 = vmatprep.subr.mxu0 0.0
      %2090 = vmatpush2.msra.mxu0 %v1981
      %2091 = vmatprep.subr.mxu0 0.0
      %2092 = vmatpush2.msra.mxu0 %v1980
      %2093 = vmatprep.subr.mxu0 0.0
      %2094 = vmatpush2.msra.mxu0 %v1979
      %2095 = vmatprep.mubr.f32.mxu0 %v1756
      %2096 = vmatmul.mubr.f32.gmra.mxu0 %v1755
      %v2097 = vpop.f32.mrf.mxu0
      %v2098 = vadd.f32 %v2030, %v2097
      %v2099 = vpop.f32.mrf.mxu0
      %2100 = vmatprep.mubr.f32.mxu0 %v1760
      %2101 = vmatmul.mubr.f32.gmra.mxu0 %v1759
      %v2102 = vpop.f32.mrf.mxu0
      %v2103 = vadd.f32 %v2030, %v2102
      %v2104 = vpop.f32.mrf.mxu0
      %2105 = vdwg.mxu0
      %2106 = vmatprep.subr.mxu0 0.0
      %2107 = vmatpush1.msra.mxu0 %v2010
      %2108 = vmatprep.subr.mxu0 0.0
      %2109 = vmatpush1.msra.mxu0 %v2009
      %2110 = vmatprep.subr.mxu0 0.0
      %2111 = vmatpush1.msra.mxu0 %v2008
      %2112 = vmatprep.subr.mxu0 0.0
      %2113 = vmatpush1.msra.mxu0 %v2007
      %2114 = vmatprep.subr.mxu0 0.0
      %2115 = vmatpush1.msra.mxu0 %v2006
      %2116 = vmatprep.subr.mxu0 0.0
      %2117 = vmatpush1.msra.mxu0 %v2005
      %2118 = vmatprep.subr.mxu0 0.0
      %2119 = vmatpush1.msra.mxu0 %v2004
      %2120 = vmatprep.subr.mxu0 0.0
      %2121 = vmatpush1.msra.mxu0 %v2003
      %2122 = vmatprep.subr.mxu0 0.0
      %2123 = vmatpush1.msra.mxu0 %v2002
      %2124 = vmatprep.subr.mxu0 0.0
      %2125 = vmatpush1.msra.mxu0 %v2001
      %2126 = vmatprep.subr.mxu0 0.0
      %2127 = vmatpush1.msra.mxu0 %v2000
      %2128 = vmatprep.subr.mxu0 0.0
      %2129 = vmatpush1.msra.mxu0 %v1999
      %2130 = vmatprep.subr.mxu0 0.0
      %2131 = vmatpush1.msra.mxu0 %v1998
      %2132 = vmatprep.subr.mxu0 0.0
      %2133 = vmatpush1.msra.mxu0 %v1997
      %2134 = vmatprep.subr.mxu0 0.0
      %2135 = vmatpush1.msra.mxu0 %v1996
      %2136 = vmatprep.subr.mxu0 0.0
      %2137 = vmatpush1.msra.mxu0 %v1995
      %2138 = vmatprep.subr.mxu0 0.0
      %2139 = vmatpush2.msra.mxu0 %v2026
      %2140 = vmatprep.subr.mxu0 0.0
      %2141 = vmatpush2.msra.mxu0 %v2025
      %2142 = vmatprep.subr.mxu0 0.0
      %2143 = vmatpush2.msra.mxu0 %v2024
      %2144 = vmatprep.subr.mxu0 0.0
      %2145 = vmatpush2.msra.mxu0 %v2023
      %2146 = vmatprep.subr.mxu0 0.0
      %2147 = vmatpush2.msra.mxu0 %v2022
      %2148 = vmatprep.subr.mxu0 0.0
      %2149 = vmatpush2.msra.mxu0 %v2021
      %2150 = vmatprep.subr.mxu0 0.0
      %2151 = vmatpush2.msra.mxu0 %v2020
      %2152 = vmatprep.subr.mxu0 0.0
      %2153 = vmatpush2.msra.mxu0 %v2019
      %2154 = vmatprep.subr.mxu0 0.0
      %2155 = vmatpush2.msra.mxu0 %v2018
      %2156 = vmatprep.subr.mxu0 0.0
      %2157 = vmatpush2.msra.mxu0 %v2017
      %2158 = vmatprep.subr.mxu0 0.0
      %2159 = vmatpush2.msra.mxu0 %v2016
      %2160 = vmatprep.subr.mxu0 0.0
      %2161 = vmatpush2.msra.mxu0 %v2015
      %2162 = vmatprep.subr.mxu0 0.0
      %2163 = vmatpush2.msra.mxu0 %v2014
      %2164 = vmatprep.subr.mxu0 0.0
      %2165 = vmatpush2.msra.mxu0 %v2013
      %2166 = vmatprep.subr.mxu0 0.0
      %2167 = vmatpush2.msra.mxu0 %v2012
      %2168 = vmatprep.subr.mxu0 0.0
      %2169 = vmatpush2.msra.mxu0 %v2011
      %2170 = vmatprep.mubr.f32.mxu0 %v1758
      %2171 = vmatmul.mubr.f32.gmra.mxu0 %v1757
      %v2172 = vpop.f32.mrf.mxu0
      %v2173 = vadd.f32 %v2098, %v2172
      %v2174 = vpop.f32.mrf.mxu0
      %2175 = vmatprep.mubr.f32.mxu0 %v1762
      %2176 = vmatmul.mubr.f32.gmra.mxu0 %v1761
      %v2177 = vpop.f32.mrf.mxu0
      %v2178 = vadd.f32 %v2103, %v2177
      %v2179 = vpop.f32.mrf.mxu0
      %2180 = vdwg.mxu0
      %v2181 = vld [vmem:[%s9] sm:$0x1]
      %v2183 = vlaneseq
      %v2184 = vshrl.u32 %v2183, 7
      %v2185 = vsub.s32 0, %v2184
      %v2186 = vrot.slane %v2181, %v2185
      %v2188 = vadd.f32 %v2173, %v2186
      %v2189 = vadd.f32 %v2178, %v2186
      %v2190 = vmax.f32 %v2188, 0.0
      %v2191 = vmax.f32 %v2189, 0.0
      %2192 = vst [vmem:[%s359] sm:$0xff] %v2190
      %2193 = vst [vmem:[%s359 + $0x8] sm:$0xff] %v2191
      %p2194 = scmp.lt.s32.totalorder %s21, 1
      %s2195 = scalar_select %p2194, %s21, 1
      %s2196 = smul.addr %s2195, 2
      %s2197 = smul.addr %s2196, 8
      %s2198 = scalar_lea.vmem %s10, %s2197
      // Predicated region
      $region61: #{aspp_forward.1} parent=59 // pred_check
        %p2199 = pneg %p254
      $region62: #{aspp_forward.1} parent=59 // pred_check_branch
        %2201 = sbr.rel (%p2199) target = $region64
      $region63: #{aspp_forward.1} parent=59 // pred_region
        _
      $region64: #{aspp_forward.1} parent=59 // pred_fallthru
        _
    $region60: #{aspp_forward.1} parent=5 // pred_fallthru
      _
    %p2202 = scmp.le.s32.totalorder 2, %s16
    // Predicated region
    $region65: #{aspp_forward.1} parent=5 // pred_check
      %p2203 = pneg %p2202
    $region66: #{aspp_forward.1} parent=5 // pred_check_branch
      %2205 = sbr.rel (%p2203) target = $region68
    $region67: #{aspp_forward.1} parent=5 // pred_region
      %s2206 = ssub.s32 %s16, 2
      // Predicated region
      $region69: #{aspp_forward.1} parent=67 // pred_check
        %p2207 = pneg %p260
      $region70: #{aspp_forward.1} parent=67 // pred_check_branch
        %2209 = sbr.rel (%p2207) target = $region72
      $region71: #{aspp_forward.1} parent=67 // pred_region
        %p2210 = scmp.lt.s32.totalorder %s22, 1
        %s2211 = scalar_select %p2210, %s22, 1
        %s2212 = smul.addr %s2211, 2
        %s2213 = smul.addr %s2212, 8
        %s2214 = scalar_lea.vmem %s10, %s2213
      $region72: #{aspp_forward.1} parent=67 // pred_fallthru
        _
    $region68: #{aspp_forward.1} parent=5 // pred_fallthru
      _
  $region6: #{aspp_forward.1} parent=0 // loop_footer
    %s20 = sadd.s32 1, %s16
  $region7: #{aspp_forward.1} parent=0 // loop_footer_branch
    %15 = sbr.rel target = $region3
  $region8: #{aspp_forward.1} parent=0 // loop_exit
    _

</llo_original>
